<compile_context>
chip_gen: v7x
topology: tpu7x:2x2x1
jax: 0.10.0
libtpu: 0.0.40
codegen_flags: <defaults>
</compile_context>

<pallas_src>
import functools

import numpy as np
import jax
import jax.numpy as jnp
from jax import lax
from jax.experimental import pallas as pl
from jax.experimental.pallas import tpu as pltpu

_OC_PAD = 128          # conv3 out-channels padded 64 -> 128 for lane-dense stores


def _conv_out(size, k, stride):
    return (size - k) // stride + 1


# ------------------------------ fused Pallas kernel ------------------------------ #

def _fused_cnn_kernel(xp_ref, w1_ref, w2_ref, w3_ref, b1_ref, b2_ref, b3_ref,
                      o_ref, *, B, K1, PH2, PW2, OH2, OW2, OH3, OW3):
    """One grid step == one block of B samples; conv1+ReLU -> conv2+ReLU ->
    conv3+ReLU entirely in VMEM/vregs.

    Per layer: stride-1 slices of the bf16 activation are lane-concatenated into
    an im2col patch tile, flattened to 2-D (leading dims merged, minor dim
    untouched) and hit the MXU with a single K-deep matmul (f32 accumulation).
    conv2's stride-2 never appears: conv1 produces its output as four
    (row,col)-parity grids, so conv2's 16 taps are stride-1 slices of those.
    """
    bf16, f32 = jnp.bfloat16, jnp.float32
    xp = xp_ref[...]                                   # (B, 4, HP, WP, K1) bf16

    # ---- conv1: 8x8 stride-4  ==  2x2 stride-1 on the s2d-4 grid ----------------
    # Computed per conv1-OUTPUT parity class (rh, rw); all four classes share one
    # matmul (concatenated along M).
    pieces = []
    for rh in (0, 1):
        for rw in (0, 1):
            taps = []
            for kh in (0, 1):
                for kw in (0, 1):
                    e, d = (rh + kh) % 2, (rh + kh) // 2
                    f, g = (rw + kw) % 2, (rw + kw) // 2
                    taps.append(xp[:, e * 2 + f, d:d + PH2, g:g + PW2, :])
            p = jnp.concatenate(taps, axis=-1)         # (B, PH2, PW2, 4*K1) bf16
            pieces.append(p.reshape(B * PH2 * PW2, 4 * K1))
    patches1 = jnp.concatenate(pieces, axis=0)         # (4*B*PH2*PW2, 4*K1)
    a1 = jnp.dot(patches1, w1_ref[...], preferred_element_type=f32)
    a1 = jnp.maximum(a1 + b1_ref[...], 0.0).astype(bf16)
    a1 = a1.reshape(2, 2, B, PH2, PW2, 32)             # [rh, rw, b, p, q, c]

    # ---- conv2: 4x4 stride-2  ->  16 stride-1 taps over the parity grids --------
    taps = []
    for rh in (0, 1):
        for rw in (0, 1):
            for ph in (0, 1):
                for pw in (0, 1):
                    taps.append(a1[rh, rw, :, ph:ph + OH2, pw:pw + OW2, :])
    patches2 = jnp.concatenate(taps, axis=-1)          # (B, OH2, OW2, 512) bf16
    patches2 = patches2.reshape(B * OH2 * OW2, 16 * 32)
    a2 = jnp.dot(patches2, w2_ref[...], preferred_element_type=f32)
    a2 = jnp.maximum(a2 + b2_ref[...], 0.0).astype(bf16)
    a2 = a2.reshape(B, OH2, OW2, 64)

    # ---- conv3: 3x3 stride-1; out-channels padded 64 -> 128 (lane-dense store) --
    taps = []
    for kh in range(3):
        for kw in range(3):
            taps.append(a2[:, kh:kh + OH3, kw:kw + OW3, :])
    patches3 = jnp.concatenate(taps, axis=-1)          # (B, OH3, OW3, 576) bf16
    patches3 = patches3.reshape(B * OH3 * OW3, 9 * 64)
    a3 = jnp.dot(patches3, w3_ref[...], preferred_element_type=f32)
    a3 = jnp.maximum(a3 + b3_ref[...], 0.0)
    o_ref[...] = a3.reshape(B, OH3 * OW3, _OC_PAD).astype(o_ref.dtype)


# ------------------------------ static preparation ------------------------------ #

def init_params(key, in_channels):
    """Parameters mirroring CNNEncoder.__init__: conv1 (32,C,8,8) s4,
    conv2 (64,32,4,4) s2, conv3 (64,64,3,3) s1; orthogonal(sqrt(2)) weights,
    PyTorch-default uniform biases."""
    ortho = jax.nn.initializers.orthogonal(scale=float(np.sqrt(2)))
    k1, k2, k3, kb1, kb2, kb3 = jax.random.split(key, 6)

    def bias(k, fan_in, n):
        bound = 1.0 / np.sqrt(fan_in)
        return jax.random.uniform(k, (n,), jnp.float32, -bound, bound)

    return {
        "w1": ortho(k1, (32, in_channels, 8, 8), jnp.float32),
        "b1": bias(kb1, in_channels * 8 * 8, 32),
        "w2": ortho(k2, (64, 32, 4, 4), jnp.float32),
        "b2": bias(kb2, 32 * 4 * 4, 64),
        "w3": ortho(k3, (64, 64, 3, 3), jnp.float32),
        "b3": bias(kb3, 64 * 3 * 3, 64),
    }


def make_cnn_encoder(params, in_shape, *, batch_block=8):
    """Precompute (once) all kernel-side constants and return a jitted forward.

    batch_block: samples per grid step (folded into the matmul M dimension);
    raise toward 8-32 for real RL batch sizes (M multiples of 256 on v6e/v7x,
    128 on v5e). VMEM per block is only a few MB so there is plenty of headroom.
    """
    C, H, W = in_shape
    assert H % 4 == 0 and W % 4 == 0, "conv1 (k=8, s=4, VALID) wants H, W % 4 == 0"
    H4, W4 = H // 4, W // 4
    OH1, OW1 = H4 - 1, W4 - 1                        # conv1 out (2x2 s1 on s2d-4 grid)
    OH2, OW2 = _conv_out(OH1, 4, 2), _conv_out(OW1, 4, 2)
    OH3, OW3 = _conv_out(OH2, 3, 1), _conv_out(OW2, 3, 1)
    assert OH3 >= 1 and OW3 >= 1, "input too small for the Atari CNN"
    PH2, PW2 = OH2 + 1, OW2 + 1                      # parity-grid extent needed by conv2
    HP, WP = (H4 + 1) // 2, (W4 + 1) // 2            # parity-split s2d grid extent
    assert PH2 + 1 <= HP + 1 and PH2 <= HP - 1 and PW2 <= WP - 1
    K1 = 16 * C                                      # s2d-4 channel count
    P3 = OH3 * OW3
    conv_enc_size = 64 * P3
    B = int(batch_block)

    # ---- weights rearranged ONCE into "all taps fused along K" matmul form ------
    W1 = np.asarray(params["w1"], np.float32)        # (32, C, 8, 8)
    w1c = np.zeros((4 * K1, 32), np.float32)
    for kh in range(2):
        for kw in range(2):
            for a in range(4):
                for b in range(4):
                    for c in range(C):
                        k = (kh * 2 + kw) * K1 + (a * 4 + b) * C + c
                        w1c[k] = W1[:, c, 4 * kh + a, 4 * kw + b]

    W2 = np.asarray(params["w2"], np.float32)        # (64, 32, 4, 4)
    w2c = np.zeros((16 * 32, 64), np.float32)
    t = 0
    for rh in range(2):
        for rw in range(2):
            for ph in range(2):
                for pw in range(2):
                    w2c[t * 32:(t + 1) * 32] = W2[:, :, 2 * ph + rh, 2 * pw + rw].T
                    t += 1

    W3 = np.asarray(params["w3"], np.float32)        # (64, 64, 3, 3)
    w3c = np.zeros((9 * 64, _OC_PAD), np.float32)
    for kh in range(3):
        for kw in range(3):
            t = kh * 3 + kw
            w3c[t * 64:(t + 1) * 64, :64] = W3[:, :, kh, kw].T

    b3p = np.zeros((_OC_PAD,), np.float32)
    b3p[:64] = np.asarray(params["b3"], np.float32)

    consts = (
        jnp.asarray(w1c, jnp.bfloat16),
        jnp.asarray(w2c, jnp.bfloat16),
        jnp.asarray(w3c, jnp.bfloat16),
        jnp.asarray(params["b1"], jnp.float32).reshape(1, 32),
        jnp.asarray(params["b2"], jnp.float32).reshape(1, 64),
        jnp.asarray(b3p, jnp.float32).reshape(1, _OC_PAD),
    )
    const_bytes = sum(int(np.prod(a.shape)) * a.dtype.itemsize for a in consts)

    def _resident(arr):      # full-array block, constant index -> VMEM-resident
        return pl.BlockSpec(arr.shape, lambda n: (0,) * arr.ndim)

    kernel = functools.partial(
        _fused_cnn_kernel, B=B, K1=K1,
        PH2=PH2, PW2=PW2, OH2=OH2, OW2=OW2, OH3=OH3, OW3=OW3)

    # Real matmul work only (no gather matmuls anymore).
    flops_per_block = 2 * (4 * B * PH2 * PW2 * (4 * K1) * 32
                           + B * OH2 * OW2 * (16 * 32) * 64
                           + B * OH3 * OW3 * (9 * 64) * _OC_PAD)

    @jax.jit
    def forward(x_nchw):
        """x_nchw: (N, C, H, W) float32 -> (N, conv_enc_size) float32."""
        N = x_nchw.shape[0]
        n_blocks = pl.cdiv(N, B)
        n_pad = n_blocks * B

        # NCHW -> space-to-depth(4) channels-last, then split by (row, col) parity
        # of the s2d grid: pure layout permutation, no byte duplication.
        x = x_nchw.astype(jnp.bfloat16)
        x4 = x.reshape(N, C, H4, 4, W4, 4).transpose(0, 2, 4, 3, 5, 1)
        x4 = x4.reshape(N, H4, W4, K1)
        subs = []
        for e in (0, 1):
            for f in (0, 1):
                s = x4[:, e::2, f::2, :]
                s = jnp.pad(s, ((0, 0), (0, HP - s.shape[1]),
                                (0, WP - s.shape[2]), (0, 0)))
                subs.append(s)
        xp = jnp.stack(subs, axis=1)                         # (N, 4, HP, WP, K1)
        if n_pad != N:
            xp = jnp.pad(xp, ((0, n_pad - N),) + ((0, 0),) * 4)

        out = pl.pallas_call(
            kernel,
            out_shape=jax.ShapeDtypeStruct((n_pad, P3, _OC_PAD), jnp.bfloat16),
            grid=(n_blocks,),
            in_specs=[pl.BlockSpec((B, 4, HP, WP, K1),
                                   lambda n: (n, 0, 0, 0, 0))]
                     + [_resident(a) for a in consts],
            out_specs=pl.BlockSpec((B, P3, _OC_PAD), lambda n: (n, 0, 0)),
            compiler_params=pltpu.CompilerParams(
                dimension_semantics=("parallel",),       # batch blocks -> 2 TCs on v7x
                vmem_limit_bytes=48 * 1024 * 1024),      # < v7x 64 MiB physical VMEM
            cost_estimate=pl.CostEstimate(
                flops=int(n_blocks) * flops_per_block,
                transcendentals=0,
                bytes_accessed=(n_pad * 4 * HP * WP * K1 * 2
                                + const_bytes + n_pad * P3 * _OC_PAD * 2)),
        )(xp, *consts)

        # Drop batch/channel padding; restore PyTorch's NCHW flatten order.
        h = out[:N, :, :64].astype(jnp.float32).reshape(N, OH3, OW3, 64)
        return h.transpose(0, 3, 1, 2).reshape(N, conv_enc_size)

    return forward, conv_enc_size


# ------------------------------------- main ------------------------------------- #

if __name__ == "__main__":
    key = jax.random.PRNGKey(0)

    def ref_forward(xr, p):
        """Precision-matched reference (bf16 operands, f32 accumulation), PyTorch
        (NCHW, OIHW, VALID) semantics."""
        h = xr
        for w, b, s in ((p["w1"], p["b1"], 4), (p["w2"], p["b2"], 2),
                        (p["w3"], p["b3"], 1)):
            h = lax.conv_general_dilated(
                h.astype(jnp.bfloat16), w.astype(jnp.bfloat16), (s, s), "VALID",
                dimension_numbers=("NCHW", "OIHW", "NCHW"),
                preferred_element_type=jnp.float32)
            h = jnp.maximum(h + b[None, :, None, None], 0.0)
        return h.reshape(h.shape[0], -1)

    def check(name, N, C, H, W, batch_block, kp, kx):
        params = init_params(kp, C)
        fwd, enc = make_cnn_encoder(params, (C, H, W), batch_block=batch_block)
        x = jax.random.normal(kx, (N, C, H, W), jnp.float32)
        y = fwd(x)
        jax.block_until_ready(y)
        y_ref = ref_forward(x, params)
        assert y.shape == (N, enc), (name, y.shape, enc)
        assert bool(jnp.all(y >= 0.0)), name                 # final ReLU
        scale = float(jnp.max(jnp.abs(y_ref)))
        err = float(jnp.max(jnp.abs(y - y_ref)))
        assert err <= 4e-2 * max(1.0, scale), (name, err, scale)

    k1, k2, k3, k4 = jax.random.split(key, 4)
    # Smallest valid Atari-CNN input (36x36 -> 8x8 -> 3x3 -> 1x1); grid length 2.
    check("36x36", N=8, C=4, H=36, W=36, batch_block=4, kp=k1, kx=k2)
    # Canonical 84x84 Atari frame; odd batch exercises the batch-padding path.
    check("84x84", N=5, C=4, H=84, W=84, batch_block=4, kp=k3, kx=k4)
    print("KERNEL_OK")
</pallas_src>

<mosaic_0001>
module attributes {stable_mosaic.version = 11 : i64} {
  func.func @_fused_cnn_kernel(%arg0: i32, %arg1: memref<4x4x5x5x64xbf16, #tpu.memory_space<vmem>>, %arg2: memref<256x32xbf16, #tpu.memory_space<vmem>>, %arg3: memref<512x64xbf16, #tpu.memory_space<vmem>>, %arg4: memref<576x128xbf16, #tpu.memory_space<vmem>>, %arg5: memref<1x32xf32, #tpu.memory_space<vmem>>, %arg6: memref<1x64xf32, #tpu.memory_space<vmem>>, %arg7: memref<1x128xf32, #tpu.memory_space<vmem>>, %arg8: memref<4x1x128xbf16, #tpu.memory_space<vmem>>) attributes {dimension_semantics = [#tpu.dimension_semantics<parallel>], iteration_bounds = array<i64: 2>, scalar_prefetch = 0 : i64, scratch_operands = 0 : i64, tpu.core_type = #tpu.core_type<tc>, window_params = [{transform_indices = @transform_0, window_bounds = array<i64: 4, 4, 5, 5, 64>}, {pipeline_mode = #tpu.pipeline_mode<synchronous>, transform_indices = @transform_1, window_bounds = array<i64: 256, 32>}, {pipeline_mode = #tpu.pipeline_mode<synchronous>, transform_indices = @transform_2, window_bounds = array<i64: 512, 64>}, {pipeline_mode = #tpu.pipeline_mode<synchronous>, transform_indices = @transform_3, window_bounds = array<i64: 576, 128>}, {pipeline_mode = #tpu.pipeline_mode<synchronous>, transform_indices = @transform_4, window_bounds = array<i64: 1, 32>}, {pipeline_mode = #tpu.pipeline_mode<synchronous>, transform_indices = @transform_5, window_bounds = array<i64: 1, 64>}, {pipeline_mode = #tpu.pipeline_mode<synchronous>, transform_indices = @transform_6, window_bounds = array<i64: 1, 128>}, {transform_indices = @transform_7, window_bounds = array<i64: 4, 1, 128>}]} {
    %c0 = arith.constant 0 : index
    %c0_0 = arith.constant 0 : index
    %c0_1 = arith.constant 0 : index
    %c0_2 = arith.constant 0 : index
    %c0_3 = arith.constant 0 : index
    %0 = vector.load %arg1[%c0, %c0_0, %c0_1, %c0_2, %c0_3] : memref<4x4x5x5x64xbf16, #tpu.memory_space<vmem>>, vector<4x4x5x5x64xbf16>
    %1 = vector.extract_strided_slice %0 {offsets = [0, 0, 0, 0, 0], sizes = [4, 1, 4, 4, 64], strides = [1, 1, 1, 1, 1]} : vector<4x4x5x5x64xbf16> to vector<4x1x4x4x64xbf16>
    %2 = vector.shape_cast %1 : vector<4x1x4x4x64xbf16> to vector<4x4x4x64xbf16>
    %3 = vector.extract_strided_slice %0 {offsets = [0, 1, 0, 0, 0], sizes = [4, 1, 4, 4, 64], strides = [1, 1, 1, 1, 1]} : vector<4x4x5x5x64xbf16> to vector<4x1x4x4x64xbf16>
    %4 = vector.shape_cast %3 : vector<4x1x4x4x64xbf16> to vector<4x4x4x64xbf16>
    %5 = vector.extract_strided_slice %0 {offsets = [0, 2, 0, 0, 0], sizes = [4, 1, 4, 4, 64], strides = [1, 1, 1, 1, 1]} : vector<4x4x5x5x64xbf16> to vector<4x1x4x4x64xbf16>
    %6 = vector.shape_cast %5 : vector<4x1x4x4x64xbf16> to vector<4x4x4x64xbf16>
    %7 = vector.extract_strided_slice %0 {offsets = [0, 3, 0, 0, 0], sizes = [4, 1, 4, 4, 64], strides = [1, 1, 1, 1, 1]} : vector<4x4x5x5x64xbf16> to vector<4x1x4x4x64xbf16>
    %8 = vector.shape_cast %7 : vector<4x1x4x4x64xbf16> to vector<4x4x4x64xbf16>
    %9 = tpu.concatenate %2, %4, %6, %8 in 3 : vector<4x4x4x64xbf16>, vector<4x4x4x64xbf16>, vector<4x4x4x64xbf16>, vector<4x4x4x64xbf16> -> vector<4x4x4x256xbf16>
    %10 = vector.shape_cast %9 : vector<4x4x4x256xbf16> to vector<64x256xbf16>
    %11 = vector.extract_strided_slice %0 {offsets = [0, 1, 0, 0, 0], sizes = [4, 1, 4, 4, 64], strides = [1, 1, 1, 1, 1]} : vector<4x4x5x5x64xbf16> to vector<4x1x4x4x64xbf16>
    %12 = vector.shape_cast %11 : vector<4x1x4x4x64xbf16> to vector<4x4x4x64xbf16>
    %13 = vector.extract_strided_slice %0 {offsets = [0, 0, 0, 1, 0], sizes = [4, 1, 4, 4, 64], strides = [1, 1, 1, 1, 1]} : vector<4x4x5x5x64xbf16> to vector<4x1x4x4x64xbf16>
    %14 = vector.shape_cast %13 : vector<4x1x4x4x64xbf16> to vector<4x4x4x64xbf16>
    %15 = vector.extract_strided_slice %0 {offsets = [0, 3, 0, 0, 0], sizes = [4, 1, 4, 4, 64], strides = [1, 1, 1, 1, 1]} : vector<4x4x5x5x64xbf16> to vector<4x1x4x4x64xbf16>
    %16 = vector.shape_cast %15 : vector<4x1x4x4x64xbf16> to vector<4x4x4x64xbf16>
    %17 = vector.extract_strided_slice %0 {offsets = [0, 2, 0, 1, 0], sizes = [4, 1, 4, 4, 64], strides = [1, 1, 1, 1, 1]} : vector<4x4x5x5x64xbf16> to vector<4x1x4x4x64xbf16>
    %18 = vector.shape_cast %17 : vector<4x1x4x4x64xbf16> to vector<4x4x4x64xbf16>
    %19 = tpu.concatenate %12, %14, %16, %18 in 3 : vector<4x4x4x64xbf16>, vector<4x4x4x64xbf16>, vector<4x4x4x64xbf16>, vector<4x4x4x64xbf16> -> vector<4x4x4x256xbf16>
    %20 = vector.shape_cast %19 : vector<4x4x4x256xbf16> to vector<64x256xbf16>
    %21 = vector.extract_strided_slice %0 {offsets = [0, 2, 0, 0, 0], sizes = [4, 1, 4, 4, 64], strides = [1, 1, 1, 1, 1]} : vector<4x4x5x5x64xbf16> to vector<4x1x4x4x64xbf16>
    %22 = vector.shape_cast %21 : vector<4x1x4x4x64xbf16> to vector<4x4x4x64xbf16>
    %23 = vector.extract_strided_slice %0 {offsets = [0, 3, 0, 0, 0], sizes = [4, 1, 4, 4, 64], strides = [1, 1, 1, 1, 1]} : vector<4x4x5x5x64xbf16> to vector<4x1x4x4x64xbf16>
    %24 = vector.shape_cast %23 : vector<4x1x4x4x64xbf16> to vector<4x4x4x64xbf16>
    %25 = vector.extract_strided_slice %0 {offsets = [0, 0, 1, 0, 0], sizes = [4, 1, 4, 4, 64], strides = [1, 1, 1, 1, 1]} : vector<4x4x5x5x64xbf16> to vector<4x1x4x4x64xbf16>
    %26 = vector.shape_cast %25 : vector<4x1x4x4x64xbf16> to vector<4x4x4x64xbf16>
    %27 = vector.extract_strided_slice %0 {offsets = [0, 1, 1, 0, 0], sizes = [4, 1, 4, 4, 64], strides = [1, 1, 1, 1, 1]} : vector<4x4x5x5x64xbf16> to vector<4x1x4x4x64xbf16>
    %28 = vector.shape_cast %27 : vector<4x1x4x4x64xbf16> to vector<4x4x4x64xbf16>
    %29 = tpu.concatenate %22, %24, %26, %28 in 3 : vector<4x4x4x64xbf16>, vector<4x4x4x64xbf16>, vector<4x4x4x64xbf16>, vector<4x4x4x64xbf16> -> vector<4x4x4x256xbf16>
    %30 = vector.shape_cast %29 : vector<4x4x4x256xbf16> to vector<64x256xbf16>
    %31 = vector.extract_strided_slice %0 {offsets = [0, 3, 0, 0, 0], sizes = [4, 1, 4, 4, 64], strides = [1, 1, 1, 1, 1]} : vector<4x4x5x5x64xbf16> to vector<4x1x4x4x64xbf16>
    %32 = vector.shape_cast %31 : vector<4x1x4x4x64xbf16> to vector<4x4x4x64xbf16>
    %33 = vector.extract_strided_slice %0 {offsets = [0, 2, 0, 1, 0], sizes = [4, 1, 4, 4, 64], strides = [1, 1, 1, 1, 1]} : vector<4x4x5x5x64xbf16> to vector<4x1x4x4x64xbf16>
    %34 = vector.shape_cast %33 : vector<4x1x4x4x64xbf16> to vector<4x4x4x64xbf16>
    %35 = vector.extract_strided_slice %0 {offsets = [0, 1, 1, 0, 0], sizes = [4, 1, 4, 4, 64], strides = [1, 1, 1, 1, 1]} : vector<4x4x5x5x64xbf16> to vector<4x1x4x4x64xbf16>
    %36 = vector.shape_cast %35 : vector<4x1x4x4x64xbf16> to vector<4x4x4x64xbf16>
    %37 = vector.extract_strided_slice %0 {offsets = [0, 0, 1, 1, 0], sizes = [4, 1, 4, 4, 64], strides = [1, 1, 1, 1, 1]} : vector<4x4x5x5x64xbf16> to vector<4x1x4x4x64xbf16>
    %38 = vector.shape_cast %37 : vector<4x1x4x4x64xbf16> to vector<4x4x4x64xbf16>
    %39 = tpu.concatenate %32, %34, %36, %38 in 3 : vector<4x4x4x64xbf16>, vector<4x4x4x64xbf16>, vector<4x4x4x64xbf16>, vector<4x4x4x64xbf16> -> vector<4x4x4x256xbf16>
    %40 = vector.shape_cast %39 : vector<4x4x4x256xbf16> to vector<64x256xbf16>
    %41 = tpu.concatenate %10, %20, %30, %40 in 0 : vector<64x256xbf16>, vector<64x256xbf16>, vector<64x256xbf16>, vector<64x256xbf16> -> vector<256x256xbf16>
    %c0_4 = arith.constant 0 : index
    %c0_5 = arith.constant 0 : index
    %42 = vector.load %arg2[%c0_4, %c0_5] : memref<256x32xbf16, #tpu.memory_space<vmem>>, vector<256x32xbf16>
    %cst = arith.constant dense<0.000000e+00> : vector<256x32xf32>
    %43 = tpu.matmul %41, %42, %cst {dimension_numbers = #tpu.dot_dimension_numbers<[1], [0], [0], [1], [0, 0, 1, 1], [], []>} : vector<256x256xbf16>, vector<256x32xbf16>, vector<256x32xf32> -> vector<256x32xf32>
    %c0_6 = arith.constant 0 : index
    %c0_7 = arith.constant 0 : index
    %44 = vector.load %arg5[%c0_6, %c0_7] : memref<1x32xf32, #tpu.memory_space<vmem>>, vector<1x32xf32>
    %45 = vector.broadcast %44 : vector<1x32xf32> to vector<256x32xf32>
    %46 = arith.addf %43, %45 : vector<256x32xf32>
    %cst_8 = arith.constant 0.000000e+00 : f32
    %47 = vector.broadcast %cst_8 : f32 to vector<256x32xf32>
    %48 = arith.maximumf %46, %47 : vector<256x32xf32>
    %49 = arith.truncf %48 : vector<256x32xf32> to vector<256x32xbf16>
    %50 = vector.shape_cast %49 : vector<256x32xbf16> to vector<2x2x4x4x4x32xbf16>
    %51 = vector.extract_strided_slice %50 {offsets = [0, 0, 0, 0, 0, 0], sizes = [1, 1, 4, 3, 3, 32], strides = [1, 1, 1, 1, 1, 1]} : vector<2x2x4x4x4x32xbf16> to vector<1x1x4x3x3x32xbf16>
    %52 = vector.shape_cast %51 : vector<1x1x4x3x3x32xbf16> to vector<4x3x3x32xbf16>
    %53 = vector.extract_strided_slice %50 {offsets = [0, 0, 0, 0, 1, 0], sizes = [1, 1, 4, 3, 3, 32], strides = [1, 1, 1, 1, 1, 1]} : vector<2x2x4x4x4x32xbf16> to vector<1x1x4x3x3x32xbf16>
    %54 = vector.shape_cast %53 : vector<1x1x4x3x3x32xbf16> to vector<4x3x3x32xbf16>
    %55 = vector.extract_strided_slice %50 {offsets = [0, 0, 0, 1, 0, 0], sizes = [1, 1, 4, 3, 3, 32], strides = [1, 1, 1, 1, 1, 1]} : vector<2x2x4x4x4x32xbf16> to vector<1x1x4x3x3x32xbf16>
    %56 = vector.shape_cast %55 : vector<1x1x4x3x3x32xbf16> to vector<4x3x3x32xbf16>
    %57 = vector.extract_strided_slice %50 {offsets = [0, 0, 0, 1, 1, 0], sizes = [1, 1, 4, 3, 3, 32], strides = [1, 1, 1, 1, 1, 1]} : vector<2x2x4x4x4x32xbf16> to vector<1x1x4x3x3x32xbf16>
    %58 = vector.shape_cast %57 : vector<1x1x4x3x3x32xbf16> to vector<4x3x3x32xbf16>
    %59 = vector.extract_strided_slice %50 {offsets = [0, 1, 0, 0, 0, 0], sizes = [1, 1, 4, 3, 3, 32], strides = [1, 1, 1, 1, 1, 1]} : vector<2x2x4x4x4x32xbf16> to vector<1x1x4x3x3x32xbf16>
    %60 = vector.shape_cast %59 : vector<1x1x4x3x3x32xbf16> to vector<4x3x3x32xbf16>
    %61 = vector.extract_strided_slice %50 {offsets = [0, 1, 0, 0, 1, 0], sizes = [1, 1, 4, 3, 3, 32], strides = [1, 1, 1, 1, 1, 1]} : vector<2x2x4x4x4x32xbf16> to vector<1x1x4x3x3x32xbf16>
    %62 = vector.shape_cast %61 : vector<1x1x4x3x3x32xbf16> to vector<4x3x3x32xbf16>
    %63 = vector.extract_strided_slice %50 {offsets = [0, 1, 0, 1, 0, 0], sizes = [1, 1, 4, 3, 3, 32], strides = [1, 1, 1, 1, 1, 1]} : vector<2x2x4x4x4x32xbf16> to vector<1x1x4x3x3x32xbf16>
    %64 = vector.shape_cast %63 : vector<1x1x4x3x3x32xbf16> to vector<4x3x3x32xbf16>
    %65 = vector.extract_strided_slice %50 {offsets = [0, 1, 0, 1, 1, 0], sizes = [1, 1, 4, 3, 3, 32], strides = [1, 1, 1, 1, 1, 1]} : vector<2x2x4x4x4x32xbf16> to vector<1x1x4x3x3x32xbf16>
    %66 = vector.shape_cast %65 : vector<1x1x4x3x3x32xbf16> to vector<4x3x3x32xbf16>
    %67 = vector.extract_strided_slice %50 {offsets = [1, 0, 0, 0, 0, 0], sizes = [1, 1, 4, 3, 3, 32], strides = [1, 1, 1, 1, 1, 1]} : vector<2x2x4x4x4x32xbf16> to vector<1x1x4x3x3x32xbf16>
    %68 = vector.shape_cast %67 : vector<1x1x4x3x3x32xbf16> to vector<4x3x3x32xbf16>
    %69 = vector.extract_strided_slice %50 {offsets = [1, 0, 0, 0, 1, 0], sizes = [1, 1, 4, 3, 3, 32], strides = [1, 1, 1, 1, 1, 1]} : vector<2x2x4x4x4x32xbf16> to vector<1x1x4x3x3x32xbf16>
    %70 = vector.shape_cast %69 : vector<1x1x4x3x3x32xbf16> to vector<4x3x3x32xbf16>
    %71 = vector.extract_strided_slice %50 {offsets = [1, 0, 0, 1, 0, 0], sizes = [1, 1, 4, 3, 3, 32], strides = [1, 1, 1, 1, 1, 1]} : vector<2x2x4x4x4x32xbf16> to vector<1x1x4x3x3x32xbf16>
    %72 = vector.shape_cast %71 : vector<1x1x4x3x3x32xbf16> to vector<4x3x3x32xbf16>
    %73 = vector.extract_strided_slice %50 {offsets = [1, 0, 0, 1, 1, 0], sizes = [1, 1, 4, 3, 3, 32], strides = [1, 1, 1, 1, 1, 1]} : vector<2x2x4x4x4x32xbf16> to vector<1x1x4x3x3x32xbf16>
    %74 = vector.shape_cast %73 : vector<1x1x4x3x3x32xbf16> to vector<4x3x3x32xbf16>
    %75 = vector.extract_strided_slice %50 {offsets = [1, 1, 0, 0, 0, 0], sizes = [1, 1, 4, 3, 3, 32], strides = [1, 1, 1, 1, 1, 1]} : vector<2x2x4x4x4x32xbf16> to vector<1x1x4x3x3x32xbf16>
    %76 = vector.shape_cast %75 : vector<1x1x4x3x3x32xbf16> to vector<4x3x3x32xbf16>
    %77 = vector.extract_strided_slice %50 {offsets = [1, 1, 0, 0, 1, 0], sizes = [1, 1, 4, 3, 3, 32], strides = [1, 1, 1, 1, 1, 1]} : vector<2x2x4x4x4x32xbf16> to vector<1x1x4x3x3x32xbf16>
    %78 = vector.shape_cast %77 : vector<1x1x4x3x3x32xbf16> to vector<4x3x3x32xbf16>
    %79 = vector.extract_strided_slice %50 {offsets = [1, 1, 0, 1, 0, 0], sizes = [1, 1, 4, 3, 3, 32], strides = [1, 1, 1, 1, 1, 1]} : vector<2x2x4x4x4x32xbf16> to vector<1x1x4x3x3x32xbf16>
    %80 = vector.shape_cast %79 : vector<1x1x4x3x3x32xbf16> to vector<4x3x3x32xbf16>
    %81 = vector.extract_strided_slice %50 {offsets = [1, 1, 0, 1, 1, 0], sizes = [1, 1, 4, 3, 3, 32], strides = [1, 1, 1, 1, 1, 1]} : vector<2x2x4x4x4x32xbf16> to vector<1x1x4x3x3x32xbf16>
    %82 = vector.shape_cast %81 : vector<1x1x4x3x3x32xbf16> to vector<4x3x3x32xbf16>
    %83 = tpu.concatenate %52, %54, %56, %58, %60, %62, %64, %66, %68, %70, %72, %74, %76, %78, %80, %82 in 3 : vector<4x3x3x32xbf16>, vector<4x3x3x32xbf16>, vector<4x3x3x32xbf16>, vector<4x3x3x32xbf16>, vector<4x3x3x32xbf16>, vector<4x3x3x32xbf16>, vector<4x3x3x32xbf16>, vector<4x3x3x32xbf16>, vector<4x3x3x32xbf16>, vector<4x3x3x32xbf16>, vector<4x3x3x32xbf16>, vector<4x3x3x32xbf16>, vector<4x3x3x32xbf16>, vector<4x3x3x32xbf16>, vector<4x3x3x32xbf16>, vector<4x3x3x32xbf16> -> vector<4x3x3x512xbf16>
    %84 = vector.shape_cast %83 : vector<4x3x3x512xbf16> to vector<36x512xbf16>
    %c0_9 = arith.constant 0 : index
    %c0_10 = arith.constant 0 : index
    %85 = vector.load %arg3[%c0_9, %c0_10] : memref<512x64xbf16, #tpu.memory_space<vmem>>, vector<512x64xbf16>
    %cst_11 = arith.constant dense<0.000000e+00> : vector<36x64xf32>
    %86 = tpu.matmul %84, %85, %cst_11 {dimension_numbers = #tpu.dot_dimension_numbers<[1], [0], [0], [1], [0, 0, 1, 1], [], []>} : vector<36x512xbf16>, vector<512x64xbf16>, vector<36x64xf32> -> vector<36x64xf32>
    %c0_12 = arith.constant 0 : index
    %c0_13 = arith.constant 0 : index
    %87 = vector.load %arg6[%c0_12, %c0_13] : memref<1x64xf32, #tpu.memory_space<vmem>>, vector<1x64xf32>
    %88 = vector.broadcast %87 : vector<1x64xf32> to vector<36x64xf32>
    %89 = arith.addf %86, %88 : vector<36x64xf32>
    %cst_14 = arith.constant 0.000000e+00 : f32
    %90 = vector.broadcast %cst_14 : f32 to vector<36x64xf32>
    %91 = arith.maximumf %89, %90 : vector<36x64xf32>
    %92 = arith.truncf %91 : vector<36x64xf32> to vector<36x64xbf16>
    %93 = vector.shape_cast %92 : vector<36x64xbf16> to vector<4x3x3x64xbf16>
    %94 = vector.extract_strided_slice %93 {offsets = [0, 0, 0, 0], sizes = [4, 1, 1, 64], strides = [1, 1, 1, 1]} : vector<4x3x3x64xbf16> to vector<4x1x1x64xbf16>
    %95 = vector.extract_strided_slice %93 {offsets = [0, 0, 1, 0], sizes = [4, 1, 1, 64], strides = [1, 1, 1, 1]} : vector<4x3x3x64xbf16> to vector<4x1x1x64xbf16>
    %96 = vector.extract_strided_slice %93 {offsets = [0, 0, 2, 0], sizes = [4, 1, 1, 64], strides = [1, 1, 1, 1]} : vector<4x3x3x64xbf16> to vector<4x1x1x64xbf16>
    %97 = vector.extract_strided_slice %93 {offsets = [0, 1, 0, 0], sizes = [4, 1, 1, 64], strides = [1, 1, 1, 1]} : vector<4x3x3x64xbf16> to vector<4x1x1x64xbf16>
    %98 = vector.extract_strided_slice %93 {offsets = [0, 1, 1, 0], sizes = [4, 1, 1, 64], strides = [1, 1, 1, 1]} : vector<4x3x3x64xbf16> to vector<4x1x1x64xbf16>
    %99 = vector.extract_strided_slice %93 {offsets = [0, 1, 2, 0], sizes = [4, 1, 1, 64], strides = [1, 1, 1, 1]} : vector<4x3x3x64xbf16> to vector<4x1x1x64xbf16>
    %100 = vector.extract_strided_slice %93 {offsets = [0, 2, 0, 0], sizes = [4, 1, 1, 64], strides = [1, 1, 1, 1]} : vector<4x3x3x64xbf16> to vector<4x1x1x64xbf16>
    %101 = vector.extract_strided_slice %93 {offsets = [0, 2, 1, 0], sizes = [4, 1, 1, 64], strides = [1, 1, 1, 1]} : vector<4x3x3x64xbf16> to vector<4x1x1x64xbf16>
    %102 = vector.extract_strided_slice %93 {offsets = [0, 2, 2, 0], sizes = [4, 1, 1, 64], strides = [1, 1, 1, 1]} : vector<4x3x3x64xbf16> to vector<4x1x1x64xbf16>
    %103 = tpu.concatenate %94, %95, %96, %97, %98, %99, %100, %101, %102 in 3 : vector<4x1x1x64xbf16>, vector<4x1x1x64xbf16>, vector<4x1x1x64xbf16>, vector<4x1x1x64xbf16>, vector<4x1x1x64xbf16>, vector<4x1x1x64xbf16>, vector<4x1x1x64xbf16>, vector<4x1x1x64xbf16>, vector<4x1x1x64xbf16> -> vector<4x1x1x576xbf16>
    %104 = vector.shape_cast %103 : vector<4x1x1x576xbf16> to vector<4x576xbf16>
    %c0_15 = arith.constant 0 : index
    %c0_16 = arith.constant 0 : index
    %105 = vector.load %arg4[%c0_15, %c0_16] : memref<576x128xbf16, #tpu.memory_space<vmem>>, vector<576x128xbf16>
    %cst_17 = arith.constant dense<0.000000e+00> : vector<4x128xf32>
    %106 = tpu.matmul %104, %105, %cst_17 {dimension_numbers = #tpu.dot_dimension_numbers<[1], [0], [0], [1], [0, 0, 1, 1], [], []>} : vector<4x576xbf16>, vector<576x128xbf16>, vector<4x128xf32> -> vector<4x128xf32>
    %c0_18 = arith.constant 0 : index
    %c0_19 = arith.constant 0 : index
    %107 = vector.load %arg7[%c0_18, %c0_19] : memref<1x128xf32, #tpu.memory_space<vmem>>, vector<1x128xf32>
    %108 = vector.broadcast %107 : vector<1x128xf32> to vector<4x128xf32>
    %109 = arith.addf %106, %108 : vector<4x128xf32>
    %cst_20 = arith.constant 0.000000e+00 : f32
    %110 = vector.broadcast %cst_20 : f32 to vector<4x128xf32>
    %111 = arith.maximumf %109, %110 : vector<4x128xf32>
    %112 = vector.shape_cast %111 : vector<4x128xf32> to vector<4x1x128xf32>
    %113 = arith.truncf %112 : vector<4x1x128xf32> to vector<4x1x128xbf16>
    %c0_21 = arith.constant 0 : index
    %c0_22 = arith.constant 0 : index
    %c0_23 = arith.constant 0 : index
    %114 = vector.load %arg8[%c0_21, %c0_22, %c0_23] : memref<4x1x128xbf16, #tpu.memory_space<vmem>>, vector<4x1x128xbf16>
    tpu.vector_store %arg8[%c0_21, %c0_22, %c0_23], %113 {strides = array<i32>} : memref<4x1x128xbf16, #tpu.memory_space<vmem>>, vector<4x1x128xbf16>,
    return
  }
  func.func @transform_0(%arg0: i32) -> (i32, i32, i32, i32, i32) {
    %c0_i32 = arith.constant 0 : i32
    %c0_i32_0 = arith.constant 0 : i32
    %c0_i32_1 = arith.constant 0 : i32
    %c0_i32_2 = arith.constant 0 : i32
    %c0_i32_3 = arith.constant 0 : i32
    return %arg0, %c0_i32, %c0_i32_0, %c0_i32_1, %c0_i32_2 : i32, i32, i32, i32, i32
  }
  func.func @transform_1(%arg0: i32) -> (i32, i32) {
    %c0_i32 = arith.constant 0 : i32
    %c0_i32_0 = arith.constant 0 : i32
    %c0_i32_1 = arith.constant 0 : i32
    return %c0_i32, %c0_i32_0 : i32, i32
  }
  func.func @transform_2(%arg0: i32) -> (i32, i32) {
    %c0_i32 = arith.constant 0 : i32
    %c0_i32_0 = arith.constant 0 : i32
    %c0_i32_1 = arith.constant 0 : i32
    return %c0_i32, %c0_i32_0 : i32, i32
  }
  func.func @transform_3(%arg0: i32) -> (i32, i32) {
    %c0_i32 = arith.constant 0 : i32
    %c0_i32_0 = arith.constant 0 : i32
    %c0_i32_1 = arith.constant 0 : i32
    return %c0_i32, %c0_i32_0 : i32, i32
  }
  func.func @transform_4(%arg0: i32) -> (i32, i32) {
    %c0_i32 = arith.constant 0 : i32
    %c0_i32_0 = arith.constant 0 : i32
    %c0_i32_1 = arith.constant 0 : i32
    return %c0_i32, %c0_i32_0 : i32, i32
  }
  func.func @transform_5(%arg0: i32) -> (i32, i32) {
    %c0_i32 = arith.constant 0 : i32
    %c0_i32_0 = arith.constant 0 : i32
    %c0_i32_1 = arith.constant 0 : i32
    return %c0_i32, %c0_i32_0 : i32, i32
  }
  func.func @transform_6(%arg0: i32) -> (i32, i32) {
    %c0_i32 = arith.constant 0 : i32
    %c0_i32_0 = arith.constant 0 : i32
    %c0_i32_1 = arith.constant 0 : i32
    return %c0_i32, %c0_i32_0 : i32, i32
  }
  func.func @transform_7(%arg0: i32) -> (i32, i32, i32) {
    %c0_i32 = arith.constant 0 : i32
    %c0_i32_0 = arith.constant 0 : i32
    %c0_i32_1 = arith.constant 0 : i32
    return %arg0, %c0_i32, %c0_i32_0 : i32, i32, i32
  }
}

</mosaic_0001>

<llo_original>
// kernel: forward.1
$region0: #{forward.1}
  #allocation0 [shape = 'u32[]', space=smem, size = 0x4, offset = 0x4, fixed_abs, tag = 'smem constant byte address 0x4 - core index']
  #allocation1 [shape = 'u32[144,128]{1,0:T(1,128)}', space=vmem, size = 0x12000, scoped, tag = 'internal scratch']
  %s0 = inlined_call_operand.vmem [shape: bf16[8,4,5,5,64], index: 0, kind: input, shape index: {}]
  %s1 = inlined_call_operand.vmem [shape: bf16[256,32], index: 1, kind: input, shape index: {}]
  %s2 = inlined_call_operand.vmem [shape: bf16[512,64], index: 2, kind: input, shape index: {}]
  %s3 = inlined_call_operand.vmem [shape: bf16[576,128], index: 3, kind: input, shape index: {}]
  %s4 = inlined_call_operand.vmem [shape: f32[1,32], index: 4, kind: input, shape index: {}]
  %s5 = inlined_call_operand.vmem [shape: f32[1,64], index: 5, kind: input, shape index: {}]
  %s6 = inlined_call_operand.vmem [shape: f32[1,128], index: 6, kind: input, shape index: {}]
  %s7 = inlined_call_operand.vmem [shape: bf16[8,1,128], index: 7, kind: output, shape index: {}]
  %s8 = sld [smem:[#allocation0]]
  $region61: #{forward.1} parent=0
    _
  %s10 = ssub.s32 1, %s8
  %s11 = scalar_select 0, %s10, %s8
  loop: start=0, step=1, limit=4
  $region2: #{forward.1} parent=0 // loop_pre_header
    _
  $region3: #{forward.1} parent=0 // loop_header
    %s13 = sphi 0, %s17
    %p14 = scmp.ge.s32.totalorder %s13, 4
    %s23 = sphi 0, %s25
    %s26 = sphi 0, %s23
    %s27 = sphi 0, %s26
    %s43 = sphi 0, %s27
    %s47 = sphi 0, %s47
    %s49 = sphi 0, %s47
    %s50 = sphi 0, %s49
    %s64 = sphi 0, %s50
    %s68 = sphi 0, %s68
    %s70 = sphi 0, %s68
    %s71 = sphi 0, %s70
    %s85 = sphi 0, %s71
    %s89 = sphi 0, %s89
    %s91 = sphi 0, %s89
    %s92 = sphi 0, %s91
    %s106 = sphi 0, %s92
    %s110 = sphi 0, %s110
    %s112 = sphi 0, %s110
    %s113 = sphi 0, %s112
    %s127 = sphi 0, %s113
    %s131 = sphi 0, %s131
    %s133 = sphi 0, %s131
    %s134 = sphi 0, %s133
    %s148 = sphi 0, %s134
    %s152 = sphi 0, %s152
    %s154 = sphi 0, %s152
    %s155 = sphi 0, %s154
    %s169 = sphi 0, %s155
    %s175 = sphi 0, %s177
    %s178 = sphi 0, %s175
    %s179 = sphi 0, %s178
    %s195 = sphi 0, %s179
  $region4: #{forward.1} parent=0 // loop_header_branch
    %16 = sbr.rel (%p14) target = $region8
  $region5: #{forward.1} parent=0 // loop_body
    %s18 = ssub.s32 %s13, 1
    %s19 = ssub.s32 %s13, 2
    %s20 = sadd.s32 %s13, 1
    %s21 = ssub.s32 %s13, %s20
    %p22 = scmp.eq.s32.totalorder %s21, 0
    %s24 = sadd.s32 %s23, 1
    %s25 = scalar_select %p22, %s23, %s24
    %p28 = pneg %p22
    %p29 = scmp.eq.s32.totalorder %s13, 1
    %p30 = por %p28, %p29
    %p31 = scmp.ne.s32.totalorder %s23, %s26
    %p32 = scmp.eq.s32.totalorder %s13, 0
    %p33 = por %p31, %p32
    %p34 = scmp.ne.s32.totalorder %s23, %s26
    %p35 = scmp.eq.s32.totalorder %s18, 1
    %p36 = por %p34, %p35
    %p37 = scmp.ne.s32.totalorder %s26, %s27
    %p38 = scmp.eq.s32.totalorder %s18, 0
    %p39 = por %p37, %p38
    %p40 = scmp.ne.s32.totalorder %s26, %s27
    %p41 = scmp.eq.s32.totalorder %s19, 1
    %p42 = por %p40, %p41
    %p44 = scmp.ne.s32.totalorder %s27, %s43
    %p45 = scmp.eq.s32.totalorder %s19, 0
    %p46 = por %p44, %p45
    %s48 = sadd.s32 %s47, 1
    %p51 = scmp.eq.s32.totalorder %s13, 1
    %p52 = scmp.ne.s32.totalorder %s47, %s49
    %p53 = scmp.eq.s32.totalorder %s13, 0
    %p54 = por %p52, %p53
    %p55 = scmp.ne.s32.totalorder %s47, %s49
    %p56 = scmp.eq.s32.totalorder %s18, 1
    %p57 = por %p55, %p56
    %p58 = scmp.ne.s32.totalorder %s49, %s50
    %p59 = scmp.eq.s32.totalorder %s18, 0
    %p60 = por %p58, %p59
    %p61 = scmp.ne.s32.totalorder %s49, %s50
    %p62 = scmp.eq.s32.totalorder %s19, 1
    %p63 = por %p61, %p62
    %p65 = scmp.ne.s32.totalorder %s50, %s64
    %p66 = scmp.eq.s32.totalorder %s19, 0
    %p67 = por %p65, %p66
    %s69 = sadd.s32 %s68, 1
    %p72 = scmp.eq.s32.totalorder %s13, 1
    %p73 = scmp.ne.s32.totalorder %s68, %s70
    %p74 = scmp.eq.s32.totalorder %s13, 0
    %p75 = por %p73, %p74
    %p76 = scmp.ne.s32.totalorder %s68, %s70
    %p77 = scmp.eq.s32.totalorder %s18, 1
    %p78 = por %p76, %p77
    %p79 = scmp.ne.s32.totalorder %s70, %s71
    %p80 = scmp.eq.s32.totalorder %s18, 0
    %p81 = por %p79, %p80
    %p82 = scmp.ne.s32.totalorder %s70, %s71
    %p83 = scmp.eq.s32.totalorder %s19, 1
    %p84 = por %p82, %p83
    %p86 = scmp.ne.s32.totalorder %s71, %s85
    %p87 = scmp.eq.s32.totalorder %s19, 0
    %p88 = por %p86, %p87
    %s90 = sadd.s32 %s89, 1
    %p93 = scmp.eq.s32.totalorder %s13, 1
    %p94 = scmp.ne.s32.totalorder %s89, %s91
    %p95 = scmp.eq.s32.totalorder %s13, 0
    %p96 = por %p94, %p95
    %p97 = scmp.ne.s32.totalorder %s89, %s91
    %p98 = scmp.eq.s32.totalorder %s18, 1
    %p99 = por %p97, %p98
    %p100 = scmp.ne.s32.totalorder %s91, %s92
    %p101 = scmp.eq.s32.totalorder %s18, 0
    %p102 = por %p100, %p101
    %p103 = scmp.ne.s32.totalorder %s91, %s92
    %p104 = scmp.eq.s32.totalorder %s19, 1
    %p105 = por %p103, %p104
    %p107 = scmp.ne.s32.totalorder %s92, %s106
    %p108 = scmp.eq.s32.totalorder %s19, 0
    %p109 = por %p107, %p108
    %s111 = sadd.s32 %s110, 1
    %p114 = scmp.eq.s32.totalorder %s13, 1
    %p115 = scmp.ne.s32.totalorder %s110, %s112
    %p116 = scmp.eq.s32.totalorder %s13, 0
    %p117 = por %p115, %p116
    %p118 = scmp.ne.s32.totalorder %s110, %s112
    %p119 = scmp.eq.s32.totalorder %s18, 1
    %p120 = por %p118, %p119
    %p121 = scmp.ne.s32.totalorder %s112, %s113
    %p122 = scmp.eq.s32.totalorder %s18, 0
    %p123 = por %p121, %p122
    %p124 = scmp.ne.s32.totalorder %s112, %s113
    %p125 = scmp.eq.s32.totalorder %s19, 1
    %p126 = por %p124, %p125
    %p128 = scmp.ne.s32.totalorder %s113, %s127
    %p129 = scmp.eq.s32.totalorder %s19, 0
    %p130 = por %p128, %p129
    %s132 = sadd.s32 %s131, 1
    %p135 = scmp.eq.s32.totalorder %s13, 1
    %p136 = scmp.ne.s32.totalorder %s131, %s133
    %p137 = scmp.eq.s32.totalorder %s13, 0
    %p138 = por %p136, %p137
    %p139 = scmp.ne.s32.totalorder %s131, %s133
    %p140 = scmp.eq.s32.totalorder %s18, 1
    %p141 = por %p139, %p140
    %p142 = scmp.ne.s32.totalorder %s133, %s134
    %p143 = scmp.eq.s32.totalorder %s18, 0
    %p144 = por %p142, %p143
    %p145 = scmp.ne.s32.totalorder %s133, %s134
    %p146 = scmp.eq.s32.totalorder %s19, 1
    %p147 = por %p145, %p146
    %p149 = scmp.ne.s32.totalorder %s134, %s148
    %p150 = scmp.eq.s32.totalorder %s19, 0
    %p151 = por %p149, %p150
    %s153 = sadd.s32 %s152, 1
    %p156 = scmp.eq.s32.totalorder %s13, 1
    %p157 = scmp.ne.s32.totalorder %s152, %s154
    %p158 = scmp.eq.s32.totalorder %s13, 0
    %p159 = por %p157, %p158
    %p160 = scmp.ne.s32.totalorder %s152, %s154
    %p161 = scmp.eq.s32.totalorder %s18, 1
    %p162 = por %p160, %p161
    %p163 = scmp.ne.s32.totalorder %s154, %s155
    %p164 = scmp.eq.s32.totalorder %s18, 0
    %p165 = por %p163, %p164
    %p166 = scmp.ne.s32.totalorder %s154, %s155
    %p167 = scmp.eq.s32.totalorder %s19, 1
    %p168 = por %p166, %p167
    %p170 = scmp.ne.s32.totalorder %s155, %s169
    %p171 = scmp.eq.s32.totalorder %s19, 0
    %p172 = por %p170, %p171
    %s173 = ssub.s32 %s13, %s20
    %p174 = scmp.eq.s32.totalorder %s173, 0
    %s176 = sadd.s32 %s175, 1
    %s177 = scalar_select %p174, %s175, %s176
    %p180 = pneg %p174
    %p181 = scmp.eq.s32.totalorder %s13, 1
    %p182 = por %p180, %p181
    %p183 = scmp.ne.s32.totalorder %s175, %s178
    %p184 = scmp.eq.s32.totalorder %s13, 0
    %p185 = por %p183, %p184
    %p186 = scmp.ne.s32.totalorder %s175, %s178
    %p187 = scmp.eq.s32.totalorder %s18, 1
    %p188 = por %p186, %p187
    %p189 = scmp.ne.s32.totalorder %s178, %s179
    %p190 = scmp.eq.s32.totalorder %s18, 0
    %p191 = por %p189, %p190
    %p192 = scmp.ne.s32.totalorder %s178, %s179
    %p193 = scmp.eq.s32.totalorder %s19, 1
    %p194 = por %p192, %p193
    %p196 = scmp.ne.s32.totalorder %s179, %s195
    %p197 = scmp.eq.s32.totalorder %s19, 0
    %p198 = por %p196, %p197
    %p199 = scmp.le.s32.totalorder 1, %s13
    %p200 = scmp.lt.s32.totalorder %s13, 3
    %p201 = pnand %p199, %p200
    %p202 = pneg %p201
    // Predicated region
    $region9: #{forward.1} parent=5 // pred_check
      _
    $region10: #{forward.1} parent=5 // pred_check_branch
      %204 = sbr.rel (%p201) target = $region12
    $region11: #{forward.1} parent=5 // pred_region
      %s205 = ssub.s32 %s13, 1
      // Predicated region
      $region13: #{forward.1} parent=11 // pred_check
        %p206 = pneg %p60
      $region14: #{forward.1} parent=11 // pred_check_branch
        %208 = sbr.rel (%p206) target = $region16
      $region15: #{forward.1} parent=11 // pred_region
        _
      $region16: #{forward.1} parent=11 // pred_fallthru
        _
      // Predicated region
      $region17: #{forward.1} parent=11 // pred_check
        %p209 = pneg %p81
      $region18: #{forward.1} parent=11 // pred_check_branch
        %211 = sbr.rel (%p209) target = $region20
      $region19: #{forward.1} parent=11 // pred_region
        _
      $region20: #{forward.1} parent=11 // pred_fallthru
        _
      // Predicated region
      $region21: #{forward.1} parent=11 // pred_check
        %p212 = pneg %p102
      $region22: #{forward.1} parent=11 // pred_check_branch
        %214 = sbr.rel (%p212) target = $region24
      $region23: #{forward.1} parent=11 // pred_region
        _
      $region24: #{forward.1} parent=11 // pred_fallthru
        _
      // Predicated region
      $region25: #{forward.1} parent=11 // pred_check
        %p215 = pneg %p123
      $region26: #{forward.1} parent=11 // pred_check_branch
        %217 = sbr.rel (%p215) target = $region28
      $region27: #{forward.1} parent=11 // pred_region
        _
      $region28: #{forward.1} parent=11 // pred_fallthru
        _
      // Predicated region
      $region29: #{forward.1} parent=11 // pred_check
        %p218 = pneg %p144
      $region30: #{forward.1} parent=11 // pred_check_branch
        %220 = sbr.rel (%p218) target = $region32
      $region31: #{forward.1} parent=11 // pred_region
        _
      $region32: #{forward.1} parent=11 // pred_fallthru
        _
      // Predicated region
      $region33: #{forward.1} parent=11 // pred_check
        %p221 = pneg %p165
      $region34: #{forward.1} parent=11 // pred_check_branch
        %223 = sbr.rel (%p221) target = $region36
      $region35: #{forward.1} parent=11 // pred_region
        _
      $region36: #{forward.1} parent=11 // pred_fallthru
        _
    $region12: #{forward.1} parent=5 // pred_fallthru
      _
    %p224 = scmp.lt.s32.totalorder %s13, 2
    // Predicated region
    $region37: #{forward.1} parent=5 // pred_check
      %p225 = pneg %p224
    $region38: #{forward.1} parent=5 // pred_check_branch
      %227 = sbr.rel (%p225) target = $region40
    $region39: #{forward.1} parent=5 // pred_region
      // Predicated region
      $region41: #{forward.1} parent=39 // pred_check
        %p228 = pneg %p33
      $region42: #{forward.1} parent=39 // pred_check_branch
        %230 = sbr.rel (%p228) target = $region44
      $region43: #{forward.1} parent=39 // pred_region
        %s231 = smul.u32 4, %s13
        %p232 = scmp.lt.s32.totalorder %s231, 7
        %s233 = scalar_select %p232, %s231, 7
        %s234 = smul.addr %s233, 20
        %s235 = smul.addr %s234, 4
        %s236 = scalar_lea.vmem %s0, %s235
        %s237 = smul.u32 4, %s13
      $region44: #{forward.1} parent=39 // pred_fallthru
        _
    $region40: #{forward.1} parent=5 // pred_fallthru
      _
    %p238 = scmp.le.s32.totalorder 1, %s13
    %p239 = scmp.lt.s32.totalorder %s13, 3
    %p240 = pnand %p238, %p239
    %p241 = pneg %p240
    // Predicated region
    $region45: #{forward.1} parent=5 // pred_check
      _
    $region46: #{forward.1} parent=5 // pred_check_branch
      %243 = sbr.rel (%p240) target = $region48
    $region47: #{forward.1} parent=5 // pred_region
      %s244 = ssub.s32 %s13, 1
      %s245 = smul.u32 4, %s18
      %p246 = scmp.lt.s32.totalorder %s245, 7
      %s247 = scalar_select %p246, %s245, 7
      %s248 = smul.addr %s247, 20
      %s249 = smul.addr %s248, 4
      %s250 = scalar_lea.vmem %s0, %s249
      %p251 = pneg %p39
      %p252 = pneg %p36
      %p253 = pneg %p60
      %p254 = pneg %p57
      %p255 = pneg %p81
      %p256 = pneg %p78
      %p257 = pneg %p102
      %p258 = pneg %p99
      %p259 = pneg %p123
      %p260 = pneg %p120
      %p261 = pneg %p144
      %p262 = pneg %p141
      %p263 = pneg %p165
      %p264 = pneg %p162
      %p265 = pneg %p191
      %p266 = pneg %p188
      %s267 = smul.u32 4, %s18
      %p268 = scmp.lt.s32.totalorder %s267, 7
      %s269 = scalar_select %p268, %s267, 7
      %s270 = scalar_lea.vmem %s7, %s269
      %s271 = smul.u32 4, %s18
      %p272 = scmp.lt.s32.totalorder %s271, 7
      %s273 = scalar_select %p272, %s271, 7
      %s274 = smul.addr %s273, 20
      %s275 = smul.addr %s274, 4
      %s276 = scalar_lea.vmem %s0, %s275
      %s277 = smul.u32 4, %s18
      %s278 = smul.u32 4, %s18
      %p279 = scmp.lt.s32.totalorder %s278, 7
      %s280 = scalar_select %p279, %s278, 7
      %s281 = scalar_lea.vmem %s7, %s280
      %s282 = smul.u32 4, %s18
      %v284 = vld [vmem:[%s276] sm:$0x7]
      %v285 = vld [vmem:[%s276 + $0x4] sm:$0x7]
      %v286 = vld [vmem:[%s276 + $0x8] sm:$0x7]
      %v287 = vld [vmem:[%s276 + $0xc] sm:$0x7]
      %v288 = vld [vmem:[%s276 + $0x10] sm:$0x7]
      %v289 = vld [vmem:[%s276 + $0x14] sm:$0x7]
      %v290 = vld [vmem:[%s276 + $0x18] sm:$0x7]
      %v291 = vld [vmem:[%s276 + $0x1c] sm:$0x7]
      %v292 = vld [vmem:[%s276 + $0x20] sm:$0x7]
      %v293 = vld [vmem:[%s276 + $0x24] sm:$0x7]
      %v294 = vld [vmem:[%s276 + $0x28] sm:$0x7]
      %v295 = vld [vmem:[%s276 + $0x2c] sm:$0x7]
      %v296 = vld [vmem:[%s276 + $0x30] sm:$0x7]
      %v297 = vld [vmem:[%s276 + $0x34] sm:$0x7]
      %v298 = vld [vmem:[%s276 + $0x3c] sm:$0x7]
      %v299 = vld [vmem:[%s276 + $0x40] sm:$0x7]
      %v300 = vld [vmem:[%s276 + $0x44] sm:$0x7]
      %v301 = vld [vmem:[%s276 + $0x48] sm:$0x7]
      %v302 = vld [vmem:[%s276 + $0x50] sm:$0x7]
      %v303 = vld [vmem:[%s276 + $0x54] sm:$0x7]
      %v304 = vld [vmem:[%s276 + $0x58] sm:$0x7]
      %v305 = vld [vmem:[%s276 + $0x5c] sm:$0x7]
      %v306 = vld [vmem:[%s276 + $0x60] sm:$0x7]
      %v307 = vld [vmem:[%s276 + $0x64] sm:$0x7]
      %v308 = vld [vmem:[%s276 + $0x68] sm:$0x7]
      %v309 = vld [vmem:[%s276 + $0x6c] sm:$0x7]
      %v310 = vld [vmem:[%s276 + $0x70] sm:$0x7]
      %v311 = vld [vmem:[%s276 + $0x74] sm:$0x7]
      %v312 = vld [vmem:[%s276 + $0x78] sm:$0x7]
      %v313 = vld [vmem:[%s276 + $0x7c] sm:$0x7]
      %v314 = vld [vmem:[%s276 + $0x80] sm:$0x7]
      %v315 = vld [vmem:[%s276 + $0x84] sm:$0x7]
      %v316 = vld [vmem:[%s276 + $0x8c] sm:$0x7]
      %v317 = vld [vmem:[%s276 + $0x90] sm:$0x7]
      %v318 = vld [vmem:[%s276 + $0x94] sm:$0x7]
      %v319 = vld [vmem:[%s276 + $0x98] sm:$0x7]
      %v320 = vld [vmem:[%s276 + $0xa0] sm:$0x7]
      %v321 = vld [vmem:[%s276 + $0xa4] sm:$0x7]
      %v322 = vld [vmem:[%s276 + $0xa8] sm:$0x7]
      %v323 = vld [vmem:[%s276 + $0xac] sm:$0x7]
      %v324 = vld [vmem:[%s276 + $0xb0] sm:$0x7]
      %v325 = vld [vmem:[%s276 + $0xb4] sm:$0x7]
      %v326 = vld [vmem:[%s276 + $0xb8] sm:$0x7]
      %v327 = vld [vmem:[%s276 + $0xbc] sm:$0x7]
      %v328 = vld [vmem:[%s276 + $0xc0] sm:$0x7]
      %v329 = vld [vmem:[%s276 + $0xc4] sm:$0x7]
      %v330 = vld [vmem:[%s276 + $0xc8] sm:$0x7]
      %v331 = vld [vmem:[%s276 + $0xcc] sm:$0x7]
      %v332 = vld [vmem:[%s276 + $0xd0] sm:$0x7]
      %v333 = vld [vmem:[%s276 + $0xd4] sm:$0x7]
      %v334 = vld [vmem:[%s276 + $0xdc] sm:$0x7]
      %v335 = vld [vmem:[%s276 + $0xe0] sm:$0x7]
      %v336 = vld [vmem:[%s276 + $0xe4] sm:$0x7]
      %v337 = vld [vmem:[%s276 + $0xe8] sm:$0x7]
      %v338 = vld [vmem:[%s276 + $0xf0] sm:$0x7]
      %v339 = vld [vmem:[%s276 + $0xf4] sm:$0x7]
      %v340 = vld [vmem:[%s276 + $0xf8] sm:$0x7]
      %v341 = vld [vmem:[%s276 + $0xfc] sm:$0x7]
      %v342 = vld [vmem:[%s276 + $0x100] sm:$0x7]
      %v343 = vld [vmem:[%s276 + $0x104] sm:$0x7]
      %v344 = vld [vmem:[%s276 + $0x108] sm:$0x7]
      %v345 = vld [vmem:[%s276 + $0x10c] sm:$0x7]
      %v346 = vld [vmem:[%s276 + $0x110] sm:$0x7]
      %v347 = vld [vmem:[%s276 + $0x114] sm:$0x7]
      %v348 = vld [vmem:[%s276 + $0x118] sm:$0x7]
      %v349 = vld [vmem:[%s276 + $0x11c] sm:$0x7]
      %v350 = vld [vmem:[%s276 + $0x120] sm:$0x7]
      %v351 = vld [vmem:[%s276 + $0x124] sm:$0x7]
      %v352 = vld [vmem:[%s276 + $0x12c] sm:$0x7]
      %v353 = vld [vmem:[%s276 + $0x130] sm:$0x7]
      %v354 = vld [vmem:[%s276 + $0x134] sm:$0x7]
      %v355 = vld [vmem:[%s276 + $0x138] sm:$0x7]
      %v372 = vunpack.c.l.b16 %v289
      %v373 = vunpack.c.l.b16 %v290
      %v374 = vunpack.c.l.b16 %v291
      %v375 = vunpack.c.l.b16 %v292
      %v376 = vunpack.c.l.b16 %v307
      %v377 = vunpack.c.l.b16 %v308
      %v378 = vunpack.c.l.b16 %v309
      %v379 = vunpack.c.l.b16 %v310
      %v380 = vunpack.c.l.b16 %v325
      %v381 = vunpack.c.l.b16 %v326
      %v382 = vunpack.c.l.b16 %v327
      %v383 = vunpack.c.l.b16 %v328
      %v384 = vunpack.c.l.b16 %v343
      %v385 = vunpack.c.l.b16 %v344
      %v386 = vunpack.c.l.b16 %v345
      %v387 = vunpack.c.l.b16 %v346
      %v388 = vpack.c.b16 %v372, %v372
      %v389 = vpack.c.b16 %v373, %v373
      %v390 = vpack.c.b16 %v374, %v374
      %v391 = vpack.c.b16 %v375, %v375
      %v392 = vpack.c.b16 %v376, %v376
      %v393 = vpack.c.b16 %v377, %v377
      %v394 = vpack.c.b16 %v378, %v378
      %v395 = vpack.c.b16 %v379, %v379
      %v396 = vpack.c.b16 %v380, %v380
      %v397 = vpack.c.b16 %v381, %v381
      %v398 = vpack.c.b16 %v382, %v382
      %v399 = vpack.c.b16 %v383, %v383
      %v400 = vpack.c.b16 %v384, %v384
      %v401 = vpack.c.b16 %v385, %v385
      %v402 = vpack.c.b16 %v386, %v386
      %v403 = vpack.c.b16 %v387, %v387
      %404 = vrot.lane.b32.xlu0 %v388, 64
      %v405 = vpop.permute.xlu0 %404
      %406 = vrot.lane.b32.xlu0 %v389, 64
      %v407 = vpop.permute.xlu0 %406
      %408 = vrot.lane.b32.xlu0 %v390, 64
      %v409 = vpop.permute.xlu0 %408
      %410 = vrot.lane.b32.xlu0 %v391, 64
      %v411 = vpop.permute.xlu0 %410
      %412 = vrot.lane.b32.xlu0 %v392, 64
      %v413 = vpop.permute.xlu0 %412
      %414 = vrot.lane.b32.xlu0 %v393, 64
      %v415 = vpop.permute.xlu0 %414
      %416 = vrot.lane.b32.xlu0 %v394, 64
      %v417 = vpop.permute.xlu0 %416
      %418 = vrot.lane.b32.xlu0 %v395, 64
      %v419 = vpop.permute.xlu0 %418
      %420 = vrot.lane.b32.xlu0 %v396, 64
      %v421 = vpop.permute.xlu0 %420
      %422 = vrot.lane.b32.xlu0 %v397, 64
      %v423 = vpop.permute.xlu0 %422
      %424 = vrot.lane.b32.xlu0 %v398, 64
      %v425 = vpop.permute.xlu0 %424
      %426 = vrot.lane.b32.xlu0 %v399, 64
      %v427 = vpop.permute.xlu0 %426
      %428 = vrot.lane.b32.xlu0 %v400, 64
      %v429 = vpop.permute.xlu0 %428
      %430 = vrot.lane.b32.xlu0 %v401, 64
      %v431 = vpop.permute.xlu0 %430
      %432 = vrot.lane.b32.xlu0 %v402, 64
      %v433 = vpop.permute.xlu0 %432
      %434 = vrot.lane.b32.xlu0 %v403, 64
      %v435 = vpop.permute.xlu0 %434
      %v452 = vunpack.c.l.b16 %v298
      %v453 = vunpack.c.l.b16 %v299
      %v454 = vunpack.c.l.b16 %v300
      %v455 = vunpack.c.l.b16 %v301
      %v456 = vunpack.c.l.b16 %v316
      %v457 = vunpack.c.l.b16 %v317
      %v458 = vunpack.c.l.b16 %v318
      %v459 = vunpack.c.l.b16 %v319
      %v460 = vunpack.c.l.b16 %v334
      %v461 = vunpack.c.l.b16 %v335
      %v462 = vunpack.c.l.b16 %v336
      %v463 = vunpack.c.l.b16 %v337
      %v464 = vunpack.c.l.b16 %v352
      %v465 = vunpack.c.l.b16 %v353
      %v466 = vunpack.c.l.b16 %v354
      %v467 = vunpack.c.l.b16 %v355
      %v468 = vpack.c.b16 %v452, %v452
      %v469 = vpack.c.b16 %v453, %v453
      %v470 = vpack.c.b16 %v454, %v454
      %v471 = vpack.c.b16 %v455, %v455
      %v472 = vpack.c.b16 %v456, %v456
      %v473 = vpack.c.b16 %v457, %v457
      %v474 = vpack.c.b16 %v458, %v458
      %v475 = vpack.c.b16 %v459, %v459
      %v476 = vpack.c.b16 %v460, %v460
      %v477 = vpack.c.b16 %v461, %v461
      %v478 = vpack.c.b16 %v462, %v462
      %v479 = vpack.c.b16 %v463, %v463
      %v480 = vpack.c.b16 %v464, %v464
      %v481 = vpack.c.b16 %v465, %v465
      %v482 = vpack.c.b16 %v466, %v466
      %v483 = vpack.c.b16 %v467, %v467
      %484 = vrot.lane.b32.xlu0 %v468, 64
      %v485 = vpop.permute.xlu0 %484
      %486 = vrot.lane.b32.xlu0 %v469, 64
      %v487 = vpop.permute.xlu0 %486
      %488 = vrot.lane.b32.xlu0 %v470, 64
      %v489 = vpop.permute.xlu0 %488
      %490 = vrot.lane.b32.xlu0 %v471, 64
      %v491 = vpop.permute.xlu0 %490
      %492 = vrot.lane.b32.xlu0 %v472, 64
      %v493 = vpop.permute.xlu0 %492
      %494 = vrot.lane.b32.xlu0 %v473, 64
      %v495 = vpop.permute.xlu0 %494
      %496 = vrot.lane.b32.xlu0 %v474, 64
      %v497 = vpop.permute.xlu0 %496
      %498 = vrot.lane.b32.xlu0 %v475, 64
      %v499 = vpop.permute.xlu0 %498
      %500 = vrot.lane.b32.xlu0 %v476, 64
      %v501 = vpop.permute.xlu0 %500
      %502 = vrot.lane.b32.xlu0 %v477, 64
      %v503 = vpop.permute.xlu0 %502
      %504 = vrot.lane.b32.xlu0 %v478, 64
      %v505 = vpop.permute.xlu0 %504
      %506 = vrot.lane.b32.xlu0 %v479, 64
      %v507 = vpop.permute.xlu0 %506
      %508 = vrot.lane.b32.xlu0 %v480, 64
      %v509 = vpop.permute.xlu0 %508
      %510 = vrot.lane.b32.xlu0 %v481, 64
      %v511 = vpop.permute.xlu0 %510
      %512 = vrot.lane.b32.xlu0 %v482, 64
      %v513 = vpop.permute.xlu0 %512
      %514 = vrot.lane.b32.xlu0 %v483, 64
      %v515 = vpop.permute.xlu0 %514
      %vm516 = vcmask 523264
      %v519 = vsel %vm516, %v284, %v405
      %v522 = vsel %vm516, %v285, %v407
      %v525 = vsel %vm516, %v286, %v409
      %v528 = vsel %vm516, %v287, %v411
      %v531 = vsel %vm516, %v302, %v413
      %v534 = vsel %vm516, %v303, %v415
      %v537 = vsel %vm516, %v304, %v417
      %v540 = vsel %vm516, %v305, %v419
      %v543 = vsel %vm516, %v320, %v421
      %v546 = vsel %vm516, %v321, %v423
      %v549 = vsel %vm516, %v322, %v425
      %v552 = vsel %vm516, %v323, %v427
      %v555 = vsel %vm516, %v338, %v429
      %v558 = vsel %vm516, %v339, %v431
      %v561 = vsel %vm516, %v340, %v433
      %v564 = vsel %vm516, %v341, %v435
      %v567 = vsel %vm516, %v294, %v485
      %v570 = vsel %vm516, %v295, %v487
      %v573 = vsel %vm516, %v296, %v489
      %v576 = vsel %vm516, %v297, %v491
      %v579 = vsel %vm516, %v312, %v493
      %v582 = vsel %vm516, %v313, %v495
      %v585 = vsel %vm516, %v314, %v497
      %v588 = vsel %vm516, %v315, %v499
      %v591 = vsel %vm516, %v330, %v501
      %v594 = vsel %vm516, %v331, %v503
      %v597 = vsel %vm516, %v332, %v505
      %v600 = vsel %vm516, %v333, %v507
      %v603 = vsel %vm516, %v348, %v509
      %v606 = vsel %vm516, %v349, %v511
      %v609 = vsel %vm516, %v350, %v513
      %v612 = vsel %vm516, %v351, %v515
      %v645 = vcombine.low %v519, %v567
      %v647 = vunpack.c.l.s4 1983009808
      %v648 = vunpack.c.0.s8 %v647
      %v649 = vlaneseq
      %v650 = vshrl.u32 %v649, 7
      %v651 = vsub.s32 %v648, %v650
      %v652 = vrot.slane %v645, %v651
      %v653 = vcombine.low %v522, %v570
      %v655 = vunpack.c.l.s4 1983009808
      %v656 = vunpack.c.0.s8 %v655
      %v657 = vlaneseq
      %v658 = vshrl.u32 %v657, 7
      %v659 = vsub.s32 %v656, %v658
      %v660 = vrot.slane %v653, %v659
      %v661 = vcombine.low %v525, %v573
      %v663 = vunpack.c.l.s4 1983009808
      %v664 = vunpack.c.0.s8 %v663
      %v665 = vlaneseq
      %v666 = vshrl.u32 %v665, 7
      %v667 = vsub.s32 %v664, %v666
      %v668 = vrot.slane %v661, %v667
      %v669 = vcombine.low %v528, %v576
      %v671 = vunpack.c.l.s4 1983009808
      %v672 = vunpack.c.0.s8 %v671
      %v673 = vlaneseq
      %v674 = vshrl.u32 %v673, 7
      %v675 = vsub.s32 %v672, %v674
      %v676 = vrot.slane %v669, %v675
      %v677 = vcombine.low %v531, %v579
      %v679 = vunpack.c.l.s4 1983009808
      %v680 = vunpack.c.0.s8 %v679
      %v681 = vlaneseq
      %v682 = vshrl.u32 %v681, 7
      %v683 = vsub.s32 %v680, %v682
      %v684 = vrot.slane %v677, %v683
      %v685 = vcombine.low %v534, %v582
      %v687 = vunpack.c.l.s4 1983009808
      %v688 = vunpack.c.0.s8 %v687
      %v689 = vlaneseq
      %v690 = vshrl.u32 %v689, 7
      %v691 = vsub.s32 %v688, %v690
      %v692 = vrot.slane %v685, %v691
      %v693 = vcombine.low %v537, %v585
      %v695 = vunpack.c.l.s4 1983009808
      %v696 = vunpack.c.0.s8 %v695
      %v697 = vlaneseq
      %v698 = vshrl.u32 %v697, 7
      %v699 = vsub.s32 %v696, %v698
      %v700 = vrot.slane %v693, %v699
      %v701 = vcombine.low %v540, %v588
      %v703 = vunpack.c.l.s4 1983009808
      %v704 = vunpack.c.0.s8 %v703
      %v705 = vlaneseq
      %v706 = vshrl.u32 %v705, 7
      %v707 = vsub.s32 %v704, %v706
      %v708 = vrot.slane %v701, %v707
      %v709 = vcombine.low %v543, %v591
      %v711 = vunpack.c.l.s4 1983009808
      %v712 = vunpack.c.0.s8 %v711
      %v713 = vlaneseq
      %v714 = vshrl.u32 %v713, 7
      %v715 = vsub.s32 %v712, %v714
      %v716 = vrot.slane %v709, %v715
      %v717 = vcombine.low %v546, %v594
      %v719 = vunpack.c.l.s4 1983009808
      %v720 = vunpack.c.0.s8 %v719
      %v721 = vlaneseq
      %v722 = vshrl.u32 %v721, 7
      %v723 = vsub.s32 %v720, %v722
      %v724 = vrot.slane %v717, %v723
      %v725 = vcombine.low %v549, %v597
      %v727 = vunpack.c.l.s4 1983009808
      %v728 = vunpack.c.0.s8 %v727
      %v729 = vlaneseq
      %v730 = vshrl.u32 %v729, 7
      %v731 = vsub.s32 %v728, %v730
      %v732 = vrot.slane %v725, %v731
      %v733 = vcombine.low %v552, %v600
      %v735 = vunpack.c.l.s4 1983009808
      %v736 = vunpack.c.0.s8 %v735
      %v737 = vlaneseq
      %v738 = vshrl.u32 %v737, 7
      %v739 = vsub.s32 %v736, %v738
      %v740 = vrot.slane %v733, %v739
      %v741 = vcombine.low %v555, %v603
      %v743 = vunpack.c.l.s4 1983009808
      %v744 = vunpack.c.0.s8 %v743
      %v745 = vlaneseq
      %v746 = vshrl.u32 %v745, 7
      %v747 = vsub.s32 %v744, %v746
      %v748 = vrot.slane %v741, %v747
      %v749 = vcombine.low %v558, %v606
      %v751 = vunpack.c.l.s4 1983009808
      %v752 = vunpack.c.0.s8 %v751
      %v753 = vlaneseq
      %v754 = vshrl.u32 %v753, 7
      %v755 = vsub.s32 %v752, %v754
      %v756 = vrot.slane %v749, %v755
      %v757 = vcombine.low %v561, %v609
      %v759 = vunpack.c.l.s4 1983009808
      %v760 = vunpack.c.0.s8 %v759
      %v761 = vlaneseq
      %v762 = vshrl.u32 %v761, 7
      %v763 = vsub.s32 %v760, %v762
      %v764 = vrot.slane %v757, %v763
      %v765 = vcombine.low %v564, %v612
      %v767 = vunpack.c.l.s4 1983009808
      %v768 = vunpack.c.0.s8 %v767
      %v769 = vlaneseq
      %v770 = vshrl.u32 %v769, 7
      %v771 = vsub.s32 %v768, %v770
      %v772 = vrot.slane %v765, %v771
      %v789 = vunpack.c.l.b16 %v284
      %v790 = vunpack.c.l.b16 %v285
      %v791 = vunpack.c.l.b16 %v286
      %v792 = vunpack.c.l.b16 %v287
      %v793 = vunpack.c.l.b16 %v302
      %v794 = vunpack.c.l.b16 %v303
      %v795 = vunpack.c.l.b16 %v304
      %v796 = vunpack.c.l.b16 %v305
      %v797 = vunpack.c.l.b16 %v320
      %v798 = vunpack.c.l.b16 %v321
      %v799 = vunpack.c.l.b16 %v322
      %v800 = vunpack.c.l.b16 %v323
      %v801 = vunpack.c.l.b16 %v338
      %v802 = vunpack.c.l.b16 %v339
      %v803 = vunpack.c.l.b16 %v340
      %v804 = vunpack.c.l.b16 %v341
      %v805 = vpack.c.b16 %v789, %v789
      %v806 = vpack.c.b16 %v790, %v790
      %v807 = vpack.c.b16 %v791, %v791
      %v808 = vpack.c.b16 %v792, %v792
      %v809 = vpack.c.b16 %v793, %v793
      %v810 = vpack.c.b16 %v794, %v794
      %v811 = vpack.c.b16 %v795, %v795
      %v812 = vpack.c.b16 %v796, %v796
      %v813 = vpack.c.b16 %v797, %v797
      %v814 = vpack.c.b16 %v798, %v798
      %v815 = vpack.c.b16 %v799, %v799
      %v816 = vpack.c.b16 %v800, %v800
      %v817 = vpack.c.b16 %v801, %v801
      %v818 = vpack.c.b16 %v802, %v802
      %v819 = vpack.c.b16 %v803, %v803
      %v820 = vpack.c.b16 %v804, %v804
      %v822 = vshrl.u32 %v805, 16
      %v824 = vshll.u32 %v805, 16
      %v826 = vrot.slane %v824, 1
      %v827 = vor.u32 %v822, %v826
      %v829 = vshrl.u32 %v806, 16
      %v831 = vshll.u32 %v806, 16
      %v833 = vrot.slane %v831, 1
      %v834 = vor.u32 %v829, %v833
      %v836 = vshrl.u32 %v807, 16
      %v838 = vshll.u32 %v807, 16
      %v840 = vrot.slane %v838, 1
      %v841 = vor.u32 %v836, %v840
      %v843 = vshrl.u32 %v808, 16
      %v845 = vshll.u32 %v808, 16
      %v847 = vrot.slane %v845, 1
      %v848 = vor.u32 %v843, %v847
      %v850 = vshrl.u32 %v809, 16
      %v852 = vshll.u32 %v809, 16
      %v854 = vrot.slane %v852, 1
      %v855 = vor.u32 %v850, %v854
      %v857 = vshrl.u32 %v810, 16
      %v859 = vshll.u32 %v810, 16
      %v861 = vrot.slane %v859, 1
      %v862 = vor.u32 %v857, %v861
      %v864 = vshrl.u32 %v811, 16
      %v866 = vshll.u32 %v811, 16
      %v868 = vrot.slane %v866, 1
      %v869 = vor.u32 %v864, %v868
      %v871 = vshrl.u32 %v812, 16
      %v873 = vshll.u32 %v812, 16
      %v875 = vrot.slane %v873, 1
      %v876 = vor.u32 %v871, %v875
      %v878 = vshrl.u32 %v813, 16
      %v880 = vshll.u32 %v813, 16
      %v882 = vrot.slane %v880, 1
      %v883 = vor.u32 %v878, %v882
      %v885 = vshrl.u32 %v814, 16
      %v887 = vshll.u32 %v814, 16
      %v889 = vrot.slane %v887, 1
      %v890 = vor.u32 %v885, %v889
      %v892 = vshrl.u32 %v815, 16
      %v894 = vshll.u32 %v815, 16
      %v896 = vrot.slane %v894, 1
      %v897 = vor.u32 %v892, %v896
      %v899 = vshrl.u32 %v816, 16
      %v901 = vshll.u32 %v816, 16
      %v903 = vrot.slane %v901, 1
      %v904 = vor.u32 %v899, %v903
      %v906 = vshrl.u32 %v817, 16
      %v908 = vshll.u32 %v817, 16
      %v910 = vrot.slane %v908, 1
      %v911 = vor.u32 %v906, %v910
      %v913 = vshrl.u32 %v818, 16
      %v915 = vshll.u32 %v818, 16
      %v917 = vrot.slane %v915, 1
      %v918 = vor.u32 %v913, %v917
      %v920 = vshrl.u32 %v819, 16
      %v922 = vshll.u32 %v819, 16
      %v924 = vrot.slane %v922, 1
      %v925 = vor.u32 %v920, %v924
      %v927 = vshrl.u32 %v820, 16
      %v929 = vshll.u32 %v820, 16
      %v931 = vrot.slane %v929, 1
      %v932 = vor.u32 %v927, %v931
      %933 = vrot.lane.b32.xlu0 %v827, 64
      %v934 = vpop.permute.xlu0 %933
      %935 = vrot.lane.b32.xlu0 %v834, 64
      %v936 = vpop.permute.xlu0 %935
      %937 = vrot.lane.b32.xlu0 %v841, 64
      %v938 = vpop.permute.xlu0 %937
      %939 = vrot.lane.b32.xlu0 %v848, 64
      %v940 = vpop.permute.xlu0 %939
      %941 = vrot.lane.b32.xlu0 %v855, 64
      %v942 = vpop.permute.xlu0 %941
      %943 = vrot.lane.b32.xlu0 %v862, 64
      %v944 = vpop.permute.xlu0 %943
      %945 = vrot.lane.b32.xlu0 %v869, 64
      %v946 = vpop.permute.xlu0 %945
      %947 = vrot.lane.b32.xlu0 %v876, 64
      %v948 = vpop.permute.xlu0 %947
      %949 = vrot.lane.b32.xlu0 %v883, 64
      %v950 = vpop.permute.xlu0 %949
      %951 = vrot.lane.b32.xlu0 %v890, 64
      %v952 = vpop.permute.xlu0 %951
      %953 = vrot.lane.b32.xlu0 %v897, 64
      %v954 = vpop.permute.xlu0 %953
      %955 = vrot.lane.b32.xlu0 %v904, 64
      %v956 = vpop.permute.xlu0 %955
      %957 = vrot.lane.b32.xlu0 %v911, 64
      %v958 = vpop.permute.xlu0 %957
      %959 = vrot.lane.b32.xlu0 %v918, 64
      %v960 = vpop.permute.xlu0 %959
      %961 = vrot.lane.b32.xlu0 %v925, 64
      %v962 = vpop.permute.xlu0 %961
      %963 = vrot.lane.b32.xlu0 %v932, 64
      %v964 = vpop.permute.xlu0 %963
      %v981 = vunpack.c.l.b16 %v294
      %v982 = vunpack.c.l.b16 %v295
      %v983 = vunpack.c.l.b16 %v296
      %v984 = vunpack.c.l.b16 %v297
      %v985 = vunpack.c.l.b16 %v312
      %v986 = vunpack.c.l.b16 %v313
      %v987 = vunpack.c.l.b16 %v314
      %v988 = vunpack.c.l.b16 %v315
      %v989 = vunpack.c.l.b16 %v330
      %v990 = vunpack.c.l.b16 %v331
      %v991 = vunpack.c.l.b16 %v332
      %v992 = vunpack.c.l.b16 %v333
      %v993 = vunpack.c.l.b16 %v348
      %v994 = vunpack.c.l.b16 %v349
      %v995 = vunpack.c.l.b16 %v350
      %v996 = vunpack.c.l.b16 %v351
      %v997 = vpack.c.b16 %v981, %v981
      %v998 = vpack.c.b16 %v982, %v982
      %v999 = vpack.c.b16 %v983, %v983
      %v1000 = vpack.c.b16 %v984, %v984
      %v1001 = vpack.c.b16 %v985, %v985
      %v1002 = vpack.c.b16 %v986, %v986
      %v1003 = vpack.c.b16 %v987, %v987
      %v1004 = vpack.c.b16 %v988, %v988
      %v1005 = vpack.c.b16 %v989, %v989
      %v1006 = vpack.c.b16 %v990, %v990
      %v1007 = vpack.c.b16 %v991, %v991
      %v1008 = vpack.c.b16 %v992, %v992
      %v1009 = vpack.c.b16 %v993, %v993
      %v1010 = vpack.c.b16 %v994, %v994
      %v1011 = vpack.c.b16 %v995, %v995
      %v1012 = vpack.c.b16 %v996, %v996
      %v1014 = vshrl.u32 %v997, 16
      %v1016 = vshll.u32 %v997, 16
      %v1018 = vrot.slane %v1016, 1
      %v1019 = vor.u32 %v1014, %v1018
      %v1021 = vshrl.u32 %v998, 16
      %v1023 = vshll.u32 %v998, 16
      %v1025 = vrot.slane %v1023, 1
      %v1026 = vor.u32 %v1021, %v1025
      %v1028 = vshrl.u32 %v999, 16
      %v1030 = vshll.u32 %v999, 16
      %v1032 = vrot.slane %v1030, 1
      %v1033 = vor.u32 %v1028, %v1032
      %v1035 = vshrl.u32 %v1000, 16
      %v1037 = vshll.u32 %v1000, 16
      %v1039 = vrot.slane %v1037, 1
      %v1040 = vor.u32 %v1035, %v1039
      %v1042 = vshrl.u32 %v1001, 16
      %v1044 = vshll.u32 %v1001, 16
      %v1046 = vrot.slane %v1044, 1
      %v1047 = vor.u32 %v1042, %v1046
      %v1049 = vshrl.u32 %v1002, 16
      %v1051 = vshll.u32 %v1002, 16
      %v1053 = vrot.slane %v1051, 1
      %v1054 = vor.u32 %v1049, %v1053
      %v1056 = vshrl.u32 %v1003, 16
      %v1058 = vshll.u32 %v1003, 16
      %v1060 = vrot.slane %v1058, 1
      %v1061 = vor.u32 %v1056, %v1060
      %v1063 = vshrl.u32 %v1004, 16
      %v1065 = vshll.u32 %v1004, 16
      %v1067 = vrot.slane %v1065, 1
      %v1068 = vor.u32 %v1063, %v1067
      %v1070 = vshrl.u32 %v1005, 16
      %v1072 = vshll.u32 %v1005, 16
      %v1074 = vrot.slane %v1072, 1
      %v1075 = vor.u32 %v1070, %v1074
      %v1077 = vshrl.u32 %v1006, 16
      %v1079 = vshll.u32 %v1006, 16
      %v1081 = vrot.slane %v1079, 1
      %v1082 = vor.u32 %v1077, %v1081
      %v1084 = vshrl.u32 %v1007, 16
      %v1086 = vshll.u32 %v1007, 16
      %v1088 = vrot.slane %v1086, 1
      %v1089 = vor.u32 %v1084, %v1088
      %v1091 = vshrl.u32 %v1008, 16
      %v1093 = vshll.u32 %v1008, 16
      %v1095 = vrot.slane %v1093, 1
      %v1096 = vor.u32 %v1091, %v1095
      %v1098 = vshrl.u32 %v1009, 16
      %v1100 = vshll.u32 %v1009, 16
      %v1102 = vrot.slane %v1100, 1
      %v1103 = vor.u32 %v1098, %v1102
      %v1105 = vshrl.u32 %v1010, 16
      %v1107 = vshll.u32 %v1010, 16
      %v1109 = vrot.slane %v1107, 1
      %v1110 = vor.u32 %v1105, %v1109
      %v1112 = vshrl.u32 %v1011, 16
      %v1114 = vshll.u32 %v1011, 16
      %v1116 = vrot.slane %v1114, 1
      %v1117 = vor.u32 %v1112, %v1116
      %v1119 = vshrl.u32 %v1012, 16
      %v1121 = vshll.u32 %v1012, 16
      %v1123 = vrot.slane %v1121, 1
      %v1124 = vor.u32 %v1119, %v1123
      %1125 = vrot.lane.b32.xlu0 %v1019, 64
      %v1126 = vpop.permute.xlu0 %1125
      %1127 = vrot.lane.b32.xlu0 %v1026, 64
      %v1128 = vpop.permute.xlu0 %1127
      %1129 = vrot.lane.b32.xlu0 %v1033, 64
      %v1130 = vpop.permute.xlu0 %1129
      %1131 = vrot.lane.b32.xlu0 %v1040, 64
      %v1132 = vpop.permute.xlu0 %1131
      %1133 = vrot.lane.b32.xlu0 %v1047, 64
      %v1134 = vpop.permute.xlu0 %1133
      %1135 = vrot.lane.b32.xlu0 %v1054, 64
      %v1136 = vpop.permute.xlu0 %1135
      %1137 = vrot.lane.b32.xlu0 %v1061, 64
      %v1138 = vpop.permute.xlu0 %1137
      %1139 = vrot.lane.b32.xlu0 %v1068, 64
      %v1140 = vpop.permute.xlu0 %1139
      %1141 = vrot.lane.b32.xlu0 %v1075, 64
      %v1142 = vpop.permute.xlu0 %1141
      %1143 = vrot.lane.b32.xlu0 %v1082, 64
      %v1144 = vpop.permute.xlu0 %1143
      %1145 = vrot.lane.b32.xlu0 %v1089, 64
      %v1146 = vpop.permute.xlu0 %1145
      %1147 = vrot.lane.b32.xlu0 %v1096, 64
      %v1148 = vpop.permute.xlu0 %1147
      %1149 = vrot.lane.b32.xlu0 %v1103, 64
      %v1150 = vpop.permute.xlu0 %1149
      %1151 = vrot.lane.b32.xlu0 %v1110, 64
      %v1152 = vpop.permute.xlu0 %1151
      %1153 = vrot.lane.b32.xlu0 %v1117, 64
      %v1154 = vpop.permute.xlu0 %1153
      %1155 = vrot.lane.b32.xlu0 %v1124, 64
      %v1156 = vpop.permute.xlu0 %1155
      %v1159 = vsel %vm516, %v289, %v934
      %v1162 = vsel %vm516, %v290, %v936
      %v1165 = vsel %vm516, %v291, %v938
      %v1168 = vsel %vm516, %v292, %v940
      %v1171 = vsel %vm516, %v307, %v942
      %v1174 = vsel %vm516, %v308, %v944
      %v1177 = vsel %vm516, %v309, %v946
      %v1180 = vsel %vm516, %v310, %v948
      %v1183 = vsel %vm516, %v325, %v950
      %v1186 = vsel %vm516, %v326, %v952
      %v1189 = vsel %vm516, %v327, %v954
      %v1192 = vsel %vm516, %v328, %v956
      %v1195 = vsel %vm516, %v343, %v958
      %v1198 = vsel %vm516, %v344, %v960
      %v1201 = vsel %vm516, %v345, %v962
      %v1204 = vsel %vm516, %v346, %v964
      %v1207 = vsel %vm516, %v298, %v1126
      %v1210 = vsel %vm516, %v299, %v1128
      %v1213 = vsel %vm516, %v300, %v1130
      %v1216 = vsel %vm516, %v301, %v1132
      %v1219 = vsel %vm516, %v316, %v1134
      %v1222 = vsel %vm516, %v317, %v1136
      %v1225 = vsel %vm516, %v318, %v1138
      %v1228 = vsel %vm516, %v319, %v1140
      %v1231 = vsel %vm516, %v334, %v1142
      %v1234 = vsel %vm516, %v335, %v1144
      %v1237 = vsel %vm516, %v336, %v1146
      %v1240 = vsel %vm516, %v337, %v1148
      %v1243 = vsel %vm516, %v352, %v1150
      %v1246 = vsel %vm516, %v353, %v1152
      %v1249 = vsel %vm516, %v354, %v1154
      %v1252 = vsel %vm516, %v355, %v1156
      %v1285 = vcombine.low %v1159, %v1207
      %v1287 = vunpack.c.l.s4 1983009808
      %v1288 = vunpack.c.0.s8 %v1287
      %v1289 = vlaneseq
      %v1290 = vshrl.u32 %v1289, 7
      %v1291 = vsub.s32 %v1288, %v1290
      %v1292 = vrot.slane %v1285, %v1291
      %v1293 = vcombine.low %v1162, %v1210
      %v1295 = vunpack.c.l.s4 1983009808
      %v1296 = vunpack.c.0.s8 %v1295
      %v1297 = vlaneseq
      %v1298 = vshrl.u32 %v1297, 7
      %v1299 = vsub.s32 %v1296, %v1298
      %v1300 = vrot.slane %v1293, %v1299
      %v1301 = vcombine.low %v1165, %v1213
      %v1303 = vunpack.c.l.s4 1983009808
      %v1304 = vunpack.c.0.s8 %v1303
      %v1305 = vlaneseq
      %v1306 = vshrl.u32 %v1305, 7
      %v1307 = vsub.s32 %v1304, %v1306
      %v1308 = vrot.slane %v1301, %v1307
      %v1309 = vcombine.low %v1168, %v1216
      %v1311 = vunpack.c.l.s4 1983009808
      %v1312 = vunpack.c.0.s8 %v1311
      %v1313 = vlaneseq
      %v1314 = vshrl.u32 %v1313, 7
      %v1315 = vsub.s32 %v1312, %v1314
      %v1316 = vrot.slane %v1309, %v1315
      %v1317 = vcombine.low %v1171, %v1219
      %v1319 = vunpack.c.l.s4 1983009808
      %v1320 = vunpack.c.0.s8 %v1319
      %v1321 = vlaneseq
      %v1322 = vshrl.u32 %v1321, 7
      %v1323 = vsub.s32 %v1320, %v1322
      %v1324 = vrot.slane %v1317, %v1323
      %v1325 = vcombine.low %v1174, %v1222
      %v1327 = vunpack.c.l.s4 1983009808
      %v1328 = vunpack.c.0.s8 %v1327
      %v1329 = vlaneseq
      %v1330 = vshrl.u32 %v1329, 7
      %v1331 = vsub.s32 %v1328, %v1330
      %v1332 = vrot.slane %v1325, %v1331
      %v1333 = vcombine.low %v1177, %v1225
      %v1335 = vunpack.c.l.s4 1983009808
      %v1336 = vunpack.c.0.s8 %v1335
      %v1337 = vlaneseq
      %v1338 = vshrl.u32 %v1337, 7
      %v1339 = vsub.s32 %v1336, %v1338
      %v1340 = vrot.slane %v1333, %v1339
      %v1341 = vcombine.low %v1180, %v1228
      %v1343 = vunpack.c.l.s4 1983009808
      %v1344 = vunpack.c.0.s8 %v1343
      %v1345 = vlaneseq
      %v1346 = vshrl.u32 %v1345, 7
      %v1347 = vsub.s32 %v1344, %v1346
      %v1348 = vrot.slane %v1341, %v1347
      %v1349 = vcombine.low %v1183, %v1231
      %v1351 = vunpack.c.l.s4 1983009808
      %v1352 = vunpack.c.0.s8 %v1351
      %v1353 = vlaneseq
      %v1354 = vshrl.u32 %v1353, 7
      %v1355 = vsub.s32 %v1352, %v1354
      %v1356 = vrot.slane %v1349, %v1355
      %v1357 = vcombine.low %v1186, %v1234
      %v1359 = vunpack.c.l.s4 1983009808
      %v1360 = vunpack.c.0.s8 %v1359
      %v1361 = vlaneseq
      %v1362 = vshrl.u32 %v1361, 7
      %v1363 = vsub.s32 %v1360, %v1362
      %v1364 = vrot.slane %v1357, %v1363
      %v1365 = vcombine.low %v1189, %v1237
      %v1367 = vunpack.c.l.s4 1983009808
      %v1368 = vunpack.c.0.s8 %v1367
      %v1369 = vlaneseq
      %v1370 = vshrl.u32 %v1369, 7
      %v1371 = vsub.s32 %v1368, %v1370
      %v1372 = vrot.slane %v1365, %v1371
      %v1373 = vcombine.low %v1192, %v1240
      %v1375 = vunpack.c.l.s4 1983009808
      %v1376 = vunpack.c.0.s8 %v1375
      %v1377 = vlaneseq
      %v1378 = vshrl.u32 %v1377, 7
      %v1379 = vsub.s32 %v1376, %v1378
      %v1380 = vrot.slane %v1373, %v1379
      %v1381 = vcombine.low %v1195, %v1243
      %v1383 = vunpack.c.l.s4 1983009808
      %v1384 = vunpack.c.0.s8 %v1383
      %v1385 = vlaneseq
      %v1386 = vshrl.u32 %v1385, 7
      %v1387 = vsub.s32 %v1384, %v1386
      %v1388 = vrot.slane %v1381, %v1387
      %v1389 = vcombine.low %v1198, %v1246
      %v1391 = vunpack.c.l.s4 1983009808
      %v1392 = vunpack.c.0.s8 %v1391
      %v1393 = vlaneseq
      %v1394 = vshrl.u32 %v1393, 7
      %v1395 = vsub.s32 %v1392, %v1394
      %v1396 = vrot.slane %v1389, %v1395
      %v1397 = vcombine.low %v1201, %v1249
      %v1399 = vunpack.c.l.s4 1983009808
      %v1400 = vunpack.c.0.s8 %v1399
      %v1401 = vlaneseq
      %v1402 = vshrl.u32 %v1401, 7
      %v1403 = vsub.s32 %v1400, %v1402
      %v1404 = vrot.slane %v1397, %v1403
      %v1405 = vcombine.low %v1204, %v1252
      %v1407 = vunpack.c.l.s4 1983009808
      %v1408 = vunpack.c.0.s8 %v1407
      %v1409 = vlaneseq
      %v1410 = vshrl.u32 %v1409, 7
      %v1411 = vsub.s32 %v1408, %v1410
      %v1412 = vrot.slane %v1405, %v1411
      %v1417 = vunpack.c.l.b16 %v293
      %v1418 = vunpack.c.l.b16 %v311
      %v1419 = vunpack.c.l.b16 %v329
      %v1420 = vunpack.c.l.b16 %v347
      %v1421 = vpack.c.b16 %v1417, %v1417
      %v1422 = vpack.c.b16 %v1418, %v1418
      %v1423 = vpack.c.b16 %v1419, %v1419
      %v1424 = vpack.c.b16 %v1420, %v1420
      %1425 = vrot.lane.b32.xlu0 %v1421, 64
      %v1426 = vpop.permute.xlu0 %1425
      %1427 = vrot.lane.b32.xlu0 %v1422, 64
      %v1428 = vpop.permute.xlu0 %1427
      %1429 = vrot.lane.b32.xlu0 %v1423, 64
      %v1430 = vpop.permute.xlu0 %1429
      %1431 = vrot.lane.b32.xlu0 %v1424, 64
      %v1432 = vpop.permute.xlu0 %1431
      %v1435 = vsel %vm516, %v288, %v1426
      %v1438 = vsel %vm516, %v306, %v1428
      %v1441 = vsel %vm516, %v324, %v1430
      %v1444 = vsel %vm516, %v342, %v1432
      %v1449 = vcombine.low %v567, %v522
      %v1451 = vunpack.c.l.s4 1983009808
      %v1452 = vunpack.c.0.s8 %v1451
      %v1453 = vlaneseq
      %v1454 = vshrl.u32 %v1453, 7
      %v1455 = vsub.s32 %v1452, %v1454
      %v1456 = vrot.slane %v1449, %v1455
      %v1457 = vcombine.low %v570, %v525
      %v1459 = vunpack.c.l.s4 1983009808
      %v1460 = vunpack.c.0.s8 %v1459
      %v1461 = vlaneseq
      %v1462 = vshrl.u32 %v1461, 7
      %v1463 = vsub.s32 %v1460, %v1462
      %v1464 = vrot.slane %v1457, %v1463
      %v1465 = vcombine.low %v573, %v528
      %v1467 = vunpack.c.l.s4 1983009808
      %v1468 = vunpack.c.0.s8 %v1467
      %v1469 = vlaneseq
      %v1470 = vshrl.u32 %v1469, 7
      %v1471 = vsub.s32 %v1468, %v1470
      %v1472 = vrot.slane %v1465, %v1471
      %v1473 = vcombine.low %v576, %v1435
      %v1475 = vunpack.c.l.s4 1983009808
      %v1476 = vunpack.c.0.s8 %v1475
      %v1477 = vlaneseq
      %v1478 = vshrl.u32 %v1477, 7
      %v1479 = vsub.s32 %v1476, %v1478
      %v1480 = vrot.slane %v1473, %v1479
      %v1481 = vcombine.low %v579, %v534
      %v1483 = vunpack.c.l.s4 1983009808
      %v1484 = vunpack.c.0.s8 %v1483
      %v1485 = vlaneseq
      %v1486 = vshrl.u32 %v1485, 7
      %v1487 = vsub.s32 %v1484, %v1486
      %v1488 = vrot.slane %v1481, %v1487
      %v1489 = vcombine.low %v582, %v537
      %v1491 = vunpack.c.l.s4 1983009808
      %v1492 = vunpack.c.0.s8 %v1491
      %v1493 = vlaneseq
      %v1494 = vshrl.u32 %v1493, 7
      %v1495 = vsub.s32 %v1492, %v1494
      %v1496 = vrot.slane %v1489, %v1495
      %v1497 = vcombine.low %v585, %v540
      %v1499 = vunpack.c.l.s4 1983009808
      %v1500 = vunpack.c.0.s8 %v1499
      %v1501 = vlaneseq
      %v1502 = vshrl.u32 %v1501, 7
      %v1503 = vsub.s32 %v1500, %v1502
      %v1504 = vrot.slane %v1497, %v1503
      %v1505 = vcombine.low %v588, %v1438
      %v1507 = vunpack.c.l.s4 1983009808
      %v1508 = vunpack.c.0.s8 %v1507
      %v1509 = vlaneseq
      %v1510 = vshrl.u32 %v1509, 7
      %v1511 = vsub.s32 %v1508, %v1510
      %v1512 = vrot.slane %v1505, %v1511
      %v1513 = vcombine.low %v591, %v546
      %v1515 = vunpack.c.l.s4 1983009808
      %v1516 = vunpack.c.0.s8 %v1515
      %v1517 = vlaneseq
      %v1518 = vshrl.u32 %v1517, 7
      %v1519 = vsub.s32 %v1516, %v1518
      %v1520 = vrot.slane %v1513, %v1519
      %v1521 = vcombine.low %v594, %v549
      %v1523 = vunpack.c.l.s4 1983009808
      %v1524 = vunpack.c.0.s8 %v1523
      %v1525 = vlaneseq
      %v1526 = vshrl.u32 %v1525, 7
      %v1527 = vsub.s32 %v1524, %v1526
      %v1528 = vrot.slane %v1521, %v1527
      %v1529 = vcombine.low %v597, %v552
      %v1531 = vunpack.c.l.s4 1983009808
      %v1532 = vunpack.c.0.s8 %v1531
      %v1533 = vlaneseq
      %v1534 = vshrl.u32 %v1533, 7
      %v1535 = vsub.s32 %v1532, %v1534
      %v1536 = vrot.slane %v1529, %v1535
      %v1537 = vcombine.low %v600, %v1441
      %v1539 = vunpack.c.l.s4 1983009808
      %v1540 = vunpack.c.0.s8 %v1539
      %v1541 = vlaneseq
      %v1542 = vshrl.u32 %v1541, 7
      %v1543 = vsub.s32 %v1540, %v1542
      %v1544 = vrot.slane %v1537, %v1543
      %v1545 = vcombine.low %v603, %v558
      %v1547 = vunpack.c.l.s4 1983009808
      %v1548 = vunpack.c.0.s8 %v1547
      %v1549 = vlaneseq
      %v1550 = vshrl.u32 %v1549, 7
      %v1551 = vsub.s32 %v1548, %v1550
      %v1552 = vrot.slane %v1545, %v1551
      %v1553 = vcombine.low %v606, %v561
      %v1555 = vunpack.c.l.s4 1983009808
      %v1556 = vunpack.c.0.s8 %v1555
      %v1557 = vlaneseq
      %v1558 = vshrl.u32 %v1557, 7
      %v1559 = vsub.s32 %v1556, %v1558
      %v1560 = vrot.slane %v1553, %v1559
      %v1561 = vcombine.low %v609, %v564
      %v1563 = vunpack.c.l.s4 1983009808
      %v1564 = vunpack.c.0.s8 %v1563
      %v1565 = vlaneseq
      %v1566 = vshrl.u32 %v1565, 7
      %v1567 = vsub.s32 %v1564, %v1566
      %v1568 = vrot.slane %v1561, %v1567
      %v1569 = vcombine.low %v612, %v1444
      %v1571 = vunpack.c.l.s4 1983009808
      %v1572 = vunpack.c.0.s8 %v1571
      %v1573 = vlaneseq
      %v1574 = vshrl.u32 %v1573, 7
      %v1575 = vsub.s32 %v1572, %v1574
      %v1576 = vrot.slane %v1569, %v1575
      %v1581 = vunpack.c.l.b16 %v288
      %v1582 = vunpack.c.l.b16 %v306
      %v1583 = vunpack.c.l.b16 %v324
      %v1584 = vunpack.c.l.b16 %v342
      %v1585 = vpack.c.b16 %v1581, %v1581
      %v1586 = vpack.c.b16 %v1582, %v1582
      %v1587 = vpack.c.b16 %v1583, %v1583
      %v1588 = vpack.c.b16 %v1584, %v1584
      %v1590 = vshrl.u32 %v1585, 16
      %v1592 = vshll.u32 %v1585, 16
      %v1594 = vrot.slane %v1592, 1
      %v1595 = vor.u32 %v1590, %v1594
      %v1597 = vshrl.u32 %v1586, 16
      %v1599 = vshll.u32 %v1586, 16
      %v1601 = vrot.slane %v1599, 1
      %v1602 = vor.u32 %v1597, %v1601
      %v1604 = vshrl.u32 %v1587, 16
      %v1606 = vshll.u32 %v1587, 16
      %v1608 = vrot.slane %v1606, 1
      %v1609 = vor.u32 %v1604, %v1608
      %v1611 = vshrl.u32 %v1588, 16
      %v1613 = vshll.u32 %v1588, 16
      %v1615 = vrot.slane %v1613, 1
      %v1616 = vor.u32 %v1611, %v1615
      %1617 = vrot.lane.b32.xlu0 %v1595, 64
      %v1618 = vpop.permute.xlu0 %1617
      %1619 = vrot.lane.b32.xlu0 %v1602, 64
      %v1620 = vpop.permute.xlu0 %1619
      %1621 = vrot.lane.b32.xlu0 %v1609, 64
      %v1622 = vpop.permute.xlu0 %1621
      %1623 = vrot.lane.b32.xlu0 %v1616, 64
      %v1624 = vpop.permute.xlu0 %1623
      %v1627 = vsel %vm516, %v293, %v1618
      %v1630 = vsel %vm516, %v311, %v1620
      %v1633 = vsel %vm516, %v329, %v1622
      %v1636 = vsel %vm516, %v347, %v1624
      %v1641 = vcombine.low %v1207, %v1162
      %v1643 = vunpack.c.l.s4 1983009808
      %v1644 = vunpack.c.0.s8 %v1643
      %v1645 = vlaneseq
      %v1646 = vshrl.u32 %v1645, 7
      %v1647 = vsub.s32 %v1644, %v1646
      %v1648 = vrot.slane %v1641, %v1647
      %v1649 = vcombine.low %v1210, %v1165
      %v1651 = vunpack.c.l.s4 1983009808
      %v1652 = vunpack.c.0.s8 %v1651
      %v1653 = vlaneseq
      %v1654 = vshrl.u32 %v1653, 7
      %v1655 = vsub.s32 %v1652, %v1654
      %v1656 = vrot.slane %v1649, %v1655
      %v1657 = vcombine.low %v1213, %v1168
      %v1659 = vunpack.c.l.s4 1983009808
      %v1660 = vunpack.c.0.s8 %v1659
      %v1661 = vlaneseq
      %v1662 = vshrl.u32 %v1661, 7
      %v1663 = vsub.s32 %v1660, %v1662
      %v1664 = vrot.slane %v1657, %v1663
      %v1665 = vcombine.low %v1216, %v1627
      %v1667 = vunpack.c.l.s4 1983009808
      %v1668 = vunpack.c.0.s8 %v1667
      %v1669 = vlaneseq
      %v1670 = vshrl.u32 %v1669, 7
      %v1671 = vsub.s32 %v1668, %v1670
      %v1672 = vrot.slane %v1665, %v1671
      %v1673 = vcombine.low %v1219, %v1174
      %v1675 = vunpack.c.l.s4 1983009808
      %v1676 = vunpack.c.0.s8 %v1675
      %v1677 = vlaneseq
      %v1678 = vshrl.u32 %v1677, 7
      %v1679 = vsub.s32 %v1676, %v1678
      %v1680 = vrot.slane %v1673, %v1679
      %v1681 = vcombine.low %v1222, %v1177
      %v1683 = vunpack.c.l.s4 1983009808
      %v1684 = vunpack.c.0.s8 %v1683
      %v1685 = vlaneseq
      %v1686 = vshrl.u32 %v1685, 7
      %v1687 = vsub.s32 %v1684, %v1686
      %v1688 = vrot.slane %v1681, %v1687
      %v1689 = vcombine.low %v1225, %v1180
      %v1691 = vunpack.c.l.s4 1983009808
      %v1692 = vunpack.c.0.s8 %v1691
      %v1693 = vlaneseq
      %v1694 = vshrl.u32 %v1693, 7
      %v1695 = vsub.s32 %v1692, %v1694
      %v1696 = vrot.slane %v1689, %v1695
      %v1697 = vcombine.low %v1228, %v1630
      %v1699 = vunpack.c.l.s4 1983009808
      %v1700 = vunpack.c.0.s8 %v1699
      %v1701 = vlaneseq
      %v1702 = vshrl.u32 %v1701, 7
      %v1703 = vsub.s32 %v1700, %v1702
      %v1704 = vrot.slane %v1697, %v1703
      %v1705 = vcombine.low %v1231, %v1186
      %v1707 = vunpack.c.l.s4 1983009808
      %v1708 = vunpack.c.0.s8 %v1707
      %v1709 = vlaneseq
      %v1710 = vshrl.u32 %v1709, 7
      %v1711 = vsub.s32 %v1708, %v1710
      %v1712 = vrot.slane %v1705, %v1711
      %v1713 = vcombine.low %v1234, %v1189
      %v1715 = vunpack.c.l.s4 1983009808
      %v1716 = vunpack.c.0.s8 %v1715
      %v1717 = vlaneseq
      %v1718 = vshrl.u32 %v1717, 7
      %v1719 = vsub.s32 %v1716, %v1718
      %v1720 = vrot.slane %v1713, %v1719
      %v1721 = vcombine.low %v1237, %v1192
      %v1723 = vunpack.c.l.s4 1983009808
      %v1724 = vunpack.c.0.s8 %v1723
      %v1725 = vlaneseq
      %v1726 = vshrl.u32 %v1725, 7
      %v1727 = vsub.s32 %v1724, %v1726
      %v1728 = vrot.slane %v1721, %v1727
      %v1729 = vcombine.low %v1240, %v1633
      %v1731 = vunpack.c.l.s4 1983009808
      %v1732 = vunpack.c.0.s8 %v1731
      %v1733 = vlaneseq
      %v1734 = vshrl.u32 %v1733, 7
      %v1735 = vsub.s32 %v1732, %v1734
      %v1736 = vrot.slane %v1729, %v1735
      %v1737 = vcombine.low %v1243, %v1198
      %v1739 = vunpack.c.l.s4 1983009808
      %v1740 = vunpack.c.0.s8 %v1739
      %v1741 = vlaneseq
      %v1742 = vshrl.u32 %v1741, 7
      %v1743 = vsub.s32 %v1740, %v1742
      %v1744 = vrot.slane %v1737, %v1743
      %v1745 = vcombine.low %v1246, %v1201
      %v1747 = vunpack.c.l.s4 1983009808
      %v1748 = vunpack.c.0.s8 %v1747
      %v1749 = vlaneseq
      %v1750 = vshrl.u32 %v1749, 7
      %v1751 = vsub.s32 %v1748, %v1750
      %v1752 = vrot.slane %v1745, %v1751
      %v1753 = vcombine.low %v1249, %v1204
      %v1755 = vunpack.c.l.s4 1983009808
      %v1756 = vunpack.c.0.s8 %v1755
      %v1757 = vlaneseq
      %v1758 = vshrl.u32 %v1757, 7
      %v1759 = vsub.s32 %v1756, %v1758
      %v1760 = vrot.slane %v1753, %v1759
      %v1761 = vcombine.low %v1252, %v1636
      %v1763 = vunpack.c.l.s4 1983009808
      %v1764 = vunpack.c.0.s8 %v1763
      %v1765 = vlaneseq
      %v1766 = vshrl.u32 %v1765, 7
      %v1767 = vsub.s32 %v1764, %v1766
      %v1768 = vrot.slane %v1761, %v1767
      %v1769 = vcombine.low %v652, %v660
      %v1770 = vcombine.low %v668, %v676
      %v1772 = vunpack.c.l.s4 1983009808
      %v1773 = vunpack.c.0.s8 %v1772
      %v1774 = vlaneseq
      %v1775 = vshrl.u32 %v1774, 7
      %v1776 = vsub.s32 %v1773, %v1775
      %v1777 = vrot.slane %v1769, %v1776
      %v1779 = vunpack.c.l.s4 1983009808
      %v1780 = vunpack.c.0.s8 %v1779
      %v1781 = vlaneseq
      %v1782 = vshrl.u32 %v1781, 7
      %v1783 = vsub.s32 %v1780, %v1782
      %v1784 = vrot.slane %v1770, %v1783
      %v1785 = vcombine.low %v1777, %v1784
      %v1786 = vcombine.high %v1777, %v1784
      %v1787 = vcombine.low %v684, %v692
      %v1788 = vcombine.low %v700, %v708
      %v1790 = vunpack.c.l.s4 1983009808
      %v1791 = vunpack.c.0.s8 %v1790
      %v1792 = vlaneseq
      %v1793 = vshrl.u32 %v1792, 7
      %v1794 = vsub.s32 %v1791, %v1793
      %v1795 = vrot.slane %v1787, %v1794
      %v1797 = vunpack.c.l.s4 1983009808
      %v1798 = vunpack.c.0.s8 %v1797
      %v1799 = vlaneseq
      %v1800 = vshrl.u32 %v1799, 7
      %v1801 = vsub.s32 %v1798, %v1800
      %v1802 = vrot.slane %v1788, %v1801
      %v1803 = vcombine.low %v1795, %v1802
      %v1804 = vcombine.high %v1795, %v1802
      %v1805 = vcombine.low %v716, %v724
      %v1806 = vcombine.low %v732, %v740
      %v1808 = vunpack.c.l.s4 1983009808
      %v1809 = vunpack.c.0.s8 %v1808
      %v1810 = vlaneseq
      %v1811 = vshrl.u32 %v1810, 7
      %v1812 = vsub.s32 %v1809, %v1811
      %v1813 = vrot.slane %v1805, %v1812
      %v1815 = vunpack.c.l.s4 1983009808
      %v1816 = vunpack.c.0.s8 %v1815
      %v1817 = vlaneseq
      %v1818 = vshrl.u32 %v1817, 7
      %v1819 = vsub.s32 %v1816, %v1818
      %v1820 = vrot.slane %v1806, %v1819
      %v1821 = vcombine.low %v1813, %v1820
      %v1822 = vcombine.high %v1813, %v1820
      %v1823 = vcombine.low %v748, %v756
      %v1824 = vcombine.low %v764, %v772
      %v1826 = vunpack.c.l.s4 1983009808
      %v1827 = vunpack.c.0.s8 %v1826
      %v1828 = vlaneseq
      %v1829 = vshrl.u32 %v1828, 7
      %v1830 = vsub.s32 %v1827, %v1829
      %v1831 = vrot.slane %v1823, %v1830
      %v1833 = vunpack.c.l.s4 1983009808
      %v1834 = vunpack.c.0.s8 %v1833
      %v1835 = vlaneseq
      %v1836 = vshrl.u32 %v1835, 7
      %v1837 = vsub.s32 %v1834, %v1836
      %v1838 = vrot.slane %v1824, %v1837
      %v1839 = vcombine.low %v1831, %v1838
      %v1840 = vcombine.high %v1831, %v1838
      %v1849 = vcombine.low %v1292, %v1300
      %v1850 = vcombine.low %v1308, %v1316
      %v1852 = vunpack.c.l.s4 1983009808
      %v1853 = vunpack.c.0.s8 %v1852
      %v1854 = vlaneseq
      %v1855 = vshrl.u32 %v1854, 7
      %v1856 = vsub.s32 %v1853, %v1855
      %v1857 = vrot.slane %v1849, %v1856
      %v1859 = vunpack.c.l.s4 1983009808
      %v1860 = vunpack.c.0.s8 %v1859
      %v1861 = vlaneseq
      %v1862 = vshrl.u32 %v1861, 7
      %v1863 = vsub.s32 %v1860, %v1862
      %v1864 = vrot.slane %v1850, %v1863
      %v1865 = vcombine.low %v1857, %v1864
      %v1866 = vcombine.high %v1857, %v1864
      %v1867 = vcombine.low %v1324, %v1332
      %v1868 = vcombine.low %v1340, %v1348
      %v1870 = vunpack.c.l.s4 1983009808
      %v1871 = vunpack.c.0.s8 %v1870
      %v1872 = vlaneseq
      %v1873 = vshrl.u32 %v1872, 7
      %v1874 = vsub.s32 %v1871, %v1873
      %v1875 = vrot.slane %v1867, %v1874
      %v1877 = vunpack.c.l.s4 1983009808
      %v1878 = vunpack.c.0.s8 %v1877
      %v1879 = vlaneseq
      %v1880 = vshrl.u32 %v1879, 7
      %v1881 = vsub.s32 %v1878, %v1880
      %v1882 = vrot.slane %v1868, %v1881
      %v1883 = vcombine.low %v1875, %v1882
      %v1884 = vcombine.high %v1875, %v1882
      %v1885 = vcombine.low %v1356, %v1364
      %v1886 = vcombine.low %v1372, %v1380
      %v1888 = vunpack.c.l.s4 1983009808
      %v1889 = vunpack.c.0.s8 %v1888
      %v1890 = vlaneseq
      %v1891 = vshrl.u32 %v1890, 7
      %v1892 = vsub.s32 %v1889, %v1891
      %v1893 = vrot.slane %v1885, %v1892
      %v1895 = vunpack.c.l.s4 1983009808
      %v1896 = vunpack.c.0.s8 %v1895
      %v1897 = vlaneseq
      %v1898 = vshrl.u32 %v1897, 7
      %v1899 = vsub.s32 %v1896, %v1898
      %v1900 = vrot.slane %v1886, %v1899
      %v1901 = vcombine.low %v1893, %v1900
      %v1902 = vcombine.high %v1893, %v1900
      %v1903 = vcombine.low %v1388, %v1396
      %v1904 = vcombine.low %v1404, %v1412
      %v1906 = vunpack.c.l.s4 1983009808
      %v1907 = vunpack.c.0.s8 %v1906
      %v1908 = vlaneseq
      %v1909 = vshrl.u32 %v1908, 7
      %v1910 = vsub.s32 %v1907, %v1909
      %v1911 = vrot.slane %v1903, %v1910
      %v1913 = vunpack.c.l.s4 1983009808
      %v1914 = vunpack.c.0.s8 %v1913
      %v1915 = vlaneseq
      %v1916 = vshrl.u32 %v1915, 7
      %v1917 = vsub.s32 %v1914, %v1916
      %v1918 = vrot.slane %v1904, %v1917
      %v1919 = vcombine.low %v1911, %v1918
      %v1920 = vcombine.high %v1911, %v1918
      %v1929 = vcombine.low %v1456, %v1464
      %v1930 = vcombine.low %v1472, %v1480
      %v1932 = vunpack.c.l.s4 1983009808
      %v1933 = vunpack.c.0.s8 %v1932
      %v1934 = vlaneseq
      %v1935 = vshrl.u32 %v1934, 7
      %v1936 = vsub.s32 %v1933, %v1935
      %v1937 = vrot.slane %v1929, %v1936
      %v1939 = vunpack.c.l.s4 1983009808
      %v1940 = vunpack.c.0.s8 %v1939
      %v1941 = vlaneseq
      %v1942 = vshrl.u32 %v1941, 7
      %v1943 = vsub.s32 %v1940, %v1942
      %v1944 = vrot.slane %v1930, %v1943
      %v1945 = vcombine.low %v1937, %v1944
      %v1946 = vcombine.high %v1937, %v1944
      %v1947 = vcombine.low %v1488, %v1496
      %v1948 = vcombine.low %v1504, %v1512
      %v1950 = vunpack.c.l.s4 1983009808
      %v1951 = vunpack.c.0.s8 %v1950
      %v1952 = vlaneseq
      %v1953 = vshrl.u32 %v1952, 7
      %v1954 = vsub.s32 %v1951, %v1953
      %v1955 = vrot.slane %v1947, %v1954
      %v1957 = vunpack.c.l.s4 1983009808
      %v1958 = vunpack.c.0.s8 %v1957
      %v1959 = vlaneseq
      %v1960 = vshrl.u32 %v1959, 7
      %v1961 = vsub.s32 %v1958, %v1960
      %v1962 = vrot.slane %v1948, %v1961
      %v1963 = vcombine.low %v1955, %v1962
      %v1964 = vcombine.high %v1955, %v1962
      %v1965 = vcombine.low %v1520, %v1528
      %v1966 = vcombine.low %v1536, %v1544
      %v1968 = vunpack.c.l.s4 1983009808
      %v1969 = vunpack.c.0.s8 %v1968
      %v1970 = vlaneseq
      %v1971 = vshrl.u32 %v1970, 7
      %v1972 = vsub.s32 %v1969, %v1971
      %v1973 = vrot.slane %v1965, %v1972
      %v1975 = vunpack.c.l.s4 1983009808
      %v1976 = vunpack.c.0.s8 %v1975
      %v1977 = vlaneseq
      %v1978 = vshrl.u32 %v1977, 7
      %v1979 = vsub.s32 %v1976, %v1978
      %v1980 = vrot.slane %v1966, %v1979
      %v1981 = vcombine.low %v1973, %v1980
      %v1982 = vcombine.high %v1973, %v1980
      %v1983 = vcombine.low %v1552, %v1560
      %v1984 = vcombine.low %v1568, %v1576
      %v1986 = vunpack.c.l.s4 1983009808
      %v1987 = vunpack.c.0.s8 %v1986
      %v1988 = vlaneseq
      %v1989 = vshrl.u32 %v1988, 7
      %v1990 = vsub.s32 %v1987, %v1989
      %v1991 = vrot.slane %v1983, %v1990
      %v1993 = vunpack.c.l.s4 1983009808
      %v1994 = vunpack.c.0.s8 %v1993
      %v1995 = vlaneseq
      %v1996 = vshrl.u32 %v1995, 7
      %v1997 = vsub.s32 %v1994, %v1996
      %v1998 = vrot.slane %v1984, %v1997
      %v1999 = vcombine.low %v1991, %v1998
      %v2000 = vcombine.high %v1991, %v1998
      %v2009 = vcombine.low %v1648, %v1656
      %v2010 = vcombine.low %v1664, %v1672
      %v2012 = vunpack.c.l.s4 1983009808
      %v2013 = vunpack.c.0.s8 %v2012
      %v2014 = vlaneseq
      %v2015 = vshrl.u32 %v2014, 7
      %v2016 = vsub.s32 %v2013, %v2015
      %v2017 = vrot.slane %v2009, %v2016
      %v2019 = vunpack.c.l.s4 1983009808
      %v2020 = vunpack.c.0.s8 %v2019
      %v2021 = vlaneseq
      %v2022 = vshrl.u32 %v2021, 7
      %v2023 = vsub.s32 %v2020, %v2022
      %v2024 = vrot.slane %v2010, %v2023
      %v2025 = vcombine.low %v2017, %v2024
      %v2026 = vcombine.high %v2017, %v2024
      %v2027 = vcombine.low %v1680, %v1688
      %v2028 = vcombine.low %v1696, %v1704
      %v2030 = vunpack.c.l.s4 1983009808
      %v2031 = vunpack.c.0.s8 %v2030
      %v2032 = vlaneseq
      %v2033 = vshrl.u32 %v2032, 7
      %v2034 = vsub.s32 %v2031, %v2033
      %v2035 = vrot.slane %v2027, %v2034
      %v2037 = vunpack.c.l.s4 1983009808
      %v2038 = vunpack.c.0.s8 %v2037
      %v2039 = vlaneseq
      %v2040 = vshrl.u32 %v2039, 7
      %v2041 = vsub.s32 %v2038, %v2040
      %v2042 = vrot.slane %v2028, %v2041
      %v2043 = vcombine.low %v2035, %v2042
      %v2044 = vcombine.high %v2035, %v2042
      %v2045 = vcombine.low %v1712, %v1720
      %v2046 = vcombine.low %v1728, %v1736
      %v2048 = vunpack.c.l.s4 1983009808
      %v2049 = vunpack.c.0.s8 %v2048
      %v2050 = vlaneseq
      %v2051 = vshrl.u32 %v2050, 7
      %v2052 = vsub.s32 %v2049, %v2051
      %v2053 = vrot.slane %v2045, %v2052
      %v2055 = vunpack.c.l.s4 1983009808
      %v2056 = vunpack.c.0.s8 %v2055
      %v2057 = vlaneseq
      %v2058 = vshrl.u32 %v2057, 7
      %v2059 = vsub.s32 %v2056, %v2058
      %v2060 = vrot.slane %v2046, %v2059
      %v2061 = vcombine.low %v2053, %v2060
      %v2062 = vcombine.high %v2053, %v2060
      %v2063 = vcombine.low %v1744, %v1752
      %v2064 = vcombine.low %v1760, %v1768
      %v2066 = vunpack.c.l.s4 1983009808
      %v2067 = vunpack.c.0.s8 %v2066
      %v2068 = vlaneseq
      %v2069 = vshrl.u32 %v2068, 7
      %v2070 = vsub.s32 %v2067, %v2069
      %v2071 = vrot.slane %v2063, %v2070
      %v2073 = vunpack.c.l.s4 1983009808
      %v2074 = vunpack.c.0.s8 %v2073
      %v2075 = vlaneseq
      %v2076 = vshrl.u32 %v2075, 7
      %v2077 = vsub.s32 %v2074, %v2076
      %v2078 = vrot.slane %v2064, %v2077
      %v2079 = vcombine.low %v2071, %v2078
      %v2080 = vcombine.high %v2071, %v2078
      %v2089 = vld [vmem:[%s1] sm:$0xf]
      %v2090 = vld [vmem:[%s1 + $0x4] sm:$0xf]
      %v2091 = vld [vmem:[%s1 + $0x8] sm:$0xf]
      %v2092 = vld [vmem:[%s1 + $0xc] sm:$0xf]
      %v2093 = vld [vmem:[%s1 + $0x10] sm:$0xf]
      %v2094 = vld [vmem:[%s1 + $0x14] sm:$0xf]
      %v2095 = vld [vmem:[%s1 + $0x18] sm:$0xf]
      %v2096 = vld [vmem:[%s1 + $0x1c] sm:$0xf]
      %v2097 = vld [vmem:[%s1 + $0x20] sm:$0xf]
      %v2098 = vld [vmem:[%s1 + $0x24] sm:$0xf]
      %v2099 = vld [vmem:[%s1 + $0x28] sm:$0xf]
      %v2100 = vld [vmem:[%s1 + $0x2c] sm:$0xf]
      %v2101 = vld [vmem:[%s1 + $0x30] sm:$0xf]
      %v2102 = vld [vmem:[%s1 + $0x34] sm:$0xf]
      %v2103 = vld [vmem:[%s1 + $0x38] sm:$0xf]
      %v2104 = vld [vmem:[%s1 + $0x3c] sm:$0xf]
      %v2105 = vld [vmem:[%s1 + $0x40] sm:$0xf]
      %v2106 = vld [vmem:[%s1 + $0x44] sm:$0xf]
      %v2107 = vld [vmem:[%s1 + $0x48] sm:$0xf]
      %v2108 = vld [vmem:[%s1 + $0x4c] sm:$0xf]
      %v2109 = vld [vmem:[%s1 + $0x50] sm:$0xf]
      %v2110 = vld [vmem:[%s1 + $0x54] sm:$0xf]
      %v2111 = vld [vmem:[%s1 + $0x58] sm:$0xf]
      %v2112 = vld [vmem:[%s1 + $0x5c] sm:$0xf]
      %v2113 = vld [vmem:[%s1 + $0x60] sm:$0xf]
      %v2114 = vld [vmem:[%s1 + $0x64] sm:$0xf]
      %v2115 = vld [vmem:[%s1 + $0x68] sm:$0xf]
      %v2116 = vld [vmem:[%s1 + $0x6c] sm:$0xf]
      %v2117 = vld [vmem:[%s1 + $0x70] sm:$0xf]
      %v2118 = vld [vmem:[%s1 + $0x74] sm:$0xf]
      %v2119 = vld [vmem:[%s1 + $0x78] sm:$0xf]
      %v2120 = vld [vmem:[%s1 + $0x7c] sm:$0xf]
      %v2121 = vld [vmem:[%s4] sm:$0x1]
      %v2123 = vlaneseq
      %v2124 = vshrl.u32 %v2123, 7
      %v2125 = vsub.s32 0, %v2124
      %v2126 = vrot.slane %v2121, %v2125
      %v2160 = vunpack.c.l.b16 %v2089
      %v2161 = vunpack.c.l.b16 %v2090
      %v2162 = vunpack.c.l.b16 %v2091
      %v2163 = vunpack.c.l.b16 %v2092
      %v2164 = vunpack.c.l.b16 %v2093
      %v2165 = vunpack.c.l.b16 %v2094
      %v2166 = vunpack.c.l.b16 %v2095
      %v2167 = vunpack.c.l.b16 %v2096
      %v2168 = vunpack.c.l.b16 %v2097
      %v2169 = vunpack.c.l.b16 %v2098
      %v2170 = vunpack.c.l.b16 %v2099
      %v2171 = vunpack.c.l.b16 %v2100
      %v2172 = vunpack.c.l.b16 %v2101
      %v2173 = vunpack.c.l.b16 %v2102
      %v2174 = vunpack.c.l.b16 %v2103
      %v2175 = vunpack.c.l.b16 %v2104
      %v2176 = vunpack.c.l.b16 %v2105
      %v2177 = vunpack.c.l.b16 %v2106
      %v2178 = vunpack.c.l.b16 %v2107
      %v2179 = vunpack.c.l.b16 %v2108
      %v2180 = vunpack.c.l.b16 %v2109
      %v2181 = vunpack.c.l.b16 %v2110
      %v2182 = vunpack.c.l.b16 %v2111
      %v2183 = vunpack.c.l.b16 %v2112
      %v2184 = vunpack.c.l.b16 %v2113
      %v2185 = vunpack.c.l.b16 %v2114
      %v2186 = vunpack.c.l.b16 %v2115
      %v2187 = vunpack.c.l.b16 %v2116
      %v2188 = vunpack.c.l.b16 %v2117
      %v2189 = vunpack.c.l.b16 %v2118
      %v2190 = vunpack.c.l.b16 %v2119
      %v2191 = vunpack.c.l.b16 %v2120
      %v2192 = vpack.c.b16 %v2161, %v2160
      %v2193 = vpack.c.b16 %v2163, %v2162
      %v2194 = vpack.c.b16 %v2165, %v2164
      %v2195 = vpack.c.b16 %v2167, %v2166
      %v2196 = vpack.c.b16 %v2169, %v2168
      %v2197 = vpack.c.b16 %v2171, %v2170
      %v2198 = vpack.c.b16 %v2173, %v2172
      %v2199 = vpack.c.b16 %v2175, %v2174
      %v2200 = vpack.c.b16 %v2177, %v2176
      %v2201 = vpack.c.b16 %v2179, %v2178
      %v2202 = vpack.c.b16 %v2181, %v2180
      %v2203 = vpack.c.b16 %v2183, %v2182
      %v2204 = vpack.c.b16 %v2185, %v2184
      %v2205 = vpack.c.b16 %v2187, %v2186
      %v2206 = vpack.c.b16 %v2189, %v2188
      %v2207 = vpack.c.b16 %v2191, %v2190
      %2224 = vmatprep.subr.bf16.mxu0 0
      %2225 = vmatpush1.bf16.msra.mxu0 %v2192
      %2226 = vmatprep.subr.bf16.mxu0 0
      %2227 = vmatpush1.bf16.msra.mxu0 %v2193
      %2228 = vmatprep.subr.bf16.mxu0 0
      %2229 = vmatpush1.bf16.msra.mxu0 %v2194
      %2230 = vmatprep.subr.bf16.mxu0 0
      %2231 = vmatpush1.bf16.msra.mxu0 %v2195
      %2232 = vmatprep.subr.bf16.mxu0 0
      %2233 = vmatpush1.bf16.msra.mxu0 %v2196
      %2234 = vmatprep.subr.bf16.mxu0 0
      %2235 = vmatpush1.bf16.msra.mxu0 %v2197
      %2236 = vmatprep.subr.bf16.mxu0 0
      %2237 = vmatpush1.bf16.msra.mxu0 %v2198
      %2238 = vmatprep.subr.bf16.mxu0 0
      %2239 = vmatpush1.bf16.msra.mxu0 %v2199
      %2240 = vmatprep.subr.bf16.mxu0 0
      %2241 = vmatpush1.bf16.msra.mxu0 %v2200
      %2242 = vmatprep.subr.bf16.mxu0 0
      %2243 = vmatpush1.bf16.msra.mxu0 %v2201
      %2244 = vmatprep.subr.bf16.mxu0 0
      %2245 = vmatpush1.bf16.msra.mxu0 %v2202
      %2246 = vmatprep.subr.bf16.mxu0 0
      %2247 = vmatpush1.bf16.msra.mxu0 %v2203
      %2248 = vmatprep.subr.bf16.mxu0 0
      %2249 = vmatpush1.bf16.msra.mxu0 %v2204
      %2250 = vmatprep.subr.bf16.mxu0 0
      %2251 = vmatpush1.bf16.msra.mxu0 %v2205
      %2252 = vmatprep.subr.bf16.mxu0 0
      %2253 = vmatpush1.bf16.msra.mxu0 %v2206
      %2254 = vmatprep.subr.bf16.mxu0 0
      %2255 = vmatpush1.bf16.msra.mxu0 %v2207
      %2256 = vmatprep.mubr.bf16.mxu0 %v1786
      %2257 = vmatmul.mubr.bf16.gmra.mrb[0].mxu0 %v1785
      %v2258 = vpop.f32.mrb[0].mxu0
      %v2259 = vadd.f32 %v2126, %v2258
      %v2260 = vpop.f32.mrb[0].mxu0
      %v2261 = vpop.f32.mrb[0].mxu0
      %v2262 = vadd.f32 %v2126, %v2261
      %v2263 = vpop.f32.mrb[0].mxu0
      %2264 = vmatprep.mubr.bf16.mxu0 %v1804
      %2265 = vmatmul.mubr.bf16.gmra.mrb[0].mxu0 %v1803
      %v2266 = vpop.f32.mrb[0].mxu0
      %v2267 = vadd.f32 %v2126, %v2266
      %v2268 = vpop.f32.mrb[0].mxu0
      %v2269 = vpop.f32.mrb[0].mxu0
      %v2270 = vadd.f32 %v2126, %v2269
      %v2271 = vpop.f32.mrb[0].mxu0
      %2272 = vmatprep.mubr.bf16.mxu0 %v1822
      %2273 = vmatmul.mubr.bf16.gmra.mrb[0].mxu0 %v1821
      %v2274 = vpop.f32.mrb[0].mxu0
      %v2275 = vadd.f32 %v2126, %v2274
      %v2276 = vpop.f32.mrb[0].mxu0
      %v2277 = vpop.f32.mrb[0].mxu0
      %v2278 = vadd.f32 %v2126, %v2277
      %v2279 = vpop.f32.mrb[0].mxu0
      %2280 = vmatprep.mubr.bf16.mxu0 %v1840
      %2281 = vmatmul.mubr.bf16.gmra.mrb[0].mxu0 %v1839
      %v2282 = vpop.f32.mrb[0].mxu0
      %v2283 = vadd.f32 %v2126, %v2282
      %v2284 = vpop.f32.mrb[0].mxu0
      %v2285 = vpop.f32.mrb[0].mxu0
      %v2286 = vadd.f32 %v2126, %v2285
      %v2287 = vpop.f32.mrb[0].mxu0
      %2288 = vmatprep.mubr.bf16.mxu0 %v1866
      %2289 = vmatmul.mubr.bf16.gmra.mrb[0].mxu0 %v1865
      %v2290 = vpop.f32.mrb[0].mxu0
      %v2291 = vadd.f32 %v2126, %v2290
      %v2292 = vpop.f32.mrb[0].mxu0
      %v2293 = vpop.f32.mrb[0].mxu0
      %v2294 = vadd.f32 %v2126, %v2293
      %v2295 = vpop.f32.mrb[0].mxu0
      %2296 = vmatprep.mubr.bf16.mxu0 %v1884
      %2297 = vmatmul.mubr.bf16.gmra.mrb[0].mxu0 %v1883
      %v2298 = vpop.f32.mrb[0].mxu0
      %v2299 = vadd.f32 %v2126, %v2298
      %v2300 = vpop.f32.mrb[0].mxu0
      %v2301 = vpop.f32.mrb[0].mxu0
      %v2302 = vadd.f32 %v2126, %v2301
      %v2303 = vpop.f32.mrb[0].mxu0
      %2304 = vmatprep.mubr.bf16.mxu0 %v1902
      %2305 = vmatmul.mubr.bf16.gmra.mrb[0].mxu0 %v1901
      %v2306 = vpop.f32.mrb[0].mxu0
      %v2307 = vadd.f32 %v2126, %v2306
      %v2308 = vpop.f32.mrb[0].mxu0
      %v2309 = vpop.f32.mrb[0].mxu0
      %v2310 = vadd.f32 %v2126, %v2309
      %v2311 = vpop.f32.mrb[0].mxu0
      %2312 = vmatprep.mubr.bf16.mxu0 %v1920
      %2313 = vmatmul.mubr.bf16.gmra.mrb[0].mxu0 %v1919
      %v2314 = vpop.f32.mrb[0].mxu0
      %v2315 = vadd.f32 %v2126, %v2314
      %v2316 = vpop.f32.mrb[0].mxu0
      %v2317 = vpop.f32.mrb[0].mxu0
      %v2318 = vadd.f32 %v2126, %v2317
      %v2319 = vpop.f32.mrb[0].mxu0
      %2320 = vmatprep.mubr.bf16.mxu0 %v1946
      %2321 = vmatmul.mubr.bf16.gmra.mrb[0].mxu0 %v1945
      %v2322 = vpop.f32.mrb[0].mxu0
      %v2323 = vadd.f32 %v2126, %v2322
      %v2324 = vpop.f32.mrb[0].mxu0
      %v2325 = vpop.f32.mrb[0].mxu0
      %v2326 = vadd.f32 %v2126, %v2325
      %v2327 = vpop.f32.mrb[0].mxu0
      %2328 = vmatprep.mubr.bf16.mxu0 %v1964
      %2329 = vmatmul.mubr.bf16.gmra.mrb[0].mxu0 %v1963
      %v2330 = vpop.f32.mrb[0].mxu0
      %v2331 = vadd.f32 %v2126, %v2330
      %v2332 = vpop.f32.mrb[0].mxu0
      %v2333 = vpop.f32.mrb[0].mxu0
      %v2334 = vadd.f32 %v2126, %v2333
      %v2335 = vpop.f32.mrb[0].mxu0
      %2336 = vmatprep.mubr.bf16.mxu0 %v1982
      %2337 = vmatmul.mubr.bf16.gmra.mrb[0].mxu0 %v1981
      %v2338 = vpop.f32.mrb[0].mxu0
      %v2339 = vadd.f32 %v2126, %v2338
      %v2340 = vpop.f32.mrb[0].mxu0
      %v2341 = vpop.f32.mrb[0].mxu0
      %v2342 = vadd.f32 %v2126, %v2341
      %v2343 = vpop.f32.mrb[0].mxu0
      %2344 = vmatprep.mubr.bf16.mxu0 %v2000
      %2345 = vmatmul.mubr.bf16.gmra.mrb[0].mxu0 %v1999
      %v2346 = vpop.f32.mrb[0].mxu0
      %v2347 = vadd.f32 %v2126, %v2346
      %v2348 = vpop.f32.mrb[0].mxu0
      %v2349 = vpop.f32.mrb[0].mxu0
      %v2350 = vadd.f32 %v2126, %v2349
      %v2351 = vpop.f32.mrb[0].mxu0
      %2352 = vmatprep.mubr.bf16.mxu0 %v2026
      %2353 = vmatmul.mubr.bf16.gmra.mrb[0].mxu0 %v2025
      %v2354 = vpop.f32.mrb[0].mxu0
      %v2355 = vadd.f32 %v2126, %v2354
      %v2356 = vpop.f32.mrb[0].mxu0
      %v2357 = vpop.f32.mrb[0].mxu0
      %v2358 = vadd.f32 %v2126, %v2357
      %v2359 = vpop.f32.mrb[0].mxu0
      %2360 = vmatprep.mubr.bf16.mxu0 %v2044
      %2361 = vmatmul.mubr.bf16.gmra.mrb[0].mxu0 %v2043
      %v2362 = vpop.f32.mrb[0].mxu0
      %v2363 = vadd.f32 %v2126, %v2362
      %v2364 = vpop.f32.mrb[0].mxu0
      %v2365 = vpop.f32.mrb[0].mxu0
      %v2366 = vadd.f32 %v2126, %v2365
      %v2367 = vpop.f32.mrb[0].mxu0
      %2368 = vmatprep.mubr.bf16.mxu0 %v2062
      %2369 = vmatmul.mubr.bf16.gmra.mrb[0].mxu0 %v2061
      %v2370 = vpop.f32.mrb[0].mxu0
      %v2371 = vadd.f32 %v2126, %v2370
      %v2372 = vpop.f32.mrb[0].mxu0
      %v2373 = vpop.f32.mrb[0].mxu0
      %v2374 = vadd.f32 %v2126, %v2373
      %v2375 = vpop.f32.mrb[0].mxu0
      %2376 = vmatprep.mubr.bf16.mxu0 %v2080
      %2377 = vmatmul.mubr.bf16.gmra.mrb[0].mxu0 %v2079
      %v2378 = vpop.f32.mrb[0].mxu0
      %v2379 = vadd.f32 %v2126, %v2378
      %v2380 = vpop.f32.mrb[0].mxu0
      %v2381 = vpop.f32.mrb[0].mxu0
      %v2382 = vadd.f32 %v2126, %v2381
      %v2383 = vpop.f32.mrb[0].mxu0
      %2384 = vdwg.mxu0
      %v2385 = vmax.f32 %v2259, 0.0
      %v2386 = vmax.f32 %v2262, 0.0
      %v2387 = vmax.f32 %v2267, 0.0
      %v2388 = vmax.f32 %v2270, 0.0
      %v2389 = vmax.f32 %v2275, 0.0
      %v2390 = vmax.f32 %v2278, 0.0
      %v2391 = vmax.f32 %v2283, 0.0
      %v2392 = vmax.f32 %v2286, 0.0
      %v2393 = vmax.f32 %v2291, 0.0
      %v2394 = vmax.f32 %v2294, 0.0
      %v2395 = vmax.f32 %v2299, 0.0
      %v2396 = vmax.f32 %v2302, 0.0
      %v2397 = vmax.f32 %v2307, 0.0
      %v2398 = vmax.f32 %v2310, 0.0
      %v2399 = vmax.f32 %v2315, 0.0
      %v2400 = vmax.f32 %v2318, 0.0
      %v2401 = vmax.f32 %v2323, 0.0
      %v2402 = vmax.f32 %v2326, 0.0
      %v2403 = vmax.f32 %v2331, 0.0
      %v2404 = vmax.f32 %v2334, 0.0
      %v2405 = vmax.f32 %v2339, 0.0
      %v2406 = vmax.f32 %v2342, 0.0
      %v2407 = vmax.f32 %v2347, 0.0
      %v2408 = vmax.f32 %v2350, 0.0
      %v2409 = vmax.f32 %v2355, 0.0
      %v2410 = vmax.f32 %v2358, 0.0
      %v2411 = vmax.f32 %v2363, 0.0
      %v2412 = vmax.f32 %v2366, 0.0
      %v2413 = vmax.f32 %v2371, 0.0
      %v2414 = vmax.f32 %v2374, 0.0
      %v2415 = vmax.f32 %v2379, 0.0
      %v2416 = vmax.f32 %v2382, 0.0
      %v2417 = vpack.c.bf16 %v2386, %v2385
      %v2418 = vpack.c.bf16 %v2388, %v2387
      %v2419 = vpack.c.bf16 %v2390, %v2389
      %v2420 = vpack.c.bf16 %v2392, %v2391
      %v2421 = vpack.c.bf16 %v2394, %v2393
      %v2422 = vpack.c.bf16 %v2396, %v2395
      %v2423 = vpack.c.bf16 %v2398, %v2397
      %v2424 = vpack.c.bf16 %v2400, %v2399
      %v2425 = vpack.c.bf16 %v2402, %v2401
      %v2426 = vpack.c.bf16 %v2404, %v2403
      %v2427 = vpack.c.bf16 %v2406, %v2405
      %v2428 = vpack.c.bf16 %v2408, %v2407
      %v2429 = vpack.c.bf16 %v2410, %v2409
      %v2430 = vpack.c.bf16 %v2412, %v2411
      %v2431 = vpack.c.bf16 %v2414, %v2413
      %v2432 = vpack.c.bf16 %v2416, %v2415
      %v2449 = vcombine.high %v2417, %v2417
      %v2451 = vunpack.c.l.s4 1983009808
      %v2452 = vunpack.c.0.s8 %v2451
      %v2453 = vlaneseq
      %v2454 = vshrl.u32 %v2453, 7
      %v2455 = vsub.s32 %v2452, %v2454
      %v2456 = vrot.slane %v2417, %v2455
      %v2458 = vunpack.c.l.s4 1983009808
      %v2459 = vunpack.c.0.s8 %v2458
      %v2460 = vlaneseq
      %v2461 = vshrl.u32 %v2460, 7
      %v2462 = vsub.s32 %v2459, %v2461
      %v2463 = vrot.slane %v2449, %v2462
      %v2464 = vcombine.high %v2456, %v2456
      %v2465 = vcombine.high %v2463, %v2463
      %v2466 = vcombine.high %v2418, %v2418
      %v2468 = vunpack.c.l.s4 1983009808
      %v2469 = vunpack.c.0.s8 %v2468
      %v2470 = vlaneseq
      %v2471 = vshrl.u32 %v2470, 7
      %v2472 = vsub.s32 %v2469, %v2471
      %v2473 = vrot.slane %v2418, %v2472
      %v2475 = vunpack.c.l.s4 1983009808
      %v2476 = vunpack.c.0.s8 %v2475
      %v2477 = vlaneseq
      %v2478 = vshrl.u32 %v2477, 7
      %v2479 = vsub.s32 %v2476, %v2478
      %v2480 = vrot.slane %v2466, %v2479
      %v2481 = vcombine.high %v2473, %v2473
      %v2482 = vcombine.high %v2480, %v2480
      %v2483 = vcombine.high %v2419, %v2419
      %v2485 = vunpack.c.l.s4 1983009808
      %v2486 = vunpack.c.0.s8 %v2485
      %v2487 = vlaneseq
      %v2488 = vshrl.u32 %v2487, 7
      %v2489 = vsub.s32 %v2486, %v2488
      %v2490 = vrot.slane %v2419, %v2489
      %v2492 = vunpack.c.l.s4 1983009808
      %v2493 = vunpack.c.0.s8 %v2492
      %v2494 = vlaneseq
      %v2495 = vshrl.u32 %v2494, 7
      %v2496 = vsub.s32 %v2493, %v2495
      %v2497 = vrot.slane %v2483, %v2496
      %v2498 = vcombine.high %v2490, %v2490
      %v2499 = vcombine.high %v2497, %v2497
      %v2500 = vcombine.high %v2420, %v2420
      %v2502 = vunpack.c.l.s4 1983009808
      %v2503 = vunpack.c.0.s8 %v2502
      %v2504 = vlaneseq
      %v2505 = vshrl.u32 %v2504, 7
      %v2506 = vsub.s32 %v2503, %v2505
      %v2507 = vrot.slane %v2420, %v2506
      %v2509 = vunpack.c.l.s4 1983009808
      %v2510 = vunpack.c.0.s8 %v2509
      %v2511 = vlaneseq
      %v2512 = vshrl.u32 %v2511, 7
      %v2513 = vsub.s32 %v2510, %v2512
      %v2514 = vrot.slane %v2500, %v2513
      %v2515 = vcombine.high %v2507, %v2507
      %v2516 = vcombine.high %v2514, %v2514
      %v2517 = vcombine.high %v2421, %v2421
      %v2519 = vunpack.c.l.s4 1983009808
      %v2520 = vunpack.c.0.s8 %v2519
      %v2521 = vlaneseq
      %v2522 = vshrl.u32 %v2521, 7
      %v2523 = vsub.s32 %v2520, %v2522
      %v2524 = vrot.slane %v2421, %v2523
      %v2526 = vunpack.c.l.s4 1983009808
      %v2527 = vunpack.c.0.s8 %v2526
      %v2528 = vlaneseq
      %v2529 = vshrl.u32 %v2528, 7
      %v2530 = vsub.s32 %v2527, %v2529
      %v2531 = vrot.slane %v2517, %v2530
      %v2532 = vcombine.high %v2524, %v2524
      %v2533 = vcombine.high %v2531, %v2531
      %v2534 = vcombine.high %v2422, %v2422
      %v2536 = vunpack.c.l.s4 1983009808
      %v2537 = vunpack.c.0.s8 %v2536
      %v2538 = vlaneseq
      %v2539 = vshrl.u32 %v2538, 7
      %v2540 = vsub.s32 %v2537, %v2539
      %v2541 = vrot.slane %v2422, %v2540
      %v2543 = vunpack.c.l.s4 1983009808
      %v2544 = vunpack.c.0.s8 %v2543
      %v2545 = vlaneseq
      %v2546 = vshrl.u32 %v2545, 7
      %v2547 = vsub.s32 %v2544, %v2546
      %v2548 = vrot.slane %v2534, %v2547
      %v2549 = vcombine.high %v2541, %v2541
      %v2550 = vcombine.high %v2548, %v2548
      %v2551 = vcombine.high %v2423, %v2423
      %v2553 = vunpack.c.l.s4 1983009808
      %v2554 = vunpack.c.0.s8 %v2553
      %v2555 = vlaneseq
      %v2556 = vshrl.u32 %v2555, 7
      %v2557 = vsub.s32 %v2554, %v2556
      %v2558 = vrot.slane %v2423, %v2557
      %v2560 = vunpack.c.l.s4 1983009808
      %v2561 = vunpack.c.0.s8 %v2560
      %v2562 = vlaneseq
      %v2563 = vshrl.u32 %v2562, 7
      %v2564 = vsub.s32 %v2561, %v2563
      %v2565 = vrot.slane %v2551, %v2564
      %v2566 = vcombine.high %v2558, %v2558
      %v2567 = vcombine.high %v2565, %v2565
      %v2568 = vcombine.high %v2424, %v2424
      %v2570 = vunpack.c.l.s4 1983009808
      %v2571 = vunpack.c.0.s8 %v2570
      %v2572 = vlaneseq
      %v2573 = vshrl.u32 %v2572, 7
      %v2574 = vsub.s32 %v2571, %v2573
      %v2575 = vrot.slane %v2424, %v2574
      %v2577 = vunpack.c.l.s4 1983009808
      %v2578 = vunpack.c.0.s8 %v2577
      %v2579 = vlaneseq
      %v2580 = vshrl.u32 %v2579, 7
      %v2581 = vsub.s32 %v2578, %v2580
      %v2582 = vrot.slane %v2568, %v2581
      %v2583 = vcombine.high %v2575, %v2575
      %v2584 = vcombine.high %v2582, %v2582
      %v2585 = vcombine.high %v2425, %v2425
      %v2587 = vunpack.c.l.s4 1983009808
      %v2588 = vunpack.c.0.s8 %v2587
      %v2589 = vlaneseq
      %v2590 = vshrl.u32 %v2589, 7
      %v2591 = vsub.s32 %v2588, %v2590
      %v2592 = vrot.slane %v2425, %v2591
      %v2594 = vunpack.c.l.s4 1983009808
      %v2595 = vunpack.c.0.s8 %v2594
      %v2596 = vlaneseq
      %v2597 = vshrl.u32 %v2596, 7
      %v2598 = vsub.s32 %v2595, %v2597
      %v2599 = vrot.slane %v2585, %v2598
      %v2600 = vcombine.high %v2592, %v2592
      %v2601 = vcombine.high %v2599, %v2599
      %v2602 = vcombine.high %v2426, %v2426
      %v2604 = vunpack.c.l.s4 1983009808
      %v2605 = vunpack.c.0.s8 %v2604
      %v2606 = vlaneseq
      %v2607 = vshrl.u32 %v2606, 7
      %v2608 = vsub.s32 %v2605, %v2607
      %v2609 = vrot.slane %v2426, %v2608
      %v2611 = vunpack.c.l.s4 1983009808
      %v2612 = vunpack.c.0.s8 %v2611
      %v2613 = vlaneseq
      %v2614 = vshrl.u32 %v2613, 7
      %v2615 = vsub.s32 %v2612, %v2614
      %v2616 = vrot.slane %v2602, %v2615
      %v2617 = vcombine.high %v2609, %v2609
      %v2618 = vcombine.high %v2616, %v2616
      %v2619 = vcombine.high %v2427, %v2427
      %v2621 = vunpack.c.l.s4 1983009808
      %v2622 = vunpack.c.0.s8 %v2621
      %v2623 = vlaneseq
      %v2624 = vshrl.u32 %v2623, 7
      %v2625 = vsub.s32 %v2622, %v2624
      %v2626 = vrot.slane %v2427, %v2625
      %v2628 = vunpack.c.l.s4 1983009808
      %v2629 = vunpack.c.0.s8 %v2628
      %v2630 = vlaneseq
      %v2631 = vshrl.u32 %v2630, 7
      %v2632 = vsub.s32 %v2629, %v2631
      %v2633 = vrot.slane %v2619, %v2632
      %v2634 = vcombine.high %v2626, %v2626
      %v2635 = vcombine.high %v2633, %v2633
      %v2636 = vcombine.high %v2428, %v2428
      %v2638 = vunpack.c.l.s4 1983009808
      %v2639 = vunpack.c.0.s8 %v2638
      %v2640 = vlaneseq
      %v2641 = vshrl.u32 %v2640, 7
      %v2642 = vsub.s32 %v2639, %v2641
      %v2643 = vrot.slane %v2428, %v2642
      %v2645 = vunpack.c.l.s4 1983009808
      %v2646 = vunpack.c.0.s8 %v2645
      %v2647 = vlaneseq
      %v2648 = vshrl.u32 %v2647, 7
      %v2649 = vsub.s32 %v2646, %v2648
      %v2650 = vrot.slane %v2636, %v2649
      %v2651 = vcombine.high %v2643, %v2643
      %v2652 = vcombine.high %v2650, %v2650
      %v2653 = vcombine.high %v2429, %v2429
      %v2655 = vunpack.c.l.s4 1983009808
      %v2656 = vunpack.c.0.s8 %v2655
      %v2657 = vlaneseq
      %v2658 = vshrl.u32 %v2657, 7
      %v2659 = vsub.s32 %v2656, %v2658
      %v2660 = vrot.slane %v2429, %v2659
      %v2662 = vunpack.c.l.s4 1983009808
      %v2663 = vunpack.c.0.s8 %v2662
      %v2664 = vlaneseq
      %v2665 = vshrl.u32 %v2664, 7
      %v2666 = vsub.s32 %v2663, %v2665
      %v2667 = vrot.slane %v2653, %v2666
      %v2668 = vcombine.high %v2660, %v2660
      %v2669 = vcombine.high %v2667, %v2667
      %v2670 = vcombine.high %v2430, %v2430
      %v2672 = vunpack.c.l.s4 1983009808
      %v2673 = vunpack.c.0.s8 %v2672
      %v2674 = vlaneseq
      %v2675 = vshrl.u32 %v2674, 7
      %v2676 = vsub.s32 %v2673, %v2675
      %v2677 = vrot.slane %v2430, %v2676
      %v2679 = vunpack.c.l.s4 1983009808
      %v2680 = vunpack.c.0.s8 %v2679
      %v2681 = vlaneseq
      %v2682 = vshrl.u32 %v2681, 7
      %v2683 = vsub.s32 %v2680, %v2682
      %v2684 = vrot.slane %v2670, %v2683
      %v2685 = vcombine.high %v2677, %v2677
      %v2686 = vcombine.high %v2684, %v2684
      %v2687 = vcombine.high %v2431, %v2431
      %v2689 = vunpack.c.l.s4 1983009808
      %v2690 = vunpack.c.0.s8 %v2689
      %v2691 = vlaneseq
      %v2692 = vshrl.u32 %v2691, 7
      %v2693 = vsub.s32 %v2690, %v2692
      %v2694 = vrot.slane %v2431, %v2693
      %v2696 = vunpack.c.l.s4 1983009808
      %v2697 = vunpack.c.0.s8 %v2696
      %v2698 = vlaneseq
      %v2699 = vshrl.u32 %v2698, 7
      %v2700 = vsub.s32 %v2697, %v2699
      %v2701 = vrot.slane %v2687, %v2700
      %v2702 = vcombine.high %v2694, %v2694
      %v2703 = vcombine.high %v2701, %v2701
      %v2704 = vcombine.high %v2432, %v2432
      %v2706 = vunpack.c.l.s4 1983009808
      %v2707 = vunpack.c.0.s8 %v2706
      %v2708 = vlaneseq
      %v2709 = vshrl.u32 %v2708, 7
      %v2710 = vsub.s32 %v2707, %v2709
      %v2711 = vrot.slane %v2432, %v2710
      %v2713 = vunpack.c.l.s4 1983009808
      %v2714 = vunpack.c.0.s8 %v2713
      %v2715 = vlaneseq
      %v2716 = vshrl.u32 %v2715, 7
      %v2717 = vsub.s32 %v2714, %v2716
      %v2718 = vrot.slane %v2704, %v2717
      %v2719 = vcombine.high %v2711, %v2711
      %v2720 = vcombine.high %v2718, %v2718
      %v2722 = vunpack.c.l.s4 1983009808
      %v2723 = vunpack.c.0.s8 %v2722
      %v2724 = vlaneseq
      %v2725 = vshrl.u32 %v2724, 7
      %v2726 = vsub.s32 %v2723, %v2725
      %v2727 = vrot.slane %v2456, %v2726
      %v2729 = vunpack.c.l.s4 1983009808
      %v2730 = vunpack.c.0.s8 %v2729
      %v2731 = vlaneseq
      %v2732 = vshrl.u32 %v2731, 7
      %v2733 = vsub.s32 %v2730, %v2732
      %v2734 = vrot.slane %v2464, %v2733
      %v2736 = vunpack.c.l.s4 1983009808
      %v2737 = vunpack.c.0.s8 %v2736
      %v2738 = vlaneseq
      %v2739 = vshrl.u32 %v2738, 7
      %v2740 = vsub.s32 %v2737, %v2739
      %v2741 = vrot.slane %v2463, %v2740
      %v2743 = vunpack.c.l.s4 1983009808
      %v2744 = vunpack.c.0.s8 %v2743
      %v2745 = vlaneseq
      %v2746 = vshrl.u32 %v2745, 7
      %v2747 = vsub.s32 %v2744, %v2746
      %v2748 = vrot.slane %v2473, %v2747
      %v2750 = vunpack.c.l.s4 1983009808
      %v2751 = vunpack.c.0.s8 %v2750
      %v2752 = vlaneseq
      %v2753 = vshrl.u32 %v2752, 7
      %v2754 = vsub.s32 %v2751, %v2753
      %v2755 = vrot.slane %v2481, %v2754
      %v2757 = vunpack.c.l.s4 1983009808
      %v2758 = vunpack.c.0.s8 %v2757
      %v2759 = vlaneseq
      %v2760 = vshrl.u32 %v2759, 7
      %v2761 = vsub.s32 %v2758, %v2760
      %v2762 = vrot.slane %v2480, %v2761
      %v2764 = vunpack.c.l.s4 1983009808
      %v2765 = vunpack.c.0.s8 %v2764
      %v2766 = vlaneseq
      %v2767 = vshrl.u32 %v2766, 7
      %v2768 = vsub.s32 %v2765, %v2767
      %v2769 = vrot.slane %v2490, %v2768
      %v2771 = vunpack.c.l.s4 1983009808
      %v2772 = vunpack.c.0.s8 %v2771
      %v2773 = vlaneseq
      %v2774 = vshrl.u32 %v2773, 7
      %v2775 = vsub.s32 %v2772, %v2774
      %v2776 = vrot.slane %v2498, %v2775
      %v2778 = vunpack.c.l.s4 1983009808
      %v2779 = vunpack.c.0.s8 %v2778
      %v2780 = vlaneseq
      %v2781 = vshrl.u32 %v2780, 7
      %v2782 = vsub.s32 %v2779, %v2781
      %v2783 = vrot.slane %v2497, %v2782
      %v2785 = vunpack.c.l.s4 1983009808
      %v2786 = vunpack.c.0.s8 %v2785
      %v2787 = vlaneseq
      %v2788 = vshrl.u32 %v2787, 7
      %v2789 = vsub.s32 %v2786, %v2788
      %v2790 = vrot.slane %v2507, %v2789
      %v2792 = vunpack.c.l.s4 1983009808
      %v2793 = vunpack.c.0.s8 %v2792
      %v2794 = vlaneseq
      %v2795 = vshrl.u32 %v2794, 7
      %v2796 = vsub.s32 %v2793, %v2795
      %v2797 = vrot.slane %v2515, %v2796
      %v2799 = vunpack.c.l.s4 1983009808
      %v2800 = vunpack.c.0.s8 %v2799
      %v2801 = vlaneseq
      %v2802 = vshrl.u32 %v2801, 7
      %v2803 = vsub.s32 %v2800, %v2802
      %v2804 = vrot.slane %v2514, %v2803
      %v2806 = vshrl.u32 %v2727, 16
      %v2808 = vshll.u32 %v2727, 16
      %v2810 = vrot.slane %v2808, 1
      %v2811 = vor.u32 %v2806, %v2810
      %v2813 = vshrl.u32 %v2734, 16
      %v2815 = vshll.u32 %v2734, 16
      %v2817 = vrot.slane %v2815, 1
      %v2818 = vor.u32 %v2813, %v2817
      %v2820 = vshrl.u32 %v2741, 16
      %v2822 = vshll.u32 %v2741, 16
      %v2824 = vrot.slane %v2822, 1
      %v2825 = vor.u32 %v2820, %v2824
      %v2827 = vshrl.u32 %v2748, 16
      %v2829 = vshll.u32 %v2748, 16
      %v2831 = vrot.slane %v2829, 1
      %v2832 = vor.u32 %v2827, %v2831
      %v2834 = vshrl.u32 %v2755, 16
      %v2836 = vshll.u32 %v2755, 16
      %v2838 = vrot.slane %v2836, 1
      %v2839 = vor.u32 %v2834, %v2838
      %v2841 = vshrl.u32 %v2762, 16
      %v2843 = vshll.u32 %v2762, 16
      %v2845 = vrot.slane %v2843, 1
      %v2846 = vor.u32 %v2841, %v2845
      %v2848 = vshrl.u32 %v2769, 16
      %v2850 = vshll.u32 %v2769, 16
      %v2852 = vrot.slane %v2850, 1
      %v2853 = vor.u32 %v2848, %v2852
      %v2855 = vshrl.u32 %v2776, 16
      %v2857 = vshll.u32 %v2776, 16
      %v2859 = vrot.slane %v2857, 1
      %v2860 = vor.u32 %v2855, %v2859
      %v2862 = vshrl.u32 %v2783, 16
      %v2864 = vshll.u32 %v2783, 16
      %v2866 = vrot.slane %v2864, 1
      %v2867 = vor.u32 %v2862, %v2866
      %v2869 = vshrl.u32 %v2790, 16
      %v2871 = vshll.u32 %v2790, 16
      %v2873 = vrot.slane %v2871, 1
      %v2874 = vor.u32 %v2869, %v2873
      %v2876 = vshrl.u32 %v2797, 16
      %v2878 = vshll.u32 %v2797, 16
      %v2880 = vrot.slane %v2878, 1
      %v2881 = vor.u32 %v2876, %v2880
      %v2883 = vshrl.u32 %v2804, 16
      %v2885 = vshll.u32 %v2804, 16
      %v2887 = vrot.slane %v2885, 1
      %v2888 = vor.u32 %v2883, %v2887
      %2889 = vrot.lane.b32.xlu0 %v2811, 32
      %v2890 = vpop.permute.xlu0 %2889
      %2891 = vrot.lane.b32.xlu0 %v2818, 32
      %v2892 = vpop.permute.xlu0 %2891
      %2893 = vrot.lane.b32.xlu0 %v2825, 32
      %v2894 = vpop.permute.xlu0 %2893
      %2895 = vrot.lane.b32.xlu0 %v2832, 32
      %v2896 = vpop.permute.xlu0 %2895
      %2897 = vrot.lane.b32.xlu0 %v2839, 32
      %v2898 = vpop.permute.xlu0 %2897
      %2899 = vrot.lane.b32.xlu0 %v2846, 32
      %v2900 = vpop.permute.xlu0 %2899
      %2901 = vrot.lane.b32.xlu0 %v2853, 32
      %v2902 = vpop.permute.xlu0 %2901
      %2903 = vrot.lane.b32.xlu0 %v2860, 32
      %v2904 = vpop.permute.xlu0 %2903
      %2905 = vrot.lane.b32.xlu0 %v2867, 32
      %v2906 = vpop.permute.xlu0 %2905
      %2907 = vrot.lane.b32.xlu0 %v2874, 32
      %v2908 = vpop.permute.xlu0 %2907
      %2909 = vrot.lane.b32.xlu0 %v2881, 32
      %v2910 = vpop.permute.xlu0 %2909
      %2911 = vrot.lane.b32.xlu0 %v2888, 32
      %v2912 = vpop.permute.xlu0 %2911
      %v2914 = vunpack.c.l.s4 1983009808
      %v2915 = vunpack.c.0.s8 %v2914
      %v2916 = vlaneseq
      %v2917 = vshrl.u32 %v2916, 7
      %v2918 = vsub.s32 %v2915, %v2917
      %v2919 = vrot.slane %v2465, %v2918
      %v2921 = vunpack.c.l.s4 1983009808
      %v2922 = vunpack.c.0.s8 %v2921
      %v2923 = vlaneseq
      %v2924 = vshrl.u32 %v2923, 7
      %v2925 = vsub.s32 %v2922, %v2924
      %v2926 = vrot.slane %v2482, %v2925
      %v2928 = vunpack.c.l.s4 1983009808
      %v2929 = vunpack.c.0.s8 %v2928
      %v2930 = vlaneseq
      %v2931 = vshrl.u32 %v2930, 7
      %v2932 = vsub.s32 %v2929, %v2931
      %v2933 = vrot.slane %v2499, %v2932
      %v2935 = vunpack.c.l.s4 1983009808
      %v2936 = vunpack.c.0.s8 %v2935
      %v2937 = vlaneseq
      %v2938 = vshrl.u32 %v2937, 7
      %v2939 = vsub.s32 %v2936, %v2938
      %v2940 = vrot.slane %v2516, %v2939
      %2941 = vrot.lane.b32.xlu0 %v2734, 64
      %v2942 = vpop.permute.xlu0 %2941
      %2943 = vrot.lane.b32.xlu0 %v2741, 64
      %v2944 = vpop.permute.xlu0 %2943
      %2945 = vrot.lane.b32.xlu0 %v2919, 64
      %v2946 = vpop.permute.xlu0 %2945
      %2947 = vrot.lane.b32.xlu0 %v2755, 64
      %v2948 = vpop.permute.xlu0 %2947
      %2949 = vrot.lane.b32.xlu0 %v2762, 64
      %v2950 = vpop.permute.xlu0 %2949
      %2951 = vrot.lane.b32.xlu0 %v2926, 64
      %v2952 = vpop.permute.xlu0 %2951
      %2953 = vrot.lane.b32.xlu0 %v2776, 64
      %v2954 = vpop.permute.xlu0 %2953
      %2955 = vrot.lane.b32.xlu0 %v2783, 64
      %v2956 = vpop.permute.xlu0 %2955
      %2957 = vrot.lane.b32.xlu0 %v2933, 64
      %v2958 = vpop.permute.xlu0 %2957
      %2959 = vrot.lane.b32.xlu0 %v2797, 64
      %v2960 = vpop.permute.xlu0 %2959
      %2961 = vrot.lane.b32.xlu0 %v2804, 64
      %v2962 = vpop.permute.xlu0 %2961
      %2963 = vrot.lane.b32.xlu0 %v2940, 64
      %v2964 = vpop.permute.xlu0 %2963
      %v2966 = vshrl.u32 %v2919, 16
      %v2968 = vshll.u32 %v2919, 16
      %v2970 = vrot.slane %v2968, 1
      %v2971 = vor.u32 %v2966, %v2970
      %v2973 = vshrl.u32 %v2926, 16
      %v2975 = vshll.u32 %v2926, 16
      %v2977 = vrot.slane %v2975, 1
      %v2978 = vor.u32 %v2973, %v2977
      %v2980 = vshrl.u32 %v2933, 16
      %v2982 = vshll.u32 %v2933, 16
      %v2984 = vrot.slane %v2982, 1
      %v2985 = vor.u32 %v2980, %v2984
      %v2987 = vshrl.u32 %v2940, 16
      %v2989 = vshll.u32 %v2940, 16
      %v2991 = vrot.slane %v2989, 1
      %v2992 = vor.u32 %v2987, %v2991
      %2993 = vrot.lane.b32.xlu0 %v2818, 96
      %v2994 = vpop.permute.xlu0 %2993
      %2995 = vrot.lane.b32.xlu0 %v2825, 96
      %v2996 = vpop.permute.xlu0 %2995
      %2997 = vrot.lane.b32.xlu0 %v2971, 96
      %v2998 = vpop.permute.xlu0 %2997
      %2999 = vrot.lane.b32.xlu0 %v2839, 96
      %v3000 = vpop.permute.xlu0 %2999
      %3001 = vrot.lane.b32.xlu0 %v2846, 96
      %v3002 = vpop.permute.xlu0 %3001
      %3003 = vrot.lane.b32.xlu0 %v2978, 96
      %v3004 = vpop.permute.xlu0 %3003
      %3005 = vrot.lane.b32.xlu0 %v2860, 96
      %v3006 = vpop.permute.xlu0 %3005
      %3007 = vrot.lane.b32.xlu0 %v2867, 96
      %v3008 = vpop.permute.xlu0 %3007
      %3009 = vrot.lane.b32.xlu0 %v2985, 96
      %v3010 = vpop.permute.xlu0 %3009
      %3011 = vrot.lane.b32.xlu0 %v2881, 96
      %v3012 = vpop.permute.xlu0 %3011
      %3013 = vrot.lane.b32.xlu0 %v2888, 96
      %v3014 = vpop.permute.xlu0 %3013
      %3015 = vrot.lane.b32.xlu0 %v2992, 96
      %v3016 = vpop.permute.xlu0 %3015
      %v3018 = vunpack.c.l.s4 1983009808
      %v3019 = vunpack.c.0.s8 %v3018
      %v3020 = vlaneseq
      %v3021 = vshrl.u32 %v3020, 7
      %v3022 = vsub.s32 %v3019, %v3021
      %v3023 = vrot.slane %v2524, %v3022
      %v3025 = vunpack.c.l.s4 1983009808
      %v3026 = vunpack.c.0.s8 %v3025
      %v3027 = vlaneseq
      %v3028 = vshrl.u32 %v3027, 7
      %v3029 = vsub.s32 %v3026, %v3028
      %v3030 = vrot.slane %v2532, %v3029
      %v3032 = vunpack.c.l.s4 1983009808
      %v3033 = vunpack.c.0.s8 %v3032
      %v3034 = vlaneseq
      %v3035 = vshrl.u32 %v3034, 7
      %v3036 = vsub.s32 %v3033, %v3035
      %v3037 = vrot.slane %v2531, %v3036
      %v3039 = vunpack.c.l.s4 1983009808
      %v3040 = vunpack.c.0.s8 %v3039
      %v3041 = vlaneseq
      %v3042 = vshrl.u32 %v3041, 7
      %v3043 = vsub.s32 %v3040, %v3042
      %v3044 = vrot.slane %v2541, %v3043
      %v3046 = vunpack.c.l.s4 1983009808
      %v3047 = vunpack.c.0.s8 %v3046
      %v3048 = vlaneseq
      %v3049 = vshrl.u32 %v3048, 7
      %v3050 = vsub.s32 %v3047, %v3049
      %v3051 = vrot.slane %v2549, %v3050
      %v3053 = vunpack.c.l.s4 1983009808
      %v3054 = vunpack.c.0.s8 %v3053
      %v3055 = vlaneseq
      %v3056 = vshrl.u32 %v3055, 7
      %v3057 = vsub.s32 %v3054, %v3056
      %v3058 = vrot.slane %v2548, %v3057
      %v3060 = vunpack.c.l.s4 1983009808
      %v3061 = vunpack.c.0.s8 %v3060
      %v3062 = vlaneseq
      %v3063 = vshrl.u32 %v3062, 7
      %v3064 = vsub.s32 %v3061, %v3063
      %v3065 = vrot.slane %v2558, %v3064
      %v3067 = vunpack.c.l.s4 1983009808
      %v3068 = vunpack.c.0.s8 %v3067
      %v3069 = vlaneseq
      %v3070 = vshrl.u32 %v3069, 7
      %v3071 = vsub.s32 %v3068, %v3070
      %v3072 = vrot.slane %v2566, %v3071
      %v3074 = vunpack.c.l.s4 1983009808
      %v3075 = vunpack.c.0.s8 %v3074
      %v3076 = vlaneseq
      %v3077 = vshrl.u32 %v3076, 7
      %v3078 = vsub.s32 %v3075, %v3077
      %v3079 = vrot.slane %v2565, %v3078
      %v3081 = vunpack.c.l.s4 1983009808
      %v3082 = vunpack.c.0.s8 %v3081
      %v3083 = vlaneseq
      %v3084 = vshrl.u32 %v3083, 7
      %v3085 = vsub.s32 %v3082, %v3084
      %v3086 = vrot.slane %v2575, %v3085
      %v3088 = vunpack.c.l.s4 1983009808
      %v3089 = vunpack.c.0.s8 %v3088
      %v3090 = vlaneseq
      %v3091 = vshrl.u32 %v3090, 7
      %v3092 = vsub.s32 %v3089, %v3091
      %v3093 = vrot.slane %v2583, %v3092
      %v3095 = vunpack.c.l.s4 1983009808
      %v3096 = vunpack.c.0.s8 %v3095
      %v3097 = vlaneseq
      %v3098 = vshrl.u32 %v3097, 7
      %v3099 = vsub.s32 %v3096, %v3098
      %v3100 = vrot.slane %v2582, %v3099
      %v3102 = vshrl.u32 %v3023, 16
      %v3104 = vshll.u32 %v3023, 16
      %v3106 = vrot.slane %v3104, 1
      %v3107 = vor.u32 %v3102, %v3106
      %v3109 = vshrl.u32 %v3030, 16
      %v3111 = vshll.u32 %v3030, 16
      %v3113 = vrot.slane %v3111, 1
      %v3114 = vor.u32 %v3109, %v3113
      %v3116 = vshrl.u32 %v3037, 16
      %v3118 = vshll.u32 %v3037, 16
      %v3120 = vrot.slane %v3118, 1
      %v3121 = vor.u32 %v3116, %v3120
      %v3123 = vshrl.u32 %v3044, 16
      %v3125 = vshll.u32 %v3044, 16
      %v3127 = vrot.slane %v3125, 1
      %v3128 = vor.u32 %v3123, %v3127
      %v3130 = vshrl.u32 %v3051, 16
      %v3132 = vshll.u32 %v3051, 16
      %v3134 = vrot.slane %v3132, 1
      %v3135 = vor.u32 %v3130, %v3134
      %v3137 = vshrl.u32 %v3058, 16
      %v3139 = vshll.u32 %v3058, 16
      %v3141 = vrot.slane %v3139, 1
      %v3142 = vor.u32 %v3137, %v3141
      %v3144 = vshrl.u32 %v3065, 16
      %v3146 = vshll.u32 %v3065, 16
      %v3148 = vrot.slane %v3146, 1
      %v3149 = vor.u32 %v3144, %v3148
      %v3151 = vshrl.u32 %v3072, 16
      %v3153 = vshll.u32 %v3072, 16
      %v3155 = vrot.slane %v3153, 1
      %v3156 = vor.u32 %v3151, %v3155
      %v3158 = vshrl.u32 %v3079, 16
      %v3160 = vshll.u32 %v3079, 16
      %v3162 = vrot.slane %v3160, 1
      %v3163 = vor.u32 %v3158, %v3162
      %v3165 = vshrl.u32 %v3086, 16
      %v3167 = vshll.u32 %v3086, 16
      %v3169 = vrot.slane %v3167, 1
      %v3170 = vor.u32 %v3165, %v3169
      %v3172 = vshrl.u32 %v3093, 16
      %v3174 = vshll.u32 %v3093, 16
      %v3176 = vrot.slane %v3174, 1
      %v3177 = vor.u32 %v3172, %v3176
      %v3179 = vshrl.u32 %v3100, 16
      %v3181 = vshll.u32 %v3100, 16
      %v3183 = vrot.slane %v3181, 1
      %v3184 = vor.u32 %v3179, %v3183
      %3185 = vrot.lane.b32.xlu0 %v3107, 32
      %v3186 = vpop.permute.xlu0 %3185
      %3187 = vrot.lane.b32.xlu0 %v3114, 32
      %v3188 = vpop.permute.xlu0 %3187
      %3189 = vrot.lane.b32.xlu0 %v3121, 32
      %v3190 = vpop.permute.xlu0 %3189
      %3191 = vrot.lane.b32.xlu0 %v3128, 32
      %v3192 = vpop.permute.xlu0 %3191
      %3193 = vrot.lane.b32.xlu0 %v3135, 32
      %v3194 = vpop.permute.xlu0 %3193
      %3195 = vrot.lane.b32.xlu0 %v3142, 32
      %v3196 = vpop.permute.xlu0 %3195
      %3197 = vrot.lane.b32.xlu0 %v3149, 32
      %v3198 = vpop.permute.xlu0 %3197
      %3199 = vrot.lane.b32.xlu0 %v3156, 32
      %v3200 = vpop.permute.xlu0 %3199
      %3201 = vrot.lane.b32.xlu0 %v3163, 32
      %v3202 = vpop.permute.xlu0 %3201
      %3203 = vrot.lane.b32.xlu0 %v3170, 32
      %v3204 = vpop.permute.xlu0 %3203
      %3205 = vrot.lane.b32.xlu0 %v3177, 32
      %v3206 = vpop.permute.xlu0 %3205
      %3207 = vrot.lane.b32.xlu0 %v3184, 32
      %v3208 = vpop.permute.xlu0 %3207
      %v3210 = vunpack.c.l.s4 1983009808
      %v3211 = vunpack.c.0.s8 %v3210
      %v3212 = vlaneseq
      %v3213 = vshrl.u32 %v3212, 7
      %v3214 = vsub.s32 %v3211, %v3213
      %v3215 = vrot.slane %v2533, %v3214
      %v3217 = vunpack.c.l.s4 1983009808
      %v3218 = vunpack.c.0.s8 %v3217
      %v3219 = vlaneseq
      %v3220 = vshrl.u32 %v3219, 7
      %v3221 = vsub.s32 %v3218, %v3220
      %v3222 = vrot.slane %v2550, %v3221
      %v3224 = vunpack.c.l.s4 1983009808
      %v3225 = vunpack.c.0.s8 %v3224
      %v3226 = vlaneseq
      %v3227 = vshrl.u32 %v3226, 7
      %v3228 = vsub.s32 %v3225, %v3227
      %v3229 = vrot.slane %v2567, %v3228
      %v3231 = vunpack.c.l.s4 1983009808
      %v3232 = vunpack.c.0.s8 %v3231
      %v3233 = vlaneseq
      %v3234 = vshrl.u32 %v3233, 7
      %v3235 = vsub.s32 %v3232, %v3234
      %v3236 = vrot.slane %v2584, %v3235
      %3237 = vrot.lane.b32.xlu0 %v3030, 64
      %v3238 = vpop.permute.xlu0 %3237
      %3239 = vrot.lane.b32.xlu0 %v3037, 64
      %v3240 = vpop.permute.xlu0 %3239
      %3241 = vrot.lane.b32.xlu0 %v3215, 64
      %v3242 = vpop.permute.xlu0 %3241
      %3243 = vrot.lane.b32.xlu0 %v3051, 64
      %v3244 = vpop.permute.xlu0 %3243
      %3245 = vrot.lane.b32.xlu0 %v3058, 64
      %v3246 = vpop.permute.xlu0 %3245
      %3247 = vrot.lane.b32.xlu0 %v3222, 64
      %v3248 = vpop.permute.xlu0 %3247
      %3249 = vrot.lane.b32.xlu0 %v3072, 64
      %v3250 = vpop.permute.xlu0 %3249
      %3251 = vrot.lane.b32.xlu0 %v3079, 64
      %v3252 = vpop.permute.xlu0 %3251
      %3253 = vrot.lane.b32.xlu0 %v3229, 64
      %v3254 = vpop.permute.xlu0 %3253
      %3255 = vrot.lane.b32.xlu0 %v3093, 64
      %v3256 = vpop.permute.xlu0 %3255
      %3257 = vrot.lane.b32.xlu0 %v3100, 64
      %v3258 = vpop.permute.xlu0 %3257
      %3259 = vrot.lane.b32.xlu0 %v3236, 64
      %v3260 = vpop.permute.xlu0 %3259
      %v3262 = vshrl.u32 %v3215, 16
      %v3264 = vshll.u32 %v3215, 16
      %v3266 = vrot.slane %v3264, 1
      %v3267 = vor.u32 %v3262, %v3266
      %v3269 = vshrl.u32 %v3222, 16
      %v3271 = vshll.u32 %v3222, 16
      %v3273 = vrot.slane %v3271, 1
      %v3274 = vor.u32 %v3269, %v3273
      %v3276 = vshrl.u32 %v3229, 16
      %v3278 = vshll.u32 %v3229, 16
      %v3280 = vrot.slane %v3278, 1
      %v3281 = vor.u32 %v3276, %v3280
      %v3283 = vshrl.u32 %v3236, 16
      %v3285 = vshll.u32 %v3236, 16
      %v3287 = vrot.slane %v3285, 1
      %v3288 = vor.u32 %v3283, %v3287
      %3289 = vrot.lane.b32.xlu0 %v3114, 96
      %v3290 = vpop.permute.xlu0 %3289
      %3291 = vrot.lane.b32.xlu0 %v3121, 96
      %v3292 = vpop.permute.xlu0 %3291
      %3293 = vrot.lane.b32.xlu0 %v3267, 96
      %v3294 = vpop.permute.xlu0 %3293
      %3295 = vrot.lane.b32.xlu0 %v3135, 96
      %v3296 = vpop.permute.xlu0 %3295
      %3297 = vrot.lane.b32.xlu0 %v3142, 96
      %v3298 = vpop.permute.xlu0 %3297
      %3299 = vrot.lane.b32.xlu0 %v3274, 96
      %v3300 = vpop.permute.xlu0 %3299
      %3301 = vrot.lane.b32.xlu0 %v3156, 96
      %v3302 = vpop.permute.xlu0 %3301
      %3303 = vrot.lane.b32.xlu0 %v3163, 96
      %v3304 = vpop.permute.xlu0 %3303
      %3305 = vrot.lane.b32.xlu0 %v3281, 96
      %v3306 = vpop.permute.xlu0 %3305
      %3307 = vrot.lane.b32.xlu0 %v3177, 96
      %v3308 = vpop.permute.xlu0 %3307
      %3309 = vrot.lane.b32.xlu0 %v3184, 96
      %v3310 = vpop.permute.xlu0 %3309
      %3311 = vrot.lane.b32.xlu0 %v3288, 96
      %v3312 = vpop.permute.xlu0 %3311
      %v3314 = vunpack.c.l.s4 1983009808
      %v3315 = vunpack.c.0.s8 %v3314
      %v3316 = vlaneseq
      %v3317 = vshrl.u32 %v3316, 7
      %v3318 = vsub.s32 %v3315, %v3317
      %v3319 = vrot.slane %v2592, %v3318
      %v3321 = vunpack.c.l.s4 1983009808
      %v3322 = vunpack.c.0.s8 %v3321
      %v3323 = vlaneseq
      %v3324 = vshrl.u32 %v3323, 7
      %v3325 = vsub.s32 %v3322, %v3324
      %v3326 = vrot.slane %v2600, %v3325
      %v3328 = vunpack.c.l.s4 1983009808
      %v3329 = vunpack.c.0.s8 %v3328
      %v3330 = vlaneseq
      %v3331 = vshrl.u32 %v3330, 7
      %v3332 = vsub.s32 %v3329, %v3331
      %v3333 = vrot.slane %v2599, %v3332
      %v3335 = vunpack.c.l.s4 1983009808
      %v3336 = vunpack.c.0.s8 %v3335
      %v3337 = vlaneseq
      %v3338 = vshrl.u32 %v3337, 7
      %v3339 = vsub.s32 %v3336, %v3338
      %v3340 = vrot.slane %v2609, %v3339
      %v3342 = vunpack.c.l.s4 1983009808
      %v3343 = vunpack.c.0.s8 %v3342
      %v3344 = vlaneseq
      %v3345 = vshrl.u32 %v3344, 7
      %v3346 = vsub.s32 %v3343, %v3345
      %v3347 = vrot.slane %v2617, %v3346
      %v3349 = vunpack.c.l.s4 1983009808
      %v3350 = vunpack.c.0.s8 %v3349
      %v3351 = vlaneseq
      %v3352 = vshrl.u32 %v3351, 7
      %v3353 = vsub.s32 %v3350, %v3352
      %v3354 = vrot.slane %v2616, %v3353
      %v3356 = vunpack.c.l.s4 1983009808
      %v3357 = vunpack.c.0.s8 %v3356
      %v3358 = vlaneseq
      %v3359 = vshrl.u32 %v3358, 7
      %v3360 = vsub.s32 %v3357, %v3359
      %v3361 = vrot.slane %v2626, %v3360
      %v3363 = vunpack.c.l.s4 1983009808
      %v3364 = vunpack.c.0.s8 %v3363
      %v3365 = vlaneseq
      %v3366 = vshrl.u32 %v3365, 7
      %v3367 = vsub.s32 %v3364, %v3366
      %v3368 = vrot.slane %v2634, %v3367
      %v3370 = vunpack.c.l.s4 1983009808
      %v3371 = vunpack.c.0.s8 %v3370
      %v3372 = vlaneseq
      %v3373 = vshrl.u32 %v3372, 7
      %v3374 = vsub.s32 %v3371, %v3373
      %v3375 = vrot.slane %v2633, %v3374
      %v3377 = vunpack.c.l.s4 1983009808
      %v3378 = vunpack.c.0.s8 %v3377
      %v3379 = vlaneseq
      %v3380 = vshrl.u32 %v3379, 7
      %v3381 = vsub.s32 %v3378, %v3380
      %v3382 = vrot.slane %v2643, %v3381
      %v3384 = vunpack.c.l.s4 1983009808
      %v3385 = vunpack.c.0.s8 %v3384
      %v3386 = vlaneseq
      %v3387 = vshrl.u32 %v3386, 7
      %v3388 = vsub.s32 %v3385, %v3387
      %v3389 = vrot.slane %v2651, %v3388
      %v3391 = vunpack.c.l.s4 1983009808
      %v3392 = vunpack.c.0.s8 %v3391
      %v3393 = vlaneseq
      %v3394 = vshrl.u32 %v3393, 7
      %v3395 = vsub.s32 %v3392, %v3394
      %v3396 = vrot.slane %v2650, %v3395
      %v3398 = vshrl.u32 %v3319, 16
      %v3400 = vshll.u32 %v3319, 16
      %v3402 = vrot.slane %v3400, 1
      %v3403 = vor.u32 %v3398, %v3402
      %v3405 = vshrl.u32 %v3326, 16
      %v3407 = vshll.u32 %v3326, 16
      %v3409 = vrot.slane %v3407, 1
      %v3410 = vor.u32 %v3405, %v3409
      %v3412 = vshrl.u32 %v3333, 16
      %v3414 = vshll.u32 %v3333, 16
      %v3416 = vrot.slane %v3414, 1
      %v3417 = vor.u32 %v3412, %v3416
      %v3419 = vshrl.u32 %v3340, 16
      %v3421 = vshll.u32 %v3340, 16
      %v3423 = vrot.slane %v3421, 1
      %v3424 = vor.u32 %v3419, %v3423
      %v3426 = vshrl.u32 %v3347, 16
      %v3428 = vshll.u32 %v3347, 16
      %v3430 = vrot.slane %v3428, 1
      %v3431 = vor.u32 %v3426, %v3430
      %v3433 = vshrl.u32 %v3354, 16
      %v3435 = vshll.u32 %v3354, 16
      %v3437 = vrot.slane %v3435, 1
      %v3438 = vor.u32 %v3433, %v3437
      %v3440 = vshrl.u32 %v3361, 16
      %v3442 = vshll.u32 %v3361, 16
      %v3444 = vrot.slane %v3442, 1
      %v3445 = vor.u32 %v3440, %v3444
      %v3447 = vshrl.u32 %v3368, 16
      %v3449 = vshll.u32 %v3368, 16
      %v3451 = vrot.slane %v3449, 1
      %v3452 = vor.u32 %v3447, %v3451
      %v3454 = vshrl.u32 %v3375, 16
      %v3456 = vshll.u32 %v3375, 16
      %v3458 = vrot.slane %v3456, 1
      %v3459 = vor.u32 %v3454, %v3458
      %v3461 = vshrl.u32 %v3382, 16
      %v3463 = vshll.u32 %v3382, 16
      %v3465 = vrot.slane %v3463, 1
      %v3466 = vor.u32 %v3461, %v3465
      %v3468 = vshrl.u32 %v3389, 16
      %v3470 = vshll.u32 %v3389, 16
      %v3472 = vrot.slane %v3470, 1
      %v3473 = vor.u32 %v3468, %v3472
      %v3475 = vshrl.u32 %v3396, 16
      %v3477 = vshll.u32 %v3396, 16
      %v3479 = vrot.slane %v3477, 1
      %v3480 = vor.u32 %v3475, %v3479
      %3481 = vrot.lane.b32.xlu0 %v3403, 32
      %v3482 = vpop.permute.xlu0 %3481
      %3483 = vrot.lane.b32.xlu0 %v3410, 32
      %v3484 = vpop.permute.xlu0 %3483
      %3485 = vrot.lane.b32.xlu0 %v3417, 32
      %v3486 = vpop.permute.xlu0 %3485
      %3487 = vrot.lane.b32.xlu0 %v3424, 32
      %v3488 = vpop.permute.xlu0 %3487
      %3489 = vrot.lane.b32.xlu0 %v3431, 32
      %v3490 = vpop.permute.xlu0 %3489
      %3491 = vrot.lane.b32.xlu0 %v3438, 32
      %v3492 = vpop.permute.xlu0 %3491
      %3493 = vrot.lane.b32.xlu0 %v3445, 32
      %v3494 = vpop.permute.xlu0 %3493
      %3495 = vrot.lane.b32.xlu0 %v3452, 32
      %v3496 = vpop.permute.xlu0 %3495
      %3497 = vrot.lane.b32.xlu0 %v3459, 32
      %v3498 = vpop.permute.xlu0 %3497
      %3499 = vrot.lane.b32.xlu0 %v3466, 32
      %v3500 = vpop.permute.xlu0 %3499
      %3501 = vrot.lane.b32.xlu0 %v3473, 32
      %v3502 = vpop.permute.xlu0 %3501
      %3503 = vrot.lane.b32.xlu0 %v3480, 32
      %v3504 = vpop.permute.xlu0 %3503
      %v3506 = vunpack.c.l.s4 1983009808
      %v3507 = vunpack.c.0.s8 %v3506
      %v3508 = vlaneseq
      %v3509 = vshrl.u32 %v3508, 7
      %v3510 = vsub.s32 %v3507, %v3509
      %v3511 = vrot.slane %v2601, %v3510
      %v3513 = vunpack.c.l.s4 1983009808
      %v3514 = vunpack.c.0.s8 %v3513
      %v3515 = vlaneseq
      %v3516 = vshrl.u32 %v3515, 7
      %v3517 = vsub.s32 %v3514, %v3516
      %v3518 = vrot.slane %v2618, %v3517
      %v3520 = vunpack.c.l.s4 1983009808
      %v3521 = vunpack.c.0.s8 %v3520
      %v3522 = vlaneseq
      %v3523 = vshrl.u32 %v3522, 7
      %v3524 = vsub.s32 %v3521, %v3523
      %v3525 = vrot.slane %v2635, %v3524
      %v3527 = vunpack.c.l.s4 1983009808
      %v3528 = vunpack.c.0.s8 %v3527
      %v3529 = vlaneseq
      %v3530 = vshrl.u32 %v3529, 7
      %v3531 = vsub.s32 %v3528, %v3530
      %v3532 = vrot.slane %v2652, %v3531
      %3533 = vrot.lane.b32.xlu0 %v3326, 64
      %v3534 = vpop.permute.xlu0 %3533
      %3535 = vrot.lane.b32.xlu0 %v3333, 64
      %v3536 = vpop.permute.xlu0 %3535
      %3537 = vrot.lane.b32.xlu0 %v3511, 64
      %v3538 = vpop.permute.xlu0 %3537
      %3539 = vrot.lane.b32.xlu0 %v3347, 64
      %v3540 = vpop.permute.xlu0 %3539
      %3541 = vrot.lane.b32.xlu0 %v3354, 64
      %v3542 = vpop.permute.xlu0 %3541
      %3543 = vrot.lane.b32.xlu0 %v3518, 64
      %v3544 = vpop.permute.xlu0 %3543
      %3545 = vrot.lane.b32.xlu0 %v3368, 64
      %v3546 = vpop.permute.xlu0 %3545
      %3547 = vrot.lane.b32.xlu0 %v3375, 64
      %v3548 = vpop.permute.xlu0 %3547
      %3549 = vrot.lane.b32.xlu0 %v3525, 64
      %v3550 = vpop.permute.xlu0 %3549
      %3551 = vrot.lane.b32.xlu0 %v3389, 64
      %v3552 = vpop.permute.xlu0 %3551
      %3553 = vrot.lane.b32.xlu0 %v3396, 64
      %v3554 = vpop.permute.xlu0 %3553
      %3555 = vrot.lane.b32.xlu0 %v3532, 64
      %v3556 = vpop.permute.xlu0 %3555
      %v3558 = vshrl.u32 %v3511, 16
      %v3560 = vshll.u32 %v3511, 16
      %v3562 = vrot.slane %v3560, 1
      %v3563 = vor.u32 %v3558, %v3562
      %v3565 = vshrl.u32 %v3518, 16
      %v3567 = vshll.u32 %v3518, 16
      %v3569 = vrot.slane %v3567, 1
      %v3570 = vor.u32 %v3565, %v3569
      %v3572 = vshrl.u32 %v3525, 16
      %v3574 = vshll.u32 %v3525, 16
      %v3576 = vrot.slane %v3574, 1
      %v3577 = vor.u32 %v3572, %v3576
      %v3579 = vshrl.u32 %v3532, 16
      %v3581 = vshll.u32 %v3532, 16
      %v3583 = vrot.slane %v3581, 1
      %v3584 = vor.u32 %v3579, %v3583
      %3585 = vrot.lane.b32.xlu0 %v3410, 96
      %v3586 = vpop.permute.xlu0 %3585
      %3587 = vrot.lane.b32.xlu0 %v3417, 96
      %v3588 = vpop.permute.xlu0 %3587
      %3589 = vrot.lane.b32.xlu0 %v3563, 96
      %v3590 = vpop.permute.xlu0 %3589
      %3591 = vrot.lane.b32.xlu0 %v3431, 96
      %v3592 = vpop.permute.xlu0 %3591
      %3593 = vrot.lane.b32.xlu0 %v3438, 96
      %v3594 = vpop.permute.xlu0 %3593
      %3595 = vrot.lane.b32.xlu0 %v3570, 96
      %v3596 = vpop.permute.xlu0 %3595
      %3597 = vrot.lane.b32.xlu0 %v3452, 96
      %v3598 = vpop.permute.xlu0 %3597
      %3599 = vrot.lane.b32.xlu0 %v3459, 96
      %v3600 = vpop.permute.xlu0 %3599
      %3601 = vrot.lane.b32.xlu0 %v3577, 96
      %v3602 = vpop.permute.xlu0 %3601
      %3603 = vrot.lane.b32.xlu0 %v3473, 96
      %v3604 = vpop.permute.xlu0 %3603
      %3605 = vrot.lane.b32.xlu0 %v3480, 96
      %v3606 = vpop.permute.xlu0 %3605
      %3607 = vrot.lane.b32.xlu0 %v3584, 96
      %v3608 = vpop.permute.xlu0 %3607
      %v3610 = vunpack.c.l.s4 1983009808
      %v3611 = vunpack.c.0.s8 %v3610
      %v3612 = vlaneseq
      %v3613 = vshrl.u32 %v3612, 7
      %v3614 = vsub.s32 %v3611, %v3613
      %v3615 = vrot.slane %v2660, %v3614
      %v3617 = vunpack.c.l.s4 1983009808
      %v3618 = vunpack.c.0.s8 %v3617
      %v3619 = vlaneseq
      %v3620 = vshrl.u32 %v3619, 7
      %v3621 = vsub.s32 %v3618, %v3620
      %v3622 = vrot.slane %v2668, %v3621
      %v3624 = vunpack.c.l.s4 1983009808
      %v3625 = vunpack.c.0.s8 %v3624
      %v3626 = vlaneseq
      %v3627 = vshrl.u32 %v3626, 7
      %v3628 = vsub.s32 %v3625, %v3627
      %v3629 = vrot.slane %v2667, %v3628
      %v3631 = vunpack.c.l.s4 1983009808
      %v3632 = vunpack.c.0.s8 %v3631
      %v3633 = vlaneseq
      %v3634 = vshrl.u32 %v3633, 7
      %v3635 = vsub.s32 %v3632, %v3634
      %v3636 = vrot.slane %v2677, %v3635
      %v3638 = vunpack.c.l.s4 1983009808
      %v3639 = vunpack.c.0.s8 %v3638
      %v3640 = vlaneseq
      %v3641 = vshrl.u32 %v3640, 7
      %v3642 = vsub.s32 %v3639, %v3641
      %v3643 = vrot.slane %v2685, %v3642
      %v3645 = vunpack.c.l.s4 1983009808
      %v3646 = vunpack.c.0.s8 %v3645
      %v3647 = vlaneseq
      %v3648 = vshrl.u32 %v3647, 7
      %v3649 = vsub.s32 %v3646, %v3648
      %v3650 = vrot.slane %v2684, %v3649
      %v3652 = vunpack.c.l.s4 1983009808
      %v3653 = vunpack.c.0.s8 %v3652
      %v3654 = vlaneseq
      %v3655 = vshrl.u32 %v3654, 7
      %v3656 = vsub.s32 %v3653, %v3655
      %v3657 = vrot.slane %v2694, %v3656
      %v3659 = vunpack.c.l.s4 1983009808
      %v3660 = vunpack.c.0.s8 %v3659
      %v3661 = vlaneseq
      %v3662 = vshrl.u32 %v3661, 7
      %v3663 = vsub.s32 %v3660, %v3662
      %v3664 = vrot.slane %v2702, %v3663
      %v3666 = vunpack.c.l.s4 1983009808
      %v3667 = vunpack.c.0.s8 %v3666
      %v3668 = vlaneseq
      %v3669 = vshrl.u32 %v3668, 7
      %v3670 = vsub.s32 %v3667, %v3669
      %v3671 = vrot.slane %v2701, %v3670
      %v3673 = vunpack.c.l.s4 1983009808
      %v3674 = vunpack.c.0.s8 %v3673
      %v3675 = vlaneseq
      %v3676 = vshrl.u32 %v3675, 7
      %v3677 = vsub.s32 %v3674, %v3676
      %v3678 = vrot.slane %v2711, %v3677
      %v3680 = vunpack.c.l.s4 1983009808
      %v3681 = vunpack.c.0.s8 %v3680
      %v3682 = vlaneseq
      %v3683 = vshrl.u32 %v3682, 7
      %v3684 = vsub.s32 %v3681, %v3683
      %v3685 = vrot.slane %v2719, %v3684
      %v3687 = vunpack.c.l.s4 1983009808
      %v3688 = vunpack.c.0.s8 %v3687
      %v3689 = vlaneseq
      %v3690 = vshrl.u32 %v3689, 7
      %v3691 = vsub.s32 %v3688, %v3690
      %v3692 = vrot.slane %v2718, %v3691
      %v3694 = vshrl.u32 %v3615, 16
      %v3696 = vshll.u32 %v3615, 16
      %v3698 = vrot.slane %v3696, 1
      %v3699 = vor.u32 %v3694, %v3698
      %v3701 = vshrl.u32 %v3622, 16
      %v3703 = vshll.u32 %v3622, 16
      %v3705 = vrot.slane %v3703, 1
      %v3706 = vor.u32 %v3701, %v3705
      %v3708 = vshrl.u32 %v3629, 16
      %v3710 = vshll.u32 %v3629, 16
      %v3712 = vrot.slane %v3710, 1
      %v3713 = vor.u32 %v3708, %v3712
      %v3715 = vshrl.u32 %v3636, 16
      %v3717 = vshll.u32 %v3636, 16
      %v3719 = vrot.slane %v3717, 1
      %v3720 = vor.u32 %v3715, %v3719
      %v3722 = vshrl.u32 %v3643, 16
      %v3724 = vshll.u32 %v3643, 16
      %v3726 = vrot.slane %v3724, 1
      %v3727 = vor.u32 %v3722, %v3726
      %v3729 = vshrl.u32 %v3650, 16
      %v3731 = vshll.u32 %v3650, 16
      %v3733 = vrot.slane %v3731, 1
      %v3734 = vor.u32 %v3729, %v3733
      %v3736 = vshrl.u32 %v3657, 16
      %v3738 = vshll.u32 %v3657, 16
      %v3740 = vrot.slane %v3738, 1
      %v3741 = vor.u32 %v3736, %v3740
      %v3743 = vshrl.u32 %v3664, 16
      %v3745 = vshll.u32 %v3664, 16
      %v3747 = vrot.slane %v3745, 1
      %v3748 = vor.u32 %v3743, %v3747
      %v3750 = vshrl.u32 %v3671, 16
      %v3752 = vshll.u32 %v3671, 16
      %v3754 = vrot.slane %v3752, 1
      %v3755 = vor.u32 %v3750, %v3754
      %v3757 = vshrl.u32 %v3678, 16
      %v3759 = vshll.u32 %v3678, 16
      %v3761 = vrot.slane %v3759, 1
      %v3762 = vor.u32 %v3757, %v3761
      %v3764 = vshrl.u32 %v3685, 16
      %v3766 = vshll.u32 %v3685, 16
      %v3768 = vrot.slane %v3766, 1
      %v3769 = vor.u32 %v3764, %v3768
      %v3771 = vshrl.u32 %v3692, 16
      %v3773 = vshll.u32 %v3692, 16
      %v3775 = vrot.slane %v3773, 1
      %v3776 = vor.u32 %v3771, %v3775
      %3777 = vrot.lane.b32.xlu0 %v3699, 32
      %v3778 = vpop.permute.xlu0 %3777
      %3779 = vrot.lane.b32.xlu0 %v3706, 32
      %v3780 = vpop.permute.xlu0 %3779
      %3781 = vrot.lane.b32.xlu0 %v3713, 32
      %v3782 = vpop.permute.xlu0 %3781
      %3783 = vrot.lane.b32.xlu0 %v3720, 32
      %v3784 = vpop.permute.xlu0 %3783
      %3785 = vrot.lane.b32.xlu0 %v3727, 32
      %v3786 = vpop.permute.xlu0 %3785
      %3787 = vrot.lane.b32.xlu0 %v3734, 32
      %v3788 = vpop.permute.xlu0 %3787
      %3789 = vrot.lane.b32.xlu0 %v3741, 32
      %v3790 = vpop.permute.xlu0 %3789
      %3791 = vrot.lane.b32.xlu0 %v3748, 32
      %v3792 = vpop.permute.xlu0 %3791
      %3793 = vrot.lane.b32.xlu0 %v3755, 32
      %v3794 = vpop.permute.xlu0 %3793
      %3795 = vrot.lane.b32.xlu0 %v3762, 32
      %v3796 = vpop.permute.xlu0 %3795
      %3797 = vrot.lane.b32.xlu0 %v3769, 32
      %v3798 = vpop.permute.xlu0 %3797
      %3799 = vrot.lane.b32.xlu0 %v3776, 32
      %v3800 = vpop.permute.xlu0 %3799
      %v3802 = vunpack.c.l.s4 1983009808
      %v3803 = vunpack.c.0.s8 %v3802
      %v3804 = vlaneseq
      %v3805 = vshrl.u32 %v3804, 7
      %v3806 = vsub.s32 %v3803, %v3805
      %v3807 = vrot.slane %v2669, %v3806
      %v3809 = vunpack.c.l.s4 1983009808
      %v3810 = vunpack.c.0.s8 %v3809
      %v3811 = vlaneseq
      %v3812 = vshrl.u32 %v3811, 7
      %v3813 = vsub.s32 %v3810, %v3812
      %v3814 = vrot.slane %v2686, %v3813
      %v3816 = vunpack.c.l.s4 1983009808
      %v3817 = vunpack.c.0.s8 %v3816
      %v3818 = vlaneseq
      %v3819 = vshrl.u32 %v3818, 7
      %v3820 = vsub.s32 %v3817, %v3819
      %v3821 = vrot.slane %v2703, %v3820
      %v3823 = vunpack.c.l.s4 1983009808
      %v3824 = vunpack.c.0.s8 %v3823
      %v3825 = vlaneseq
      %v3826 = vshrl.u32 %v3825, 7
      %v3827 = vsub.s32 %v3824, %v3826
      %v3828 = vrot.slane %v2720, %v3827
      %3829 = vrot.lane.b32.xlu0 %v3622, 64
      %v3830 = vpop.permute.xlu0 %3829
      %3831 = vrot.lane.b32.xlu0 %v3629, 64
      %v3832 = vpop.permute.xlu0 %3831
      %3833 = vrot.lane.b32.xlu0 %v3807, 64
      %v3834 = vpop.permute.xlu0 %3833
      %3835 = vrot.lane.b32.xlu0 %v3643, 64
      %v3836 = vpop.permute.xlu0 %3835
      %3837 = vrot.lane.b32.xlu0 %v3650, 64
      %v3838 = vpop.permute.xlu0 %3837
      %3839 = vrot.lane.b32.xlu0 %v3814, 64
      %v3840 = vpop.permute.xlu0 %3839
      %3841 = vrot.lane.b32.xlu0 %v3664, 64
      %v3842 = vpop.permute.xlu0 %3841
      %3843 = vrot.lane.b32.xlu0 %v3671, 64
      %v3844 = vpop.permute.xlu0 %3843
      %3845 = vrot.lane.b32.xlu0 %v3821, 64
      %v3846 = vpop.permute.xlu0 %3845
      %3847 = vrot.lane.b32.xlu0 %v3685, 64
      %v3848 = vpop.permute.xlu0 %3847
      %3849 = vrot.lane.b32.xlu0 %v3692, 64
      %v3850 = vpop.permute.xlu0 %3849
      %3851 = vrot.lane.b32.xlu0 %v3828, 64
      %v3852 = vpop.permute.xlu0 %3851
      %v3854 = vshrl.u32 %v3807, 16
      %v3856 = vshll.u32 %v3807, 16
      %v3858 = vrot.slane %v3856, 1
      %v3859 = vor.u32 %v3854, %v3858
      %v3861 = vshrl.u32 %v3814, 16
      %v3863 = vshll.u32 %v3814, 16
      %v3865 = vrot.slane %v3863, 1
      %v3866 = vor.u32 %v3861, %v3865
      %v3868 = vshrl.u32 %v3821, 16
      %v3870 = vshll.u32 %v3821, 16
      %v3872 = vrot.slane %v3870, 1
      %v3873 = vor.u32 %v3868, %v3872
      %v3875 = vshrl.u32 %v3828, 16
      %v3877 = vshll.u32 %v3828, 16
      %v3879 = vrot.slane %v3877, 1
      %v3880 = vor.u32 %v3875, %v3879
      %3881 = vrot.lane.b32.xlu0 %v3706, 96
      %v3882 = vpop.permute.xlu0 %3881
      %3883 = vrot.lane.b32.xlu0 %v3713, 96
      %v3884 = vpop.permute.xlu0 %3883
      %3885 = vrot.lane.b32.xlu0 %v3859, 96
      %v3886 = vpop.permute.xlu0 %3885
      %3887 = vrot.lane.b32.xlu0 %v3727, 96
      %v3888 = vpop.permute.xlu0 %3887
      %3889 = vrot.lane.b32.xlu0 %v3734, 96
      %v3890 = vpop.permute.xlu0 %3889
      %3891 = vrot.lane.b32.xlu0 %v3866, 96
      %v3892 = vpop.permute.xlu0 %3891
      %3893 = vrot.lane.b32.xlu0 %v3748, 96
      %v3894 = vpop.permute.xlu0 %3893
      %3895 = vrot.lane.b32.xlu0 %v3755, 96
      %v3896 = vpop.permute.xlu0 %3895
      %3897 = vrot.lane.b32.xlu0 %v3873, 96
      %v3898 = vpop.permute.xlu0 %3897
      %3899 = vrot.lane.b32.xlu0 %v3769, 96
      %v3900 = vpop.permute.xlu0 %3899
      %3901 = vrot.lane.b32.xlu0 %v3776, 96
      %v3902 = vpop.permute.xlu0 %3901
      %3903 = vrot.lane.b32.xlu0 %v3880, 96
      %v3904 = vpop.permute.xlu0 %3903
      %vm3905 = vcmask 261120
      %v3908 = vsel %vm3905, %v2456, %v2890
      %v3911 = vsel %vm3905, %v2464, %v2892
      %v3914 = vsel %vm3905, %v2463, %v2894
      %v3917 = vsel %vm3905, %v2473, %v2896
      %v3920 = vsel %vm3905, %v2481, %v2898
      %v3923 = vsel %vm3905, %v2480, %v2900
      %v3926 = vsel %vm3905, %v2490, %v2902
      %v3929 = vsel %vm3905, %v2498, %v2904
      %v3932 = vsel %vm3905, %v2497, %v2906
      %v3935 = vsel %vm3905, %v2507, %v2908
      %v3938 = vsel %vm3905, %v2515, %v2910
      %v3941 = vsel %vm3905, %v2514, %v2912
      %v3943 = vsel %vm516, %v3908, %v2942
      %v3945 = vsel %vm516, %v3911, %v2944
      %v3947 = vsel %vm516, %v3914, %v2946
      %v3949 = vsel %vm516, %v3917, %v2948
      %v3951 = vsel %vm516, %v3920, %v2950
      %v3953 = vsel %vm516, %v3923, %v2952
      %v3955 = vsel %vm516, %v3926, %v2954
      %v3957 = vsel %vm516, %v3929, %v2956
      %v3959 = vsel %vm516, %v3932, %v2958
      %v3961 = vsel %vm516, %v3935, %v2960
      %v3963 = vsel %vm516, %v3938, %v2962
      %v3965 = vsel %vm516, %v3941, %v2964
      %vm3966 = vcmask 785408
      %v3968 = vsel %vm3966, %v3943, %v2994
      %v3970 = vsel %vm3966, %v3945, %v2996
      %v3972 = vsel %vm3966, %v3947, %v2998
      %v3974 = vsel %vm3966, %v3949, %v3000
      %v3976 = vsel %vm3966, %v3951, %v3002
      %v3978 = vsel %vm3966, %v3953, %v3004
      %v3980 = vsel %vm3966, %v3955, %v3006
      %v3982 = vsel %vm3966, %v3957, %v3008
      %v3984 = vsel %vm3966, %v3959, %v3010
      %v3986 = vsel %vm3966, %v3961, %v3012
      %v3988 = vsel %vm3966, %v3963, %v3014
      %v3990 = vsel %vm3966, %v3965, %v3016
      %v3993 = vsel %vm3905, %v2524, %v3186
      %v3996 = vsel %vm3905, %v2532, %v3188
      %v3999 = vsel %vm3905, %v2531, %v3190
      %v4002 = vsel %vm3905, %v2541, %v3192
      %v4005 = vsel %vm3905, %v2549, %v3194
      %v4008 = vsel %vm3905, %v2548, %v3196
      %v4011 = vsel %vm3905, %v2558, %v3198
      %v4014 = vsel %vm3905, %v2566, %v3200
      %v4017 = vsel %vm3905, %v2565, %v3202
      %v4020 = vsel %vm3905, %v2575, %v3204
      %v4023 = vsel %vm3905, %v2583, %v3206
      %v4026 = vsel %vm3905, %v2582, %v3208
      %v4028 = vsel %vm516, %v3993, %v3238
      %v4030 = vsel %vm516, %v3996, %v3240
      %v4032 = vsel %vm516, %v3999, %v3242
      %v4034 = vsel %vm516, %v4002, %v3244
      %v4036 = vsel %vm516, %v4005, %v3246
      %v4038 = vsel %vm516, %v4008, %v3248
      %v4040 = vsel %vm516, %v4011, %v3250
      %v4042 = vsel %vm516, %v4014, %v3252
      %v4044 = vsel %vm516, %v4017, %v3254
      %v4046 = vsel %vm516, %v4020, %v3256
      %v4048 = vsel %vm516, %v4023, %v3258
      %v4050 = vsel %vm516, %v4026, %v3260
      %v4052 = vsel %vm3966, %v4028, %v3290
      %v4054 = vsel %vm3966, %v4030, %v3292
      %v4056 = vsel %vm3966, %v4032, %v3294
      %v4058 = vsel %vm3966, %v4034, %v3296
      %v4060 = vsel %vm3966, %v4036, %v3298
      %v4062 = vsel %vm3966, %v4038, %v3300
      %v4064 = vsel %vm3966, %v4040, %v3302
      %v4066 = vsel %vm3966, %v4042, %v3304
      %v4068 = vsel %vm3966, %v4044, %v3306
      %v4070 = vsel %vm3966, %v4046, %v3308
      %v4072 = vsel %vm3966, %v4048, %v3310
      %v4074 = vsel %vm3966, %v4050, %v3312
      %v4077 = vsel %vm3905, %v2592, %v3482
      %v4080 = vsel %vm3905, %v2600, %v3484
      %v4083 = vsel %vm3905, %v2599, %v3486
      %v4086 = vsel %vm3905, %v2609, %v3488
      %v4089 = vsel %vm3905, %v2617, %v3490
      %v4092 = vsel %vm3905, %v2616, %v3492
      %v4095 = vsel %vm3905, %v2626, %v3494
      %v4098 = vsel %vm3905, %v2634, %v3496
      %v4101 = vsel %vm3905, %v2633, %v3498
      %v4104 = vsel %vm3905, %v2643, %v3500
      %v4107 = vsel %vm3905, %v2651, %v3502
      %v4110 = vsel %vm3905, %v2650, %v3504
      %v4112 = vsel %vm516, %v4077, %v3534
      %v4114 = vsel %vm516, %v4080, %v3536
      %v4116 = vsel %vm516, %v4083, %v3538
      %v4118 = vsel %vm516, %v4086, %v3540
      %v4120 = vsel %vm516, %v4089, %v3542
      %v4122 = vsel %vm516, %v4092, %v3544
      %v4124 = vsel %vm516, %v4095, %v3546
      %v4126 = vsel %vm516, %v4098, %v3548
      %v4128 = vsel %vm516, %v4101, %v3550
      %v4130 = vsel %vm516, %v4104, %v3552
      %v4132 = vsel %vm516, %v4107, %v3554
      %v4134 = vsel %vm516, %v4110, %v3556
      %v4136 = vsel %vm3966, %v4112, %v3586
      %v4138 = vsel %vm3966, %v4114, %v3588
      %v4140 = vsel %vm3966, %v4116, %v3590
      %v4142 = vsel %vm3966, %v4118, %v3592
      %v4144 = vsel %vm3966, %v4120, %v3594
      %v4146 = vsel %vm3966, %v4122, %v3596
      %v4148 = vsel %vm3966, %v4124, %v3598
      %v4150 = vsel %vm3966, %v4126, %v3600
      %v4152 = vsel %vm3966, %v4128, %v3602
      %v4154 = vsel %vm3966, %v4130, %v3604
      %v4156 = vsel %vm3966, %v4132, %v3606
      %v4158 = vsel %vm3966, %v4134, %v3608
      %v4161 = vsel %vm3905, %v2660, %v3778
      %v4164 = vsel %vm3905, %v2668, %v3780
      %v4167 = vsel %vm3905, %v2667, %v3782
      %v4170 = vsel %vm3905, %v2677, %v3784
      %v4173 = vsel %vm3905, %v2685, %v3786
      %v4176 = vsel %vm3905, %v2684, %v3788
      %v4179 = vsel %vm3905, %v2694, %v3790
      %v4182 = vsel %vm3905, %v2702, %v3792
      %v4185 = vsel %vm3905, %v2701, %v3794
      %v4188 = vsel %vm3905, %v2711, %v3796
      %v4191 = vsel %vm3905, %v2719, %v3798
      %v4194 = vsel %vm3905, %v2718, %v3800
      %v4196 = vsel %vm516, %v4161, %v3830
      %v4198 = vsel %vm516, %v4164, %v3832
      %v4200 = vsel %vm516, %v4167, %v3834
      %v4202 = vsel %vm516, %v4170, %v3836
      %v4204 = vsel %vm516, %v4173, %v3838
      %v4206 = vsel %vm516, %v4176, %v3840
      %v4208 = vsel %vm516, %v4179, %v3842
      %v4210 = vsel %vm516, %v4182, %v3844
      %v4212 = vsel %vm516, %v4185, %v3846
      %v4214 = vsel %vm516, %v4188, %v3848
      %v4216 = vsel %vm516, %v4191, %v3850
      %v4218 = vsel %vm516, %v4194, %v3852
      %v4220 = vsel %vm3966, %v4196, %v3882
      %v4222 = vsel %vm3966, %v4198, %v3884
      %v4224 = vsel %vm3966, %v4200, %v3886
      %v4226 = vsel %vm3966, %v4202, %v3888
      %v4228 = vsel %vm3966, %v4204, %v3890
      %v4230 = vsel %vm3966, %v4206, %v3892
      %v4232 = vsel %vm3966, %v4208, %v3894
      %v4234 = vsel %vm3966, %v4210, %v3896
      %v4236 = vsel %vm3966, %v4212, %v3898
      %v4238 = vsel %vm3966, %v4214, %v3900
      %v4240 = vsel %vm3966, %v4216, %v3902
      %v4242 = vsel %vm3966, %v4218, %v3904
      %v4291 = vcombine.low %v3968, %v4052
      %v4292 = vcombine.low %v4136, %v4220
      %v4294 = vunpack.c.l.s4 1966171168
      %v4295 = vunpack.c.0.s8 %v4294
      %v4296 = vlaneseq
      %v4297 = vshrl.u32 %v4296, 7
      %v4298 = vsub.s32 %v4295, %v4297
      %v4299 = vrot.slane %v4291, %v4298
      %v4301 = vunpack.c.l.s4 1966171168
      %v4302 = vunpack.c.0.s8 %v4301
      %v4303 = vlaneseq
      %v4304 = vshrl.u32 %v4303, 7
      %v4305 = vsub.s32 %v4302, %v4304
      %v4306 = vrot.slane %v4292, %v4305
      %v4307 = vcombine.low %v4299, %v4306
      %v4308 = vcombine.high %v4299, %v4306
      %v4310 = vunpack.c.l.s4 1966171168
      %v4311 = vunpack.c.0.s8 %v4310
      %v4312 = vlaneseq
      %v4313 = vshrl.u32 %v4312, 7
      %v4314 = vsub.s32 %v4311, %v4313
      %v4315 = vrot.slane %v4307, %v4314
      %v4317 = vunpack.c.l.s4 1966171168
      %v4318 = vunpack.c.0.s8 %v4317
      %v4319 = vlaneseq
      %v4320 = vshrl.u32 %v4319, 7
      %v4321 = vsub.s32 %v4318, %v4320
      %v4322 = vrot.slane %v4308, %v4321
      %v4323 = vcombine.low %v3970, %v4054
      %v4324 = vcombine.low %v4138, %v4222
      %v4326 = vunpack.c.l.s4 1966171168
      %v4327 = vunpack.c.0.s8 %v4326
      %v4328 = vlaneseq
      %v4329 = vshrl.u32 %v4328, 7
      %v4330 = vsub.s32 %v4327, %v4329
      %v4331 = vrot.slane %v4323, %v4330
      %v4333 = vunpack.c.l.s4 1966171168
      %v4334 = vunpack.c.0.s8 %v4333
      %v4335 = vlaneseq
      %v4336 = vshrl.u32 %v4335, 7
      %v4337 = vsub.s32 %v4334, %v4336
      %v4338 = vrot.slane %v4324, %v4337
      %v4339 = vcombine.low %v4331, %v4338
      %v4340 = vcombine.high %v4331, %v4338
      %v4342 = vunpack.c.l.s4 1966171168
      %v4343 = vunpack.c.0.s8 %v4342
      %v4344 = vlaneseq
      %v4345 = vshrl.u32 %v4344, 7
      %v4346 = vsub.s32 %v4343, %v4345
      %v4347 = vrot.slane %v4339, %v4346
      %v4349 = vunpack.c.l.s4 1966171168
      %v4350 = vunpack.c.0.s8 %v4349
      %v4351 = vlaneseq
      %v4352 = vshrl.u32 %v4351, 7
      %v4353 = vsub.s32 %v4350, %v4352
      %v4354 = vrot.slane %v4340, %v4353
      %v4355 = vcombine.low %v3972, %v4056
      %v4356 = vcombine.low %v4140, %v4224
      %v4358 = vunpack.c.l.s4 1966171168
      %v4359 = vunpack.c.0.s8 %v4358
      %v4360 = vlaneseq
      %v4361 = vshrl.u32 %v4360, 7
      %v4362 = vsub.s32 %v4359, %v4361
      %v4363 = vrot.slane %v4355, %v4362
      %v4365 = vunpack.c.l.s4 1966171168
      %v4366 = vunpack.c.0.s8 %v4365
      %v4367 = vlaneseq
      %v4368 = vshrl.u32 %v4367, 7
      %v4369 = vsub.s32 %v4366, %v4368
      %v4370 = vrot.slane %v4356, %v4369
      %v4371 = vcombine.low %v4363, %v4370
      %v4372 = vcombine.high %v4363, %v4370
      %v4374 = vunpack.c.l.s4 1966171168
      %v4375 = vunpack.c.0.s8 %v4374
      %v4376 = vlaneseq
      %v4377 = vshrl.u32 %v4376, 7
      %v4378 = vsub.s32 %v4375, %v4377
      %v4379 = vrot.slane %v4371, %v4378
      %v4381 = vunpack.c.l.s4 1966171168
      %v4382 = vunpack.c.0.s8 %v4381
      %v4383 = vlaneseq
      %v4384 = vshrl.u32 %v4383, 7
      %v4385 = vsub.s32 %v4382, %v4384
      %v4386 = vrot.slane %v4372, %v4385
      %v4387 = vcombine.low %v3974, %v4058
      %v4388 = vcombine.low %v4142, %v4226
      %v4390 = vunpack.c.l.s4 1966171168
      %v4391 = vunpack.c.0.s8 %v4390
      %v4392 = vlaneseq
      %v4393 = vshrl.u32 %v4392, 7
      %v4394 = vsub.s32 %v4391, %v4393
      %v4395 = vrot.slane %v4387, %v4394
      %v4397 = vunpack.c.l.s4 1966171168
      %v4398 = vunpack.c.0.s8 %v4397
      %v4399 = vlaneseq
      %v4400 = vshrl.u32 %v4399, 7
      %v4401 = vsub.s32 %v4398, %v4400
      %v4402 = vrot.slane %v4388, %v4401
      %v4403 = vcombine.low %v4395, %v4402
      %v4404 = vcombine.high %v4395, %v4402
      %v4406 = vunpack.c.l.s4 1966171168
      %v4407 = vunpack.c.0.s8 %v4406
      %v4408 = vlaneseq
      %v4409 = vshrl.u32 %v4408, 7
      %v4410 = vsub.s32 %v4407, %v4409
      %v4411 = vrot.slane %v4403, %v4410
      %v4413 = vunpack.c.l.s4 1966171168
      %v4414 = vunpack.c.0.s8 %v4413
      %v4415 = vlaneseq
      %v4416 = vshrl.u32 %v4415, 7
      %v4417 = vsub.s32 %v4414, %v4416
      %v4418 = vrot.slane %v4404, %v4417
      %v4419 = vcombine.low %v3976, %v4060
      %v4420 = vcombine.low %v4144, %v4228
      %v4422 = vunpack.c.l.s4 1966171168
      %v4423 = vunpack.c.0.s8 %v4422
      %v4424 = vlaneseq
      %v4425 = vshrl.u32 %v4424, 7
      %v4426 = vsub.s32 %v4423, %v4425
      %v4427 = vrot.slane %v4419, %v4426
      %v4429 = vunpack.c.l.s4 1966171168
      %v4430 = vunpack.c.0.s8 %v4429
      %v4431 = vlaneseq
      %v4432 = vshrl.u32 %v4431, 7
      %v4433 = vsub.s32 %v4430, %v4432
      %v4434 = vrot.slane %v4420, %v4433
      %v4435 = vcombine.low %v4427, %v4434
      %v4436 = vcombine.high %v4427, %v4434
      %v4438 = vunpack.c.l.s4 1966171168
      %v4439 = vunpack.c.0.s8 %v4438
      %v4440 = vlaneseq
      %v4441 = vshrl.u32 %v4440, 7
      %v4442 = vsub.s32 %v4439, %v4441
      %v4443 = vrot.slane %v4435, %v4442
      %v4445 = vunpack.c.l.s4 1966171168
      %v4446 = vunpack.c.0.s8 %v4445
      %v4447 = vlaneseq
      %v4448 = vshrl.u32 %v4447, 7
      %v4449 = vsub.s32 %v4446, %v4448
      %v4450 = vrot.slane %v4436, %v4449
      %v4451 = vcombine.low %v3978, %v4062
      %v4452 = vcombine.low %v4146, %v4230
      %v4454 = vunpack.c.l.s4 1966171168
      %v4455 = vunpack.c.0.s8 %v4454
      %v4456 = vlaneseq
      %v4457 = vshrl.u32 %v4456, 7
      %v4458 = vsub.s32 %v4455, %v4457
      %v4459 = vrot.slane %v4451, %v4458
      %v4461 = vunpack.c.l.s4 1966171168
      %v4462 = vunpack.c.0.s8 %v4461
      %v4463 = vlaneseq
      %v4464 = vshrl.u32 %v4463, 7
      %v4465 = vsub.s32 %v4462, %v4464
      %v4466 = vrot.slane %v4452, %v4465
      %v4467 = vcombine.low %v4459, %v4466
      %v4468 = vcombine.high %v4459, %v4466
      %v4470 = vunpack.c.l.s4 1966171168
      %v4471 = vunpack.c.0.s8 %v4470
      %v4472 = vlaneseq
      %v4473 = vshrl.u32 %v4472, 7
      %v4474 = vsub.s32 %v4471, %v4473
      %v4475 = vrot.slane %v4467, %v4474
      %v4477 = vunpack.c.l.s4 1966171168
      %v4478 = vunpack.c.0.s8 %v4477
      %v4479 = vlaneseq
      %v4480 = vshrl.u32 %v4479, 7
      %v4481 = vsub.s32 %v4478, %v4480
      %v4482 = vrot.slane %v4468, %v4481
      %v4483 = vcombine.low %v3980, %v4064
      %v4484 = vcombine.low %v4148, %v4232
      %v4486 = vunpack.c.l.s4 1966171168
      %v4487 = vunpack.c.0.s8 %v4486
      %v4488 = vlaneseq
      %v4489 = vshrl.u32 %v4488, 7
      %v4490 = vsub.s32 %v4487, %v4489
      %v4491 = vrot.slane %v4483, %v4490
      %v4493 = vunpack.c.l.s4 1966171168
      %v4494 = vunpack.c.0.s8 %v4493
      %v4495 = vlaneseq
      %v4496 = vshrl.u32 %v4495, 7
      %v4497 = vsub.s32 %v4494, %v4496
      %v4498 = vrot.slane %v4484, %v4497
      %v4499 = vcombine.low %v4491, %v4498
      %v4500 = vcombine.high %v4491, %v4498
      %v4502 = vunpack.c.l.s4 1966171168
      %v4503 = vunpack.c.0.s8 %v4502
      %v4504 = vlaneseq
      %v4505 = vshrl.u32 %v4504, 7
      %v4506 = vsub.s32 %v4503, %v4505
      %v4507 = vrot.slane %v4499, %v4506
      %v4509 = vunpack.c.l.s4 1966171168
      %v4510 = vunpack.c.0.s8 %v4509
      %v4511 = vlaneseq
      %v4512 = vshrl.u32 %v4511, 7
      %v4513 = vsub.s32 %v4510, %v4512
      %v4514 = vrot.slane %v4500, %v4513
      %v4515 = vcombine.low %v3982, %v4066
      %v4516 = vcombine.low %v4150, %v4234
      %v4518 = vunpack.c.l.s4 1966171168
      %v4519 = vunpack.c.0.s8 %v4518
      %v4520 = vlaneseq
      %v4521 = vshrl.u32 %v4520, 7
      %v4522 = vsub.s32 %v4519, %v4521
      %v4523 = vrot.slane %v4515, %v4522
      %v4525 = vunpack.c.l.s4 1966171168
      %v4526 = vunpack.c.0.s8 %v4525
      %v4527 = vlaneseq
      %v4528 = vshrl.u32 %v4527, 7
      %v4529 = vsub.s32 %v4526, %v4528
      %v4530 = vrot.slane %v4516, %v4529
      %v4531 = vcombine.low %v4523, %v4530
      %v4532 = vcombine.high %v4523, %v4530
      %v4534 = vunpack.c.l.s4 1966171168
      %v4535 = vunpack.c.0.s8 %v4534
      %v4536 = vlaneseq
      %v4537 = vshrl.u32 %v4536, 7
      %v4538 = vsub.s32 %v4535, %v4537
      %v4539 = vrot.slane %v4531, %v4538
      %v4541 = vunpack.c.l.s4 1966171168
      %v4542 = vunpack.c.0.s8 %v4541
      %v4543 = vlaneseq
      %v4544 = vshrl.u32 %v4543, 7
      %v4545 = vsub.s32 %v4542, %v4544
      %v4546 = vrot.slane %v4532, %v4545
      %v4547 = vcombine.low %v3984, %v4068
      %v4548 = vcombine.low %v4152, %v4236
      %v4550 = vunpack.c.l.s4 1966171168
      %v4551 = vunpack.c.0.s8 %v4550
      %v4552 = vlaneseq
      %v4553 = vshrl.u32 %v4552, 7
      %v4554 = vsub.s32 %v4551, %v4553
      %v4555 = vrot.slane %v4547, %v4554
      %v4557 = vunpack.c.l.s4 1966171168
      %v4558 = vunpack.c.0.s8 %v4557
      %v4559 = vlaneseq
      %v4560 = vshrl.u32 %v4559, 7
      %v4561 = vsub.s32 %v4558, %v4560
      %v4562 = vrot.slane %v4548, %v4561
      %v4563 = vcombine.low %v4555, %v4562
      %v4564 = vcombine.high %v4555, %v4562
      %v4566 = vunpack.c.l.s4 1966171168
      %v4567 = vunpack.c.0.s8 %v4566
      %v4568 = vlaneseq
      %v4569 = vshrl.u32 %v4568, 7
      %v4570 = vsub.s32 %v4567, %v4569
      %v4571 = vrot.slane %v4563, %v4570
      %v4573 = vunpack.c.l.s4 1966171168
      %v4574 = vunpack.c.0.s8 %v4573
      %v4575 = vlaneseq
      %v4576 = vshrl.u32 %v4575, 7
      %v4577 = vsub.s32 %v4574, %v4576
      %v4578 = vrot.slane %v4564, %v4577
      %v4579 = vcombine.low %v3986, %v4070
      %v4580 = vcombine.low %v4154, %v4238
      %v4582 = vunpack.c.l.s4 1966171168
      %v4583 = vunpack.c.0.s8 %v4582
      %v4584 = vlaneseq
      %v4585 = vshrl.u32 %v4584, 7
      %v4586 = vsub.s32 %v4583, %v4585
      %v4587 = vrot.slane %v4579, %v4586
      %v4589 = vunpack.c.l.s4 1966171168
      %v4590 = vunpack.c.0.s8 %v4589
      %v4591 = vlaneseq
      %v4592 = vshrl.u32 %v4591, 7
      %v4593 = vsub.s32 %v4590, %v4592
      %v4594 = vrot.slane %v4580, %v4593
      %v4595 = vcombine.low %v4587, %v4594
      %v4596 = vcombine.high %v4587, %v4594
      %v4598 = vunpack.c.l.s4 1966171168
      %v4599 = vunpack.c.0.s8 %v4598
      %v4600 = vlaneseq
      %v4601 = vshrl.u32 %v4600, 7
      %v4602 = vsub.s32 %v4599, %v4601
      %v4603 = vrot.slane %v4595, %v4602
      %v4605 = vunpack.c.l.s4 1966171168
      %v4606 = vunpack.c.0.s8 %v4605
      %v4607 = vlaneseq
      %v4608 = vshrl.u32 %v4607, 7
      %v4609 = vsub.s32 %v4606, %v4608
      %v4610 = vrot.slane %v4596, %v4609
      %v4611 = vcombine.low %v3988, %v4072
      %v4612 = vcombine.low %v4156, %v4240
      %v4614 = vunpack.c.l.s4 1966171168
      %v4615 = vunpack.c.0.s8 %v4614
      %v4616 = vlaneseq
      %v4617 = vshrl.u32 %v4616, 7
      %v4618 = vsub.s32 %v4615, %v4617
      %v4619 = vrot.slane %v4611, %v4618
      %v4621 = vunpack.c.l.s4 1966171168
      %v4622 = vunpack.c.0.s8 %v4621
      %v4623 = vlaneseq
      %v4624 = vshrl.u32 %v4623, 7
      %v4625 = vsub.s32 %v4622, %v4624
      %v4626 = vrot.slane %v4612, %v4625
      %v4627 = vcombine.low %v4619, %v4626
      %v4628 = vcombine.high %v4619, %v4626
      %v4630 = vunpack.c.l.s4 1966171168
      %v4631 = vunpack.c.0.s8 %v4630
      %v4632 = vlaneseq
      %v4633 = vshrl.u32 %v4632, 7
      %v4634 = vsub.s32 %v4631, %v4633
      %v4635 = vrot.slane %v4627, %v4634
      %v4637 = vunpack.c.l.s4 1966171168
      %v4638 = vunpack.c.0.s8 %v4637
      %v4639 = vlaneseq
      %v4640 = vshrl.u32 %v4639, 7
      %v4641 = vsub.s32 %v4638, %v4640
      %v4642 = vrot.slane %v4628, %v4641
      %v4643 = vcombine.low %v3990, %v4074
      %v4644 = vcombine.low %v4158, %v4242
      %v4646 = vunpack.c.l.s4 1966171168
      %v4647 = vunpack.c.0.s8 %v4646
      %v4648 = vlaneseq
      %v4649 = vshrl.u32 %v4648, 7
      %v4650 = vsub.s32 %v4647, %v4649
      %v4651 = vrot.slane %v4643, %v4650
      %v4653 = vunpack.c.l.s4 1966171168
      %v4654 = vunpack.c.0.s8 %v4653
      %v4655 = vlaneseq
      %v4656 = vshrl.u32 %v4655, 7
      %v4657 = vsub.s32 %v4654, %v4656
      %v4658 = vrot.slane %v4644, %v4657
      %v4659 = vcombine.low %v4651, %v4658
      %v4660 = vcombine.high %v4651, %v4658
      %v4662 = vunpack.c.l.s4 1966171168
      %v4663 = vunpack.c.0.s8 %v4662
      %v4664 = vlaneseq
      %v4665 = vshrl.u32 %v4664, 7
      %v4666 = vsub.s32 %v4663, %v4665
      %v4667 = vrot.slane %v4659, %v4666
      %v4669 = vunpack.c.l.s4 1966171168
      %v4670 = vunpack.c.0.s8 %v4669
      %v4671 = vlaneseq
      %v4672 = vshrl.u32 %v4671, 7
      %v4673 = vsub.s32 %v4670, %v4672
      %v4674 = vrot.slane %v4660, %v4673
      %v4675 = vunpack.i.l.s16 %v4315
      %v4676 = vunpack.i.h.s16 %v4315
      %v4677 = vunpack.i.l.s16 %v4322
      %v4678 = vunpack.i.l.s16 %v4347
      %v4679 = vunpack.i.h.s16 %v4347
      %v4680 = vunpack.i.l.s16 %v4354
      %v4681 = vunpack.i.l.s16 %v4379
      %v4682 = vunpack.i.h.s16 %v4379
      %v4683 = vunpack.i.l.s16 %v4386
      %v4684 = vunpack.i.l.s16 %v4411
      %v4685 = vunpack.i.h.s16 %v4411
      %v4686 = vunpack.i.l.s16 %v4418
      %v4687 = vunpack.i.l.s16 %v4443
      %v4688 = vunpack.i.h.s16 %v4443
      %v4689 = vunpack.i.l.s16 %v4450
      %v4690 = vunpack.i.l.s16 %v4475
      %v4691 = vunpack.i.h.s16 %v4475
      %v4692 = vunpack.i.l.s16 %v4482
      %v4693 = vunpack.i.l.s16 %v4507
      %v4694 = vunpack.i.h.s16 %v4507
      %v4695 = vunpack.i.l.s16 %v4514
      %v4696 = vunpack.i.l.s16 %v4539
      %v4697 = vunpack.i.h.s16 %v4539
      %v4698 = vunpack.i.l.s16 %v4546
      %v4699 = vunpack.i.l.s16 %v4571
      %v4700 = vunpack.i.h.s16 %v4571
      %v4701 = vunpack.i.l.s16 %v4578
      %v4702 = vunpack.i.l.s16 %v4603
      %v4703 = vunpack.i.h.s16 %v4603
      %v4704 = vunpack.i.l.s16 %v4610
      %v4705 = vunpack.i.l.s16 %v4635
      %v4706 = vunpack.i.h.s16 %v4635
      %v4707 = vunpack.i.l.s16 %v4642
      %v4708 = vunpack.i.l.s16 %v4667
      %v4709 = vunpack.i.h.s16 %v4667
      %v4710 = vunpack.i.l.s16 %v4674
      %v4711 = vld [vmem:[%s2] sm:$0xf]
      %v4712 = vld [vmem:[%s2 + $0x4] sm:$0xf]
      %v4713 = vld [vmem:[%s2 + $0x8] sm:$0xf]
      %v4714 = vld [vmem:[%s2 + $0xc] sm:$0xf]
      %v4715 = vld [vmem:[%s2 + $0x10] sm:$0xf]
      %v4716 = vld [vmem:[%s2 + $0x14] sm:$0xf]
      %v4717 = vld [vmem:[%s2 + $0x18] sm:$0xf]
      %v4718 = vld [vmem:[%s2 + $0x1c] sm:$0xf]
      %v4719 = vld [vmem:[%s2 + $0x20] sm:$0xf]
      %v4720 = vld [vmem:[%s2 + $0x24] sm:$0xf]
      %v4721 = vld [vmem:[%s2 + $0x28] sm:$0xf]
      %v4722 = vld [vmem:[%s2 + $0x2c] sm:$0xf]
      %v4723 = vld [vmem:[%s2 + $0x30] sm:$0xf]
      %v4724 = vld [vmem:[%s2 + $0x34] sm:$0xf]
      %v4725 = vld [vmem:[%s2 + $0x38] sm:$0xf]
      %v4726 = vld [vmem:[%s2 + $0x3c] sm:$0xf]
      %v4727 = vld [vmem:[%s2 + $0x40] sm:$0xf]
      %v4728 = vld [vmem:[%s2 + $0x44] sm:$0xf]
      %v4729 = vld [vmem:[%s2 + $0x48] sm:$0xf]
      %v4730 = vld [vmem:[%s2 + $0x4c] sm:$0xf]
      %v4731 = vld [vmem:[%s2 + $0x50] sm:$0xf]
      %v4732 = vld [vmem:[%s2 + $0x54] sm:$0xf]
      %v4733 = vld [vmem:[%s2 + $0x58] sm:$0xf]
      %v4734 = vld [vmem:[%s2 + $0x5c] sm:$0xf]
      %v4735 = vld [vmem:[%s2 + $0x60] sm:$0xf]
      %v4736 = vld [vmem:[%s2 + $0x64] sm:$0xf]
      %v4737 = vld [vmem:[%s2 + $0x68] sm:$0xf]
      %v4738 = vld [vmem:[%s2 + $0x6c] sm:$0xf]
      %v4739 = vld [vmem:[%s2 + $0x70] sm:$0xf]
      %v4740 = vld [vmem:[%s2 + $0x74] sm:$0xf]
      %v4741 = vld [vmem:[%s2 + $0x78] sm:$0xf]
      %v4742 = vld [vmem:[%s2 + $0x7c] sm:$0xf]
      %v4743 = vld [vmem:[%s2 + $0x80] sm:$0xf]
      %v4744 = vld [vmem:[%s2 + $0x84] sm:$0xf]
      %v4745 = vld [vmem:[%s2 + $0x88] sm:$0xf]
      %v4746 = vld [vmem:[%s2 + $0x8c] sm:$0xf]
      %v4747 = vld [vmem:[%s2 + $0x90] sm:$0xf]
      %v4748 = vld [vmem:[%s2 + $0x94] sm:$0xf]
      %v4749 = vld [vmem:[%s2 + $0x98] sm:$0xf]
      %v4750 = vld [vmem:[%s2 + $0x9c] sm:$0xf]
      %v4751 = vld [vmem:[%s2 + $0xa0] sm:$0xf]
      %v4752 = vld [vmem:[%s2 + $0xa4] sm:$0xf]
      %v4753 = vld [vmem:[%s2 + $0xa8] sm:$0xf]
      %v4754 = vld [vmem:[%s2 + $0xac] sm:$0xf]
      %v4755 = vld [vmem:[%s2 + $0xb0] sm:$0xf]
      %v4756 = vld [vmem:[%s2 + $0xb4] sm:$0xf]
      %v4757 = vld [vmem:[%s2 + $0xb8] sm:$0xf]
      %v4758 = vld [vmem:[%s2 + $0xbc] sm:$0xf]
      %v4759 = vld [vmem:[%s2 + $0xc0] sm:$0xf]
      %v4760 = vld [vmem:[%s2 + $0xc4] sm:$0xf]
      %v4761 = vld [vmem:[%s2 + $0xc8] sm:$0xf]
      %v4762 = vld [vmem:[%s2 + $0xcc] sm:$0xf]
      %v4763 = vld [vmem:[%s2 + $0xd0] sm:$0xf]
      %v4764 = vld [vmem:[%s2 + $0xd4] sm:$0xf]
      %v4765 = vld [vmem:[%s2 + $0xd8] sm:$0xf]
      %v4766 = vld [vmem:[%s2 + $0xdc] sm:$0xf]
      %v4767 = vld [vmem:[%s2 + $0xe0] sm:$0xf]
      %v4768 = vld [vmem:[%s2 + $0xe4] sm:$0xf]
      %v4769 = vld [vmem:[%s2 + $0xe8] sm:$0xf]
      %v4770 = vld [vmem:[%s2 + $0xec] sm:$0xf]
      %v4771 = vld [vmem:[%s2 + $0xf0] sm:$0xf]
      %v4772 = vld [vmem:[%s2 + $0xf4] sm:$0xf]
      %v4773 = vld [vmem:[%s2 + $0xf8] sm:$0xf]
      %v4774 = vld [vmem:[%s2 + $0xfc] sm:$0xf]
      %v4775 = vld [vmem:[%s5] sm:$0x1]
      %v4777 = vlaneseq
      %v4778 = vshrl.u32 %v4777, 7
      %v4779 = vsub.s32 0, %v4778
      %v4780 = vrot.slane %v4775, %v4779
      %v4782 = vpack.i.b16 %v4676, %v4675
      %v4783 = vpack.i.b16 %v4678, %v4677
      %v4784 = vpack.i.b16 %v4680, %v4679
      %v4785 = vpack.i.b16 %v4682, %v4681
      %v4786 = vpack.i.b16 %v4684, %v4683
      %v4787 = vpack.i.b16 %v4686, %v4685
      %v4788 = vpack.i.b16 %v4688, %v4687
      %v4789 = vpack.i.b16 %v4690, %v4689
      %v4790 = vpack.i.b16 %v4692, %v4691
      %v4791 = vpack.i.b16 %v4694, %v4693
      %v4792 = vpack.i.b16 %v4696, %v4695
      %v4793 = vpack.i.b16 %v4698, %v4697
      %v4794 = vpack.i.b16 %v4700, %v4699
      %v4795 = vpack.i.b16 %v4702, %v4701
      %v4796 = vpack.i.b16 %v4704, %v4703
      %v4797 = vpack.i.b16 %v4706, %v4705
      %v4798 = vpack.i.b16 %v4708, %v4707
      %v4799 = vpack.i.b16 %v4710, %v4709
      %v4800 = vcombine.low %v4782, %v4783
      %v4801 = vcombine.low %v4784, %v4785
      %v4802 = vcombine.low %v4786, %v4787
      %v4803 = vcombine.low %v4788, %v4789
      %v4805 = vunpack.c.l.s4 1966171168
      %v4806 = vunpack.c.0.s8 %v4805
      %v4807 = vlaneseq
      %v4808 = vshrl.u32 %v4807, 7
      %v4809 = vsub.s32 %v4806, %v4808
      %v4810 = vrot.slane %v4800, %v4809
      %v4812 = vunpack.c.l.s4 1966171168
      %v4813 = vunpack.c.0.s8 %v4812
      %v4814 = vlaneseq
      %v4815 = vshrl.u32 %v4814, 7
      %v4816 = vsub.s32 %v4813, %v4815
      %v4817 = vrot.slane %v4801, %v4816
      %v4819 = vunpack.c.l.s4 1966171168
      %v4820 = vunpack.c.0.s8 %v4819
      %v4821 = vlaneseq
      %v4822 = vshrl.u32 %v4821, 7
      %v4823 = vsub.s32 %v4820, %v4822
      %v4824 = vrot.slane %v4802, %v4823
      %v4826 = vunpack.c.l.s4 1966171168
      %v4827 = vunpack.c.0.s8 %v4826
      %v4828 = vlaneseq
      %v4829 = vshrl.u32 %v4828, 7
      %v4830 = vsub.s32 %v4827, %v4829
      %v4831 = vrot.slane %v4803, %v4830
      %v4832 = vcombine.low %v4810, %v4817
      %v4833 = vcombine.high %v4810, %v4817
      %v4834 = vcombine.low %v4824, %v4831
      %v4835 = vcombine.high %v4824, %v4831
      %v4837 = vunpack.c.l.s4 1966171168
      %v4838 = vunpack.c.0.s8 %v4837
      %v4839 = vlaneseq
      %v4840 = vshrl.u32 %v4839, 7
      %v4841 = vsub.s32 %v4838, %v4840
      %v4842 = vrot.slane %v4832, %v4841
      %v4844 = vunpack.c.l.s4 1966171168
      %v4845 = vunpack.c.0.s8 %v4844
      %v4846 = vlaneseq
      %v4847 = vshrl.u32 %v4846, 7
      %v4848 = vsub.s32 %v4845, %v4847
      %v4849 = vrot.slane %v4833, %v4848
      %v4851 = vunpack.c.l.s4 1966171168
      %v4852 = vunpack.c.0.s8 %v4851
      %v4853 = vlaneseq
      %v4854 = vshrl.u32 %v4853, 7
      %v4855 = vsub.s32 %v4852, %v4854
      %v4856 = vrot.slane %v4834, %v4855
      %v4858 = vunpack.c.l.s4 1966171168
      %v4859 = vunpack.c.0.s8 %v4858
      %v4860 = vlaneseq
      %v4861 = vshrl.u32 %v4860, 7
      %v4862 = vsub.s32 %v4859, %v4861
      %v4863 = vrot.slane %v4835, %v4862
      %v4864 = vcombine.low %v4842, %v4856
      %v4865 = vcombine.high %v4842, %v4856
      %v4866 = vcombine.low %v4849, %v4863
      %v4867 = vcombine.high %v4849, %v4863
      %v4868 = vcombine.low %v4790, %v4791
      %v4869 = vcombine.low %v4792, %v4793
      %v4870 = vcombine.low %v4794, %v4795
      %v4871 = vcombine.low %v4796, %v4797
      %v4873 = vunpack.c.l.s4 1966171168
      %v4874 = vunpack.c.0.s8 %v4873
      %v4875 = vlaneseq
      %v4876 = vshrl.u32 %v4875, 7
      %v4877 = vsub.s32 %v4874, %v4876
      %v4878 = vrot.slane %v4868, %v4877
      %v4880 = vunpack.c.l.s4 1966171168
      %v4881 = vunpack.c.0.s8 %v4880
      %v4882 = vlaneseq
      %v4883 = vshrl.u32 %v4882, 7
      %v4884 = vsub.s32 %v4881, %v4883
      %v4885 = vrot.slane %v4869, %v4884
      %v4887 = vunpack.c.l.s4 1966171168
      %v4888 = vunpack.c.0.s8 %v4887
      %v4889 = vlaneseq
      %v4890 = vshrl.u32 %v4889, 7
      %v4891 = vsub.s32 %v4888, %v4890
      %v4892 = vrot.slane %v4870, %v4891
      %v4894 = vunpack.c.l.s4 1966171168
      %v4895 = vunpack.c.0.s8 %v4894
      %v4896 = vlaneseq
      %v4897 = vshrl.u32 %v4896, 7
      %v4898 = vsub.s32 %v4895, %v4897
      %v4899 = vrot.slane %v4871, %v4898
      %v4900 = vcombine.low %v4878, %v4885
      %v4901 = vcombine.high %v4878, %v4885
      %v4902 = vcombine.low %v4892, %v4899
      %v4903 = vcombine.high %v4892, %v4899
      %v4905 = vunpack.c.l.s4 1966171168
      %v4906 = vunpack.c.0.s8 %v4905
      %v4907 = vlaneseq
      %v4908 = vshrl.u32 %v4907, 7
      %v4909 = vsub.s32 %v4906, %v4908
      %v4910 = vrot.slane %v4900, %v4909
      %v4912 = vunpack.c.l.s4 1966171168
      %v4913 = vunpack.c.0.s8 %v4912
      %v4914 = vlaneseq
      %v4915 = vshrl.u32 %v4914, 7
      %v4916 = vsub.s32 %v4913, %v4915
      %v4917 = vrot.slane %v4901, %v4916
      %v4919 = vunpack.c.l.s4 1966171168
      %v4920 = vunpack.c.0.s8 %v4919
      %v4921 = vlaneseq
      %v4922 = vshrl.u32 %v4921, 7
      %v4923 = vsub.s32 %v4920, %v4922
      %v4924 = vrot.slane %v4902, %v4923
      %v4926 = vunpack.c.l.s4 1966171168
      %v4927 = vunpack.c.0.s8 %v4926
      %v4928 = vlaneseq
      %v4929 = vshrl.u32 %v4928, 7
      %v4930 = vsub.s32 %v4927, %v4929
      %v4931 = vrot.slane %v4903, %v4930
      %v4932 = vcombine.low %v4910, %v4924
      %v4933 = vcombine.high %v4910, %v4924
      %v4934 = vcombine.low %v4917, %v4931
      %v4935 = vcombine.high %v4917, %v4931
      %v4936 = vcombine.low %v4798, %v4799
      %v4938 = vunpack.c.l.s4 1966171168
      %v4939 = vunpack.c.0.s8 %v4938
      %v4940 = vlaneseq
      %v4941 = vshrl.u32 %v4940, 7
      %v4942 = vsub.s32 %v4939, %v4941
      %v4943 = vrot.slane %v4936, %v4942
      %v4944 = vcombine.high %v4943, %v4943
      %v4946 = vunpack.c.l.s4 1966171168
      %v4947 = vunpack.c.0.s8 %v4946
      %v4948 = vlaneseq
      %v4949 = vshrl.u32 %v4948, 7
      %v4950 = vsub.s32 %v4947, %v4949
      %v4951 = vrot.slane %v4943, %v4950
      %v4953 = vunpack.c.l.s4 1966171168
      %v4954 = vunpack.c.0.s8 %v4953
      %v4955 = vlaneseq
      %v4956 = vshrl.u32 %v4955, 7
      %v4957 = vsub.s32 %v4954, %v4956
      %v4958 = vrot.slane %v4944, %v4957
      %v4959 = vcombine.high %v4951, %v4951
      %v4960 = vcombine.high %v4958, %v4958
      %v5037 = vunpack.c.l.b16 %v4711
      %v5038 = vunpack.c.l.b16 %v4712
      %v5039 = vunpack.c.l.b16 %v4713
      %v5040 = vunpack.c.l.b16 %v4714
      %v5041 = vunpack.c.l.b16 %v4715
      %v5042 = vunpack.c.l.b16 %v4716
      %v5043 = vunpack.c.l.b16 %v4717
      %v5044 = vunpack.c.l.b16 %v4718
      %v5045 = vunpack.c.l.b16 %v4719
      %v5046 = vunpack.c.l.b16 %v4720
      %v5047 = vunpack.c.l.b16 %v4721
      %v5048 = vunpack.c.l.b16 %v4722
      %v5049 = vunpack.c.l.b16 %v4723
      %v5050 = vunpack.c.l.b16 %v4724
      %v5051 = vunpack.c.l.b16 %v4725
      %v5052 = vunpack.c.l.b16 %v4726
      %v5053 = vunpack.c.l.b16 %v4727
      %v5054 = vunpack.c.l.b16 %v4728
      %v5055 = vunpack.c.l.b16 %v4729
      %v5056 = vunpack.c.l.b16 %v4730
      %v5057 = vunpack.c.l.b16 %v4731
      %v5058 = vunpack.c.l.b16 %v4732
      %v5059 = vunpack.c.l.b16 %v4733
      %v5060 = vunpack.c.l.b16 %v4734
      %v5061 = vunpack.c.l.b16 %v4735
      %v5062 = vunpack.c.l.b16 %v4736
      %v5063 = vunpack.c.l.b16 %v4737
      %v5064 = vunpack.c.l.b16 %v4738
      %v5065 = vunpack.c.l.b16 %v4739
      %v5066 = vunpack.c.l.b16 %v4740
      %v5067 = vunpack.c.l.b16 %v4741
      %v5068 = vunpack.c.l.b16 %v4742
      %v5069 = vunpack.c.l.b16 %v4743
      %v5070 = vunpack.c.l.b16 %v4744
      %v5071 = vunpack.c.l.b16 %v4745
      %v5072 = vunpack.c.l.b16 %v4746
      %v5073 = vunpack.c.l.b16 %v4747
      %v5074 = vunpack.c.l.b16 %v4748
      %v5075 = vunpack.c.l.b16 %v4749
      %v5076 = vunpack.c.l.b16 %v4750
      %v5077 = vunpack.c.l.b16 %v4751
      %v5078 = vunpack.c.l.b16 %v4752
      %v5079 = vunpack.c.l.b16 %v4753
      %v5080 = vunpack.c.l.b16 %v4754
      %v5081 = vunpack.c.l.b16 %v4755
      %v5082 = vunpack.c.l.b16 %v4756
      %v5083 = vunpack.c.l.b16 %v4757
      %v5084 = vunpack.c.l.b16 %v4758
      %v5085 = vunpack.c.l.b16 %v4759
      %v5086 = vunpack.c.l.b16 %v4760
      %v5087 = vunpack.c.l.b16 %v4761
      %v5088 = vunpack.c.l.b16 %v4762
      %v5089 = vunpack.c.l.b16 %v4763
      %v5090 = vunpack.c.l.b16 %v4764
      %v5091 = vunpack.c.l.b16 %v4765
      %v5092 = vunpack.c.l.b16 %v4766
      %v5093 = vunpack.c.l.b16 %v4767
      %v5094 = vunpack.c.l.b16 %v4768
      %v5095 = vunpack.c.l.b16 %v4769
      %v5096 = vunpack.c.l.b16 %v4770
      %v5097 = vunpack.c.l.b16 %v4771
      %v5098 = vunpack.c.l.b16 %v4772
      %v5099 = vunpack.c.l.b16 %v4773
      %v5100 = vunpack.c.l.b16 %v4774
      %v5101 = vpack.c.b16 %v5038, %v5037
      %v5102 = vpack.c.b16 %v5040, %v5039
      %v5103 = vpack.c.b16 %v5042, %v5041
      %v5104 = vpack.c.b16 %v5044, %v5043
      %v5105 = vpack.c.b16 %v5046, %v5045
      %v5106 = vpack.c.b16 %v5048, %v5047
      %v5107 = vpack.c.b16 %v5050, %v5049
      %v5108 = vpack.c.b16 %v5052, %v5051
      %v5109 = vpack.c.b16 %v5054, %v5053
      %v5110 = vpack.c.b16 %v5056, %v5055
      %v5111 = vpack.c.b16 %v5058, %v5057
      %v5112 = vpack.c.b16 %v5060, %v5059
      %v5113 = vpack.c.b16 %v5062, %v5061
      %v5114 = vpack.c.b16 %v5064, %v5063
      %v5115 = vpack.c.b16 %v5066, %v5065
      %v5116 = vpack.c.b16 %v5068, %v5067
      %v5117 = vpack.c.b16 %v5070, %v5069
      %v5118 = vpack.c.b16 %v5072, %v5071
      %v5119 = vpack.c.b16 %v5074, %v5073
      %v5120 = vpack.c.b16 %v5076, %v5075
      %v5121 = vpack.c.b16 %v5078, %v5077
      %v5122 = vpack.c.b16 %v5080, %v5079
      %v5123 = vpack.c.b16 %v5082, %v5081
      %v5124 = vpack.c.b16 %v5084, %v5083
      %v5125 = vpack.c.b16 %v5086, %v5085
      %v5126 = vpack.c.b16 %v5088, %v5087
      %v5127 = vpack.c.b16 %v5090, %v5089
      %v5128 = vpack.c.b16 %v5092, %v5091
      %v5129 = vpack.c.b16 %v5094, %v5093
      %v5130 = vpack.c.b16 %v5096, %v5095
      %v5131 = vpack.c.b16 %v5098, %v5097
      %v5132 = vpack.c.b16 %v5100, %v5099
      %5165 = vmatprep.subr.bf16.mxu0 0
      %5166 = vmatpush1.bf16.msra.mxu0 %v5101
      %5167 = vmatprep.subr.bf16.mxu0 0
      %5168 = vmatpush1.bf16.msra.mxu0 %v5102
      %5169 = vmatprep.subr.bf16.mxu0 0
      %5170 = vmatpush1.bf16.msra.mxu0 %v5103
      %5171 = vmatprep.subr.bf16.mxu0 0
      %5172 = vmatpush1.bf16.msra.mxu0 %v5104
      %5173 = vmatprep.subr.bf16.mxu0 0
      %5174 = vmatpush1.bf16.msra.mxu0 %v5105
      %5175 = vmatprep.subr.bf16.mxu0 0
      %5176 = vmatpush1.bf16.msra.mxu0 %v5106
      %5177 = vmatprep.subr.bf16.mxu0 0
      %5178 = vmatpush1.bf16.msra.mxu0 %v5107
      %5179 = vmatprep.subr.bf16.mxu0 0
      %5180 = vmatpush1.bf16.msra.mxu0 %v5108
      %5181 = vmatprep.subr.bf16.mxu0 0
      %5182 = vmatpush1.bf16.msra.mxu0 %v5109
      %5183 = vmatprep.subr.bf16.mxu0 0
      %5184 = vmatpush1.bf16.msra.mxu0 %v5110
      %5185 = vmatprep.subr.bf16.mxu0 0
      %5186 = vmatpush1.bf16.msra.mxu0 %v5111
      %5187 = vmatprep.subr.bf16.mxu0 0
      %5188 = vmatpush1.bf16.msra.mxu0 %v5112
      %5189 = vmatprep.subr.bf16.mxu0 0
      %5190 = vmatpush1.bf16.msra.mxu0 %v5113
      %5191 = vmatprep.subr.bf16.mxu0 0
      %5192 = vmatpush1.bf16.msra.mxu0 %v5114
      %5193 = vmatprep.subr.bf16.mxu0 0
      %5194 = vmatpush1.bf16.msra.mxu0 %v5115
      %5195 = vmatprep.subr.bf16.mxu0 0
      %5196 = vmatpush1.bf16.msra.mxu0 %v5116
      %5197 = vmatprep.mubr.bf16.mxu0 %v4866
      %5198 = vmatmul.mubr.bf16.gmra.mrb[0].mxu0 %v4864
      %v5199 = vpop.f32.mrb[0].mxu0
      %v5200 = vadd.f32 %v4780, %v5199
      %v5201 = vpop.f32.mrb[0].mxu0
      %v5202 = vpop.f32.mrb[0].mxu0
      %v5203 = vadd.f32 %v4780, %v5202
      %v5204 = vpop.f32.mrb[0].mxu0
      %5205 = vmatprep.mubr.bf16.mxu0 %v4934
      %5206 = vmatmul.mubr.bf16.gmra.mrb[0].mxu0 %v4932
      %v5207 = vpop.f32.mrb[0].mxu0
      %v5208 = vadd.f32 %v4780, %v5207
      %v5209 = vpop.f32.mrb[0].mxu0
      %v5210 = vpop.f32.mrb[0].mxu0
      %v5211 = vadd.f32 %v4780, %v5210
      %v5212 = vpop.f32.mrb[0].mxu0
      %5213 = vmatprep.mubr.bf16.mxu0 %v4958
      %5214 = vmatmul.mubr.bf16.gmra.mrb[0].mxu0 %v4951
      %v5215 = vpop.f32.mrb[0].mxu0
      %v5216 = vadd.f32 %v4780, %v5215
      %v5217 = vpop.f32.mrb[0].mxu0
      %v5218 = vpop.f32.mrb[0].mxu0
      %v5219 = vpop.f32.mrb[0].mxu0
      %5220 = vdwg.mxu0
      %5221 = vmatprep.subr.bf16.mxu0 0
      %5222 = vmatpush1.bf16.msra.mxu0 %v5117
      %5223 = vmatprep.subr.bf16.mxu0 0
      %5224 = vmatpush1.bf16.msra.mxu0 %v5118
      %5225 = vmatprep.subr.bf16.mxu0 0
      %5226 = vmatpush1.bf16.msra.mxu0 %v5119
      %5227 = vmatprep.subr.bf16.mxu0 0
      %5228 = vmatpush1.bf16.msra.mxu0 %v5120
      %5229 = vmatprep.subr.bf16.mxu0 0
      %5230 = vmatpush1.bf16.msra.mxu0 %v5121
      %5231 = vmatprep.subr.bf16.mxu0 0
      %5232 = vmatpush1.bf16.msra.mxu0 %v5122
      %5233 = vmatprep.subr.bf16.mxu0 0
      %5234 = vmatpush1.bf16.msra.mxu0 %v5123
      %5235 = vmatprep.subr.bf16.mxu0 0
      %5236 = vmatpush1.bf16.msra.mxu0 %v5124
      %5237 = vmatprep.subr.bf16.mxu0 0
      %5238 = vmatpush1.bf16.msra.mxu0 %v5125
      %5239 = vmatprep.subr.bf16.mxu0 0
      %5240 = vmatpush1.bf16.msra.mxu0 %v5126
      %5241 = vmatprep.subr.bf16.mxu0 0
      %5242 = vmatpush1.bf16.msra.mxu0 %v5127
      %5243 = vmatprep.subr.bf16.mxu0 0
      %5244 = vmatpush1.bf16.msra.mxu0 %v5128
      %5245 = vmatprep.subr.bf16.mxu0 0
      %5246 = vmatpush1.bf16.msra.mxu0 %v5129
      %5247 = vmatprep.subr.bf16.mxu0 0
      %5248 = vmatpush1.bf16.msra.mxu0 %v5130
      %5249 = vmatprep.subr.bf16.mxu0 0
      %5250 = vmatpush1.bf16.msra.mxu0 %v5131
      %5251 = vmatprep.subr.bf16.mxu0 0
      %5252 = vmatpush1.bf16.msra.mxu0 %v5132
      %5253 = vmatprep.mubr.bf16.mxu0 %v4867
      %5254 = vmatmul.mubr.bf16.gmra.mrb[0].mxu0 %v4865
      %v5255 = vpop.f32.mrb[0].mxu0
      %v5256 = vadd.f32 %v5200, %v5255
      %v5257 = vpop.f32.mrb[0].mxu0
      %v5258 = vpop.f32.mrb[0].mxu0
      %v5259 = vadd.f32 %v5203, %v5258
      %v5260 = vpop.f32.mrb[0].mxu0
      %5261 = vmatprep.mubr.bf16.mxu0 %v4935
      %5262 = vmatmul.mubr.bf16.gmra.mrb[0].mxu0 %v4933
      %v5263 = vpop.f32.mrb[0].mxu0
      %v5264 = vadd.f32 %v5208, %v5263
      %v5265 = vpop.f32.mrb[0].mxu0
      %v5266 = vpop.f32.mrb[0].mxu0
      %v5267 = vadd.f32 %v5211, %v5266
      %v5268 = vpop.f32.mrb[0].mxu0
      %5269 = vmatprep.mubr.bf16.mxu0 %v4960
      %5270 = vmatmul.mubr.bf16.gmra.mrb[0].mxu0 %v4959
      %v5271 = vpop.f32.mrb[0].mxu0
      %v5272 = vadd.f32 %v5216, %v5271
      %v5273 = vpop.f32.mrb[0].mxu0
      %v5274 = vpop.f32.mrb[0].mxu0
      %v5275 = vpop.f32.mrb[0].mxu0
      %5276 = vdwg.mxu0
      %v5277 = vmax.f32 %v5256, 0.0
      %v5278 = vmax.f32 %v5259, 0.0
      %v5279 = vmax.f32 %v5264, 0.0
      %v5280 = vmax.f32 %v5267, 0.0
      %v5281 = vmax.f32 %v5272, 0.0
      %v5282 = vpack.c.bf16 %v5278, %v5277
      %v5283 = vpack.c.bf16 %v5280, %v5279
      %v5284 = vpack.c.bf16 %v5281, %v5281
      %v5288 = vcombine.high %v5282, %v5282
      %v5290 = vunpack.c.l.s4 1966171168
      %v5291 = vunpack.c.0.s8 %v5290
      %v5292 = vlaneseq
      %v5293 = vshrl.u32 %v5292, 7
      %v5294 = vsub.s32 %v5291, %v5293
      %v5295 = vrot.slane %v5282, %v5294
      %v5297 = vunpack.c.l.s4 1966171168
      %v5298 = vunpack.c.0.s8 %v5297
      %v5299 = vlaneseq
      %v5300 = vshrl.u32 %v5299, 7
      %v5301 = vsub.s32 %v5298, %v5300
      %v5302 = vrot.slane %v5288, %v5301
      %v5303 = vcombine.high %v5295, %v5295
      %v5304 = vcombine.high %v5302, %v5302
      %v5306 = vunpack.c.l.s4 1966171168
      %v5307 = vunpack.c.0.s8 %v5306
      %v5308 = vlaneseq
      %v5309 = vshrl.u32 %v5308, 7
      %v5310 = vsub.s32 %v5307, %v5309
      %v5311 = vrot.slane %v5295, %v5310
      %v5313 = vunpack.c.l.s4 1966171168
      %v5314 = vunpack.c.0.s8 %v5313
      %v5315 = vlaneseq
      %v5316 = vshrl.u32 %v5315, 7
      %v5317 = vsub.s32 %v5314, %v5316
      %v5318 = vrot.slane %v5302, %v5317
      %v5320 = vunpack.c.l.s4 1966171168
      %v5321 = vunpack.c.0.s8 %v5320
      %v5322 = vlaneseq
      %v5323 = vshrl.u32 %v5322, 7
      %v5324 = vsub.s32 %v5321, %v5323
      %v5325 = vrot.slane %v5303, %v5324
      %v5327 = vunpack.c.l.s4 1966171168
      %v5328 = vunpack.c.0.s8 %v5327
      %v5329 = vlaneseq
      %v5330 = vshrl.u32 %v5329, 7
      %v5331 = vsub.s32 %v5328, %v5330
      %v5332 = vrot.slane %v5304, %v5331
      %v5333 = vcombine.high %v5311, %v5311
      %v5334 = vcombine.high %v5318, %v5318
      %v5335 = vcombine.high %v5325, %v5325
      %v5336 = vcombine.high %v5332, %v5332
      %v5337 = vcombine.high %v5283, %v5283
      %v5339 = vunpack.c.l.s4 1966171168
      %v5340 = vunpack.c.0.s8 %v5339
      %v5341 = vlaneseq
      %v5342 = vshrl.u32 %v5341, 7
      %v5343 = vsub.s32 %v5340, %v5342
      %v5344 = vrot.slane %v5283, %v5343
      %v5346 = vunpack.c.l.s4 1966171168
      %v5347 = vunpack.c.0.s8 %v5346
      %v5348 = vlaneseq
      %v5349 = vshrl.u32 %v5348, 7
      %v5350 = vsub.s32 %v5347, %v5349
      %v5351 = vrot.slane %v5337, %v5350
      %v5352 = vcombine.high %v5344, %v5344
      %v5353 = vcombine.high %v5351, %v5351
      %v5355 = vunpack.c.l.s4 1966171168
      %v5356 = vunpack.c.0.s8 %v5355
      %v5357 = vlaneseq
      %v5358 = vshrl.u32 %v5357, 7
      %v5359 = vsub.s32 %v5356, %v5358
      %v5360 = vrot.slane %v5344, %v5359
      %v5362 = vunpack.c.l.s4 1966171168
      %v5363 = vunpack.c.0.s8 %v5362
      %v5364 = vlaneseq
      %v5365 = vshrl.u32 %v5364, 7
      %v5366 = vsub.s32 %v5363, %v5365
      %v5367 = vrot.slane %v5351, %v5366
      %v5369 = vunpack.c.l.s4 1966171168
      %v5370 = vunpack.c.0.s8 %v5369
      %v5371 = vlaneseq
      %v5372 = vshrl.u32 %v5371, 7
      %v5373 = vsub.s32 %v5370, %v5372
      %v5374 = vrot.slane %v5352, %v5373
      %v5376 = vunpack.c.l.s4 1966171168
      %v5377 = vunpack.c.0.s8 %v5376
      %v5378 = vlaneseq
      %v5379 = vshrl.u32 %v5378, 7
      %v5380 = vsub.s32 %v5377, %v5379
      %v5381 = vrot.slane %v5353, %v5380
      %v5382 = vcombine.high %v5360, %v5360
      %v5383 = vcombine.high %v5367, %v5367
      %v5384 = vcombine.high %v5374, %v5374
      %v5385 = vcombine.high %v5381, %v5381
      %v5387 = vunpack.c.l.s4 1966171168
      %v5388 = vunpack.c.0.s8 %v5387
      %v5389 = vlaneseq
      %v5390 = vshrl.u32 %v5389, 7
      %v5391 = vsub.s32 %v5388, %v5390
      %v5392 = vrot.slane %v5284, %v5391
      %v5393 = vcombine.high %v5392, %v5392
      %v5395 = vunpack.c.l.s4 1966171168
      %v5396 = vunpack.c.0.s8 %v5395
      %v5397 = vlaneseq
      %v5398 = vshrl.u32 %v5397, 7
      %v5399 = vsub.s32 %v5396, %v5398
      %v5400 = vrot.slane %v5392, %v5399
      %v5402 = vunpack.c.l.s4 1966171168
      %v5403 = vunpack.c.0.s8 %v5402
      %v5404 = vlaneseq
      %v5405 = vshrl.u32 %v5404, 7
      %v5406 = vsub.s32 %v5403, %v5405
      %v5407 = vrot.slane %v5393, %v5406
      %v5408 = vunpack.i.l.s16 %v5311
      %v5409 = vunpack.i.h.s16 %v5311
      %v5410 = vunpack.i.l.s16 %v5325
      %v5411 = vunpack.i.h.s16 %v5325
      %v5412 = vunpack.i.l.s16 %v5333
      %v5413 = vunpack.i.h.s16 %v5333
      %v5414 = vunpack.i.l.s16 %v5335
      %v5415 = vunpack.i.h.s16 %v5335
      %v5416 = vunpack.i.l.s16 %v5318
      %v5417 = vunpack.i.h.s16 %v5318
      %v5418 = vunpack.i.l.s16 %v5332
      %v5419 = vunpack.i.h.s16 %v5332
      %v5420 = vunpack.i.l.s16 %v5334
      %v5421 = vunpack.i.h.s16 %v5334
      %v5422 = vunpack.i.l.s16 %v5336
      %v5423 = vunpack.i.h.s16 %v5336
      %v5424 = vunpack.i.l.s16 %v5360
      %v5425 = vunpack.i.h.s16 %v5360
      %v5426 = vunpack.i.l.s16 %v5374
      %v5427 = vunpack.i.h.s16 %v5374
      %v5428 = vunpack.i.l.s16 %v5382
      %v5429 = vunpack.i.h.s16 %v5382
      %v5430 = vunpack.i.l.s16 %v5384
      %v5431 = vunpack.i.h.s16 %v5384
      %v5432 = vunpack.i.l.s16 %v5367
      %v5433 = vunpack.i.h.s16 %v5367
      %v5434 = vunpack.i.l.s16 %v5381
      %v5435 = vunpack.i.h.s16 %v5381
      %v5436 = vunpack.i.l.s16 %v5383
      %v5437 = vunpack.i.h.s16 %v5383
      %v5438 = vunpack.i.l.s16 %v5385
      %v5439 = vunpack.i.h.s16 %v5385
      %v5440 = vunpack.i.l.s16 %v5400
      %v5441 = vunpack.i.h.s16 %v5400
      %v5442 = vunpack.i.l.s16 %v5407
      %v5443 = vunpack.i.h.s16 %v5407
      %v5444 = vpack.i.b16 %v5408, %v5408
      %v5445 = vpack.i.b16 %v5417, %v5417
      %v5446 = vpack.i.b16 %v5426, %v5426
      %v5447 = vpack.i.b16 %v5435, %v5435
      %v5448 = vlaneseq
      %v5449 = vshrl.u32 %v5448, 7
      %v5450 = vsub.s32 0, %v5449
      %v5451 = vrot.slane %v5444, %v5450
      %v5452 = vlaneseq
      %v5453 = vshrl.u32 %v5452, 7
      %v5454 = vsub.s32 0, %v5453
      %v5455 = vrot.slane %v5445, %v5454
      %v5456 = vlaneseq
      %v5457 = vshrl.u32 %v5456, 7
      %v5458 = vsub.s32 0, %v5457
      %v5459 = vrot.slane %v5446, %v5458
      %v5460 = vlaneseq
      %v5461 = vshrl.u32 %v5460, 7
      %v5462 = vsub.s32 0, %v5461
      %v5463 = vrot.slane %v5447, %v5462
      %v5464 = vpack.i.b16 %v5409, %v5409
      %v5465 = vpack.i.b16 %v5418, %v5418
      %v5466 = vpack.i.b16 %v5427, %v5427
      %v5467 = vpack.i.b16 %v5436, %v5436
      %v5468 = vlaneseq
      %v5469 = vshrl.u32 %v5468, 7
      %v5470 = vsub.s32 0, %v5469
      %v5471 = vrot.slane %v5464, %v5470
      %v5472 = vlaneseq
      %v5473 = vshrl.u32 %v5472, 7
      %v5474 = vsub.s32 0, %v5473
      %v5475 = vrot.slane %v5465, %v5474
      %v5476 = vlaneseq
      %v5477 = vshrl.u32 %v5476, 7
      %v5478 = vsub.s32 0, %v5477
      %v5479 = vrot.slane %v5466, %v5478
      %v5480 = vlaneseq
      %v5481 = vshrl.u32 %v5480, 7
      %v5482 = vsub.s32 0, %v5481
      %v5483 = vrot.slane %v5467, %v5482
      %5484 = vrot.lane.b32.xlu0 %v5471, 64
      %v5485 = vpop.permute.xlu0 %5484
      %5486 = vrot.lane.b32.xlu0 %v5475, 64
      %v5487 = vpop.permute.xlu0 %5486
      %5488 = vrot.lane.b32.xlu0 %v5479, 64
      %v5489 = vpop.permute.xlu0 %5488
      %5490 = vrot.lane.b32.xlu0 %v5483, 64
      %v5491 = vpop.permute.xlu0 %5490
      %v5492 = vpack.i.b16 %v5410, %v5410
      %v5493 = vpack.i.b16 %v5419, %v5419
      %v5494 = vpack.i.b16 %v5428, %v5428
      %v5495 = vpack.i.b16 %v5437, %v5437
      %v5496 = vlaneseq
      %v5497 = vshrl.u32 %v5496, 7
      %v5498 = vsub.s32 0, %v5497
      %v5499 = vrot.slane %v5492, %v5498
      %v5500 = vlaneseq
      %v5501 = vshrl.u32 %v5500, 7
      %v5502 = vsub.s32 0, %v5501
      %v5503 = vrot.slane %v5493, %v5502
      %v5504 = vlaneseq
      %v5505 = vshrl.u32 %v5504, 7
      %v5506 = vsub.s32 0, %v5505
      %v5507 = vrot.slane %v5494, %v5506
      %v5508 = vlaneseq
      %v5509 = vshrl.u32 %v5508, 7
      %v5510 = vsub.s32 0, %v5509
      %v5511 = vrot.slane %v5495, %v5510
      %v5512 = vpack.i.b16 %v5411, %v5411
      %v5513 = vpack.i.b16 %v5420, %v5420
      %v5514 = vpack.i.b16 %v5429, %v5429
      %v5515 = vpack.i.b16 %v5438, %v5438
      %v5516 = vlaneseq
      %v5517 = vshrl.u32 %v5516, 7
      %v5518 = vsub.s32 0, %v5517
      %v5519 = vrot.slane %v5512, %v5518
      %v5520 = vlaneseq
      %v5521 = vshrl.u32 %v5520, 7
      %v5522 = vsub.s32 0, %v5521
      %v5523 = vrot.slane %v5513, %v5522
      %v5524 = vlaneseq
      %v5525 = vshrl.u32 %v5524, 7
      %v5526 = vsub.s32 0, %v5525
      %v5527 = vrot.slane %v5514, %v5526
      %v5528 = vlaneseq
      %v5529 = vshrl.u32 %v5528, 7
      %v5530 = vsub.s32 0, %v5529
      %v5531 = vrot.slane %v5515, %v5530
      %5532 = vrot.lane.b32.xlu0 %v5519, 64
      %v5533 = vpop.permute.xlu0 %5532
      %5534 = vrot.lane.b32.xlu0 %v5523, 64
      %v5535 = vpop.permute.xlu0 %5534
      %5536 = vrot.lane.b32.xlu0 %v5527, 64
      %v5537 = vpop.permute.xlu0 %5536
      %5538 = vrot.lane.b32.xlu0 %v5531, 64
      %v5539 = vpop.permute.xlu0 %5538
      %v5540 = vpack.i.b16 %v5412, %v5412
      %v5541 = vpack.i.b16 %v5421, %v5421
      %v5542 = vpack.i.b16 %v5430, %v5430
      %v5543 = vpack.i.b16 %v5439, %v5439
      %v5544 = vlaneseq
      %v5545 = vshrl.u32 %v5544, 7
      %v5546 = vsub.s32 0, %v5545
      %v5547 = vrot.slane %v5540, %v5546
      %v5548 = vlaneseq
      %v5549 = vshrl.u32 %v5548, 7
      %v5550 = vsub.s32 0, %v5549
      %v5551 = vrot.slane %v5541, %v5550
      %v5552 = vlaneseq
      %v5553 = vshrl.u32 %v5552, 7
      %v5554 = vsub.s32 0, %v5553
      %v5555 = vrot.slane %v5542, %v5554
      %v5556 = vlaneseq
      %v5557 = vshrl.u32 %v5556, 7
      %v5558 = vsub.s32 0, %v5557
      %v5559 = vrot.slane %v5543, %v5558
      %v5560 = vpack.i.b16 %v5413, %v5413
      %v5561 = vpack.i.b16 %v5422, %v5422
      %v5562 = vpack.i.b16 %v5431, %v5431
      %v5563 = vpack.i.b16 %v5440, %v5440
      %v5564 = vlaneseq
      %v5565 = vshrl.u32 %v5564, 7
      %v5566 = vsub.s32 0, %v5565
      %v5567 = vrot.slane %v5560, %v5566
      %v5568 = vlaneseq
      %v5569 = vshrl.u32 %v5568, 7
      %v5570 = vsub.s32 0, %v5569
      %v5571 = vrot.slane %v5561, %v5570
      %v5572 = vlaneseq
      %v5573 = vshrl.u32 %v5572, 7
      %v5574 = vsub.s32 0, %v5573
      %v5575 = vrot.slane %v5562, %v5574
      %v5576 = vlaneseq
      %v5577 = vshrl.u32 %v5576, 7
      %v5578 = vsub.s32 0, %v5577
      %v5579 = vrot.slane %v5563, %v5578
      %5580 = vrot.lane.b32.xlu0 %v5567, 64
      %v5581 = vpop.permute.xlu0 %5580
      %5582 = vrot.lane.b32.xlu0 %v5571, 64
      %v5583 = vpop.permute.xlu0 %5582
      %5584 = vrot.lane.b32.xlu0 %v5575, 64
      %v5585 = vpop.permute.xlu0 %5584
      %5586 = vrot.lane.b32.xlu0 %v5579, 64
      %v5587 = vpop.permute.xlu0 %5586
      %v5588 = vpack.i.b16 %v5414, %v5414
      %v5589 = vpack.i.b16 %v5423, %v5423
      %v5590 = vpack.i.b16 %v5432, %v5432
      %v5591 = vpack.i.b16 %v5441, %v5441
      %v5592 = vlaneseq
      %v5593 = vshrl.u32 %v5592, 7
      %v5594 = vsub.s32 0, %v5593
      %v5595 = vrot.slane %v5588, %v5594
      %v5596 = vlaneseq
      %v5597 = vshrl.u32 %v5596, 7
      %v5598 = vsub.s32 0, %v5597
      %v5599 = vrot.slane %v5589, %v5598
      %v5600 = vlaneseq
      %v5601 = vshrl.u32 %v5600, 7
      %v5602 = vsub.s32 0, %v5601
      %v5603 = vrot.slane %v5590, %v5602
      %v5604 = vlaneseq
      %v5605 = vshrl.u32 %v5604, 7
      %v5606 = vsub.s32 0, %v5605
      %v5607 = vrot.slane %v5591, %v5606
      %v5608 = vpack.i.b16 %v5415, %v5415
      %v5609 = vpack.i.b16 %v5424, %v5424
      %v5610 = vpack.i.b16 %v5433, %v5433
      %v5611 = vpack.i.b16 %v5442, %v5442
      %v5612 = vlaneseq
      %v5613 = vshrl.u32 %v5612, 7
      %v5614 = vsub.s32 0, %v5613
      %v5615 = vrot.slane %v5608, %v5614
      %v5616 = vlaneseq
      %v5617 = vshrl.u32 %v5616, 7
      %v5618 = vsub.s32 0, %v5617
      %v5619 = vrot.slane %v5609, %v5618
      %v5620 = vlaneseq
      %v5621 = vshrl.u32 %v5620, 7
      %v5622 = vsub.s32 0, %v5621
      %v5623 = vrot.slane %v5610, %v5622
      %v5624 = vlaneseq
      %v5625 = vshrl.u32 %v5624, 7
      %v5626 = vsub.s32 0, %v5625
      %v5627 = vrot.slane %v5611, %v5626
      %5628 = vrot.lane.b32.xlu0 %v5615, 64
      %v5629 = vpop.permute.xlu0 %5628
      %5630 = vrot.lane.b32.xlu0 %v5619, 64
      %v5631 = vpop.permute.xlu0 %5630
      %5632 = vrot.lane.b32.xlu0 %v5623, 64
      %v5633 = vpop.permute.xlu0 %5632
      %5634 = vrot.lane.b32.xlu0 %v5627, 64
      %v5635 = vpop.permute.xlu0 %5634
      %v5636 = vpack.i.b16 %v5416, %v5416
      %v5637 = vpack.i.b16 %v5425, %v5425
      %v5638 = vpack.i.b16 %v5434, %v5434
      %v5639 = vpack.i.b16 %v5443, %v5443
      %v5640 = vlaneseq
      %v5641 = vshrl.u32 %v5640, 7
      %v5642 = vsub.s32 0, %v5641
      %v5643 = vrot.slane %v5636, %v5642
      %v5644 = vlaneseq
      %v5645 = vshrl.u32 %v5644, 7
      %v5646 = vsub.s32 0, %v5645
      %v5647 = vrot.slane %v5637, %v5646
      %v5648 = vlaneseq
      %v5649 = vshrl.u32 %v5648, 7
      %v5650 = vsub.s32 0, %v5649
      %v5651 = vrot.slane %v5638, %v5650
      %v5652 = vlaneseq
      %v5653 = vshrl.u32 %v5652, 7
      %v5654 = vsub.s32 0, %v5653
      %v5655 = vrot.slane %v5639, %v5654
      %v5658 = vsel %vm516, %v5451, %v5485
      %v5661 = vsel %vm516, %v5455, %v5487
      %v5664 = vsel %vm516, %v5459, %v5489
      %v5667 = vsel %vm516, %v5463, %v5491
      %v5670 = vsel %vm516, %v5499, %v5533
      %v5673 = vsel %vm516, %v5503, %v5535
      %v5676 = vsel %vm516, %v5507, %v5537
      %v5679 = vsel %vm516, %v5511, %v5539
      %v5682 = vsel %vm516, %v5547, %v5581
      %v5685 = vsel %vm516, %v5551, %v5583
      %v5688 = vsel %vm516, %v5555, %v5585
      %v5691 = vsel %vm516, %v5559, %v5587
      %v5694 = vsel %vm516, %v5595, %v5629
      %v5697 = vsel %vm516, %v5599, %v5631
      %v5700 = vsel %vm516, %v5603, %v5633
      %v5703 = vsel %vm516, %v5607, %v5635
      %v5704 = vld [vmem:[%s3] sm:$0xf]
      %v5705 = vld [vmem:[%s3 + $0x4] sm:$0xf]
      %v5706 = vld [vmem:[%s3 + $0x8] sm:$0xf]
      %v5707 = vld [vmem:[%s3 + $0xc] sm:$0xf]
      %v5708 = vld [vmem:[%s3 + $0x10] sm:$0xf]
      %v5709 = vld [vmem:[%s3 + $0x14] sm:$0xf]
      %v5710 = vld [vmem:[%s3 + $0x18] sm:$0xf]
      %v5711 = vld [vmem:[%s3 + $0x1c] sm:$0xf]
      %v5712 = vld [vmem:[%s3 + $0x20] sm:$0xf]
      %v5713 = vld [vmem:[%s3 + $0x24] sm:$0xf]
      %v5714 = vld [vmem:[%s3 + $0x28] sm:$0xf]
      %v5715 = vld [vmem:[%s3 + $0x2c] sm:$0xf]
      %v5716 = vld [vmem:[%s3 + $0x30] sm:$0xf]
      %v5717 = vld [vmem:[%s3 + $0x34] sm:$0xf]
      %v5718 = vld [vmem:[%s3 + $0x38] sm:$0xf]
      %v5719 = vld [vmem:[%s3 + $0x3c] sm:$0xf]
      %v5720 = vld [vmem:[%s3 + $0x40] sm:$0xf]
      %v5721 = vld [vmem:[%s3 + $0x44] sm:$0xf]
      %v5722 = vld [vmem:[%s3 + $0x48] sm:$0xf]
      %v5723 = vld [vmem:[%s3 + $0x4c] sm:$0xf]
      %v5724 = vld [vmem:[%s3 + $0x50] sm:$0xf]
      %v5725 = vld [vmem:[%s3 + $0x54] sm:$0xf]
      %v5726 = vld [vmem:[%s3 + $0x58] sm:$0xf]
      %v5727 = vld [vmem:[%s3 + $0x5c] sm:$0xf]
      %v5728 = vld [vmem:[%s3 + $0x60] sm:$0xf]
      %v5729 = vld [vmem:[%s3 + $0x64] sm:$0xf]
      %v5730 = vld [vmem:[%s3 + $0x68] sm:$0xf]
      %v5731 = vld [vmem:[%s3 + $0x6c] sm:$0xf]
      %v5732 = vld [vmem:[%s3 + $0x70] sm:$0xf]
      %v5733 = vld [vmem:[%s3 + $0x74] sm:$0xf]
      %v5734 = vld [vmem:[%s3 + $0x78] sm:$0xf]
      %v5735 = vld [vmem:[%s3 + $0x7c] sm:$0xf]
      %v5736 = vld [vmem:[%s3 + $0x80] sm:$0xf]
      %v5737 = vld [vmem:[%s3 + $0x84] sm:$0xf]
      %v5738 = vld [vmem:[%s3 + $0x88] sm:$0xf]
      %v5739 = vld [vmem:[%s3 + $0x8c] sm:$0xf]
      %v5740 = vld [vmem:[%s3 + $0x90] sm:$0xf]
      %v5741 = vld [vmem:[%s3 + $0x94] sm:$0xf]
      %v5742 = vld [vmem:[%s3 + $0x98] sm:$0xf]
      %v5743 = vld [vmem:[%s3 + $0x9c] sm:$0xf]
      %v5744 = vld [vmem:[%s3 + $0xa0] sm:$0xf]
      %v5745 = vld [vmem:[%s3 + $0xa4] sm:$0xf]
      %v5746 = vld [vmem:[%s3 + $0xa8] sm:$0xf]
      %v5747 = vld [vmem:[%s3 + $0xac] sm:$0xf]
      %v5748 = vld [vmem:[%s3 + $0xb0] sm:$0xf]
      %v5749 = vld [vmem:[%s3 + $0xb4] sm:$0xf]
      %v5750 = vld [vmem:[%s3 + $0xb8] sm:$0xf]
      %v5751 = vld [vmem:[%s3 + $0xbc] sm:$0xf]
      %v5752 = vld [vmem:[%s3 + $0xc0] sm:$0xf]
      %v5753 = vld [vmem:[%s3 + $0xc4] sm:$0xf]
      %v5754 = vld [vmem:[%s3 + $0xc8] sm:$0xf]
      %v5755 = vld [vmem:[%s3 + $0xcc] sm:$0xf]
      %v5756 = vld [vmem:[%s3 + $0xd0] sm:$0xf]
      %v5757 = vld [vmem:[%s3 + $0xd4] sm:$0xf]
      %v5758 = vld [vmem:[%s3 + $0xd8] sm:$0xf]
      %v5759 = vld [vmem:[%s3 + $0xdc] sm:$0xf]
      %v5760 = vld [vmem:[%s3 + $0xe0] sm:$0xf]
      %v5761 = vld [vmem:[%s3 + $0xe4] sm:$0xf]
      %v5762 = vld [vmem:[%s3 + $0xe8] sm:$0xf]
      %v5763 = vld [vmem:[%s3 + $0xec] sm:$0xf]
      %v5764 = vld [vmem:[%s3 + $0xf0] sm:$0xf]
      %v5765 = vld [vmem:[%s3 + $0xf4] sm:$0xf]
      %v5766 = vld [vmem:[%s3 + $0xf8] sm:$0xf]
      %v5767 = vld [vmem:[%s3 + $0xfc] sm:$0xf]
      %v5768 = vld [vmem:[%s3 + $0x100] sm:$0xf]
      %v5769 = vld [vmem:[%s3 + $0x104] sm:$0xf]
      %v5770 = vld [vmem:[%s3 + $0x108] sm:$0xf]
      %v5771 = vld [vmem:[%s3 + $0x10c] sm:$0xf]
      %v5772 = vld [vmem:[%s3 + $0x110] sm:$0xf]
      %v5773 = vld [vmem:[%s3 + $0x114] sm:$0xf]
      %v5774 = vld [vmem:[%s3 + $0x118] sm:$0xf]
      %v5775 = vld [vmem:[%s3 + $0x11c] sm:$0xf]
      %v5776 = vld [vmem:[%s6] sm:$0x1]
      %v5778 = vlaneseq
      %v5779 = vshrl.u32 %v5778, 7
      %v5780 = vsub.s32 0, %v5779
      %v5781 = vrot.slane %v5776, %v5780
      %v5799 = vunpack.c.l.b16 %v5658
      %v5800 = vunpack.c.l.b16 %v5670
      %v5801 = vunpack.c.l.b16 %v5682
      %v5802 = vunpack.c.l.b16 %v5694
      %v5803 = vunpack.c.l.b16 %v5643
      %v5804 = vunpack.c.l.b16 %v5661
      %v5805 = vunpack.c.l.b16 %v5673
      %v5806 = vunpack.c.l.b16 %v5685
      %v5807 = vunpack.c.l.b16 %v5697
      %v5808 = vunpack.c.l.b16 %v5647
      %v5809 = vunpack.c.l.b16 %v5664
      %v5810 = vunpack.c.l.b16 %v5676
      %v5811 = vunpack.c.l.b16 %v5688
      %v5812 = vunpack.c.l.b16 %v5700
      %v5813 = vunpack.c.l.b16 %v5651
      %v5814 = vunpack.c.l.b16 %v5667
      %v5815 = vunpack.c.l.b16 %v5679
      %v5816 = vunpack.c.l.b16 %v5691
      %v5817 = vunpack.c.l.b16 %v5703
      %v5818 = vunpack.c.l.b16 %v5655
      %v5819 = vrot.slane %v5804, 7
      %vm5820 = vcmask 1041409
      %v5821 = vsel %vm5820, %v5819, %v5799
      %v5822 = vrot.slane %v5809, 6
      %vm5823 = vcmask 1042434
      %v5824 = vsel %vm5823, %v5822, %v5821
      %v5825 = vrot.slane %v5814, 5
      %vm5826 = vcmask 1043459
      %v5827 = vsel %vm5826, %v5825, %v5824
      %v5828 = vrot.slane %v5805, 7
      %v5829 = vsel %vm5820, %v5828, %v5800
      %v5830 = vrot.slane %v5810, 6
      %v5831 = vsel %vm5823, %v5830, %v5829
      %v5832 = vrot.slane %v5815, 5
      %v5833 = vsel %vm5826, %v5832, %v5831
      %v5834 = vrot.slane %v5806, 7
      %v5835 = vsel %vm5820, %v5834, %v5801
      %v5836 = vrot.slane %v5811, 6
      %v5837 = vsel %vm5823, %v5836, %v5835
      %v5838 = vrot.slane %v5816, 5
      %v5839 = vsel %vm5826, %v5838, %v5837
      %v5840 = vrot.slane %v5807, 7
      %v5841 = vsel %vm5820, %v5840, %v5802
      %v5842 = vrot.slane %v5812, 6
      %v5843 = vsel %vm5823, %v5842, %v5841
      %v5844 = vrot.slane %v5817, 5
      %v5845 = vsel %vm5826, %v5844, %v5843
      %v5846 = vrot.slane %v5808, 7
      %v5847 = vsel %vm5820, %v5846, %v5803
      %v5848 = vrot.slane %v5813, 6
      %v5849 = vsel %vm5823, %v5848, %v5847
      %v5850 = vrot.slane %v5818, 5
      %v5851 = vsel %vm5826, %v5850, %v5849
      %v5852 = vpack.c.b16 %v5827, %v5827
      %v5853 = vpack.c.b16 %v5833, %v5833
      %v5854 = vpack.c.b16 %v5839, %v5839
      %v5855 = vpack.c.b16 %v5845, %v5845
      %v5856 = vpack.c.b16 %v5851, %v5851
      %v5933 = vunpack.c.l.b16 %v5704
      %v5934 = vunpack.c.l.b16 %v5705
      %v5935 = vunpack.c.l.b16 %v5706
      %v5936 = vunpack.c.l.b16 %v5707
      %v5937 = vunpack.c.l.b16 %v5708
      %v5938 = vunpack.c.l.b16 %v5709
      %v5939 = vunpack.c.l.b16 %v5710
      %v5940 = vunpack.c.l.b16 %v5711
      %v5941 = vunpack.c.l.b16 %v5712
      %v5942 = vunpack.c.l.b16 %v5713
      %v5943 = vunpack.c.l.b16 %v5714
      %v5944 = vunpack.c.l.b16 %v5715
      %v5945 = vunpack.c.l.b16 %v5716
      %v5946 = vunpack.c.l.b16 %v5717
      %v5947 = vunpack.c.l.b16 %v5718
      %v5948 = vunpack.c.l.b16 %v5719
      %v5949 = vunpack.c.l.b16 %v5720
      %v5950 = vunpack.c.l.b16 %v5721
      %v5951 = vunpack.c.l.b16 %v5722
      %v5952 = vunpack.c.l.b16 %v5723
      %v5953 = vunpack.c.l.b16 %v5724
      %v5954 = vunpack.c.l.b16 %v5725
      %v5955 = vunpack.c.l.b16 %v5726
      %v5956 = vunpack.c.l.b16 %v5727
      %v5957 = vunpack.c.l.b16 %v5728
      %v5958 = vunpack.c.l.b16 %v5729
      %v5959 = vunpack.c.l.b16 %v5730
      %v5960 = vunpack.c.l.b16 %v5731
      %v5961 = vunpack.c.l.b16 %v5732
      %v5962 = vunpack.c.l.b16 %v5733
      %v5963 = vunpack.c.l.b16 %v5734
      %v5964 = vunpack.c.l.b16 %v5735
      %v5965 = vunpack.c.l.b16 %v5736
      %v5966 = vunpack.c.l.b16 %v5737
      %v5967 = vunpack.c.l.b16 %v5738
      %v5968 = vunpack.c.l.b16 %v5739
      %v5969 = vunpack.c.l.b16 %v5740
      %v5970 = vunpack.c.l.b16 %v5741
      %v5971 = vunpack.c.l.b16 %v5742
      %v5972 = vunpack.c.l.b16 %v5743
      %v5973 = vunpack.c.l.b16 %v5744
      %v5974 = vunpack.c.l.b16 %v5745
      %v5975 = vunpack.c.l.b16 %v5746
      %v5976 = vunpack.c.l.b16 %v5747
      %v5977 = vunpack.c.l.b16 %v5748
      %v5978 = vunpack.c.l.b16 %v5749
      %v5979 = vunpack.c.l.b16 %v5750
      %v5980 = vunpack.c.l.b16 %v5751
      %v5981 = vunpack.c.l.b16 %v5752
      %v5982 = vunpack.c.l.b16 %v5753
      %v5983 = vunpack.c.l.b16 %v5754
      %v5984 = vunpack.c.l.b16 %v5755
      %v5985 = vunpack.c.l.b16 %v5756
      %v5986 = vunpack.c.l.b16 %v5757
      %v5987 = vunpack.c.l.b16 %v5758
      %v5988 = vunpack.c.l.b16 %v5759
      %v5989 = vunpack.c.l.b16 %v5760
      %v5990 = vunpack.c.l.b16 %v5761
      %v5991 = vunpack.c.l.b16 %v5762
      %v5992 = vunpack.c.l.b16 %v5763
      %v5993 = vunpack.c.l.b16 %v5764
      %v5994 = vunpack.c.l.b16 %v5765
      %v5995 = vunpack.c.l.b16 %v5766
      %v5996 = vunpack.c.l.b16 %v5767
      %v5997 = vunpack.c.l.b16 %v5768
      %v5998 = vunpack.c.l.b16 %v5769
      %v5999 = vunpack.c.l.b16 %v5770
      %v6000 = vunpack.c.l.b16 %v5771
      %v6001 = vunpack.c.l.b16 %v5772
      %v6002 = vunpack.c.l.b16 %v5773
      %v6003 = vunpack.c.l.b16 %v5774
      %v6004 = vunpack.c.l.b16 %v5775
      %v6005 = vpack.c.b16 %v5934, %v5933
      %v6006 = vpack.c.b16 %v5936, %v5935
      %v6007 = vpack.c.b16 %v5938, %v5937
      %v6008 = vpack.c.b16 %v5940, %v5939
      %v6009 = vpack.c.b16 %v5942, %v5941
      %v6010 = vpack.c.b16 %v5944, %v5943
      %v6011 = vpack.c.b16 %v5946, %v5945
      %v6012 = vpack.c.b16 %v5948, %v5947
      %v6013 = vpack.c.b16 %v5950, %v5949
      %v6014 = vpack.c.b16 %v5952, %v5951
      %v6015 = vpack.c.b16 %v5954, %v5953
      %v6016 = vpack.c.b16 %v5956, %v5955
      %v6017 = vpack.c.b16 %v5958, %v5957
      %v6018 = vpack.c.b16 %v5960, %v5959
      %v6019 = vpack.c.b16 %v5962, %v5961
      %v6020 = vpack.c.b16 %v5964, %v5963
      %v6021 = vpack.c.b16 %v5966, %v5965
      %v6022 = vpack.c.b16 %v5968, %v5967
      %v6023 = vpack.c.b16 %v5970, %v5969
      %v6024 = vpack.c.b16 %v5972, %v5971
      %v6025 = vpack.c.b16 %v5974, %v5973
      %v6026 = vpack.c.b16 %v5976, %v5975
      %v6027 = vpack.c.b16 %v5978, %v5977
      %v6028 = vpack.c.b16 %v5980, %v5979
      %v6029 = vpack.c.b16 %v5982, %v5981
      %v6030 = vpack.c.b16 %v5984, %v5983
      %v6031 = vpack.c.b16 %v5986, %v5985
      %v6032 = vpack.c.b16 %v5988, %v5987
      %v6033 = vpack.c.b16 %v5990, %v5989
      %v6034 = vpack.c.b16 %v5992, %v5991
      %v6035 = vpack.c.b16 %v5994, %v5993
      %v6036 = vpack.c.b16 %v5996, %v5995
      %v6037 = vpack.c.b16 %v5998, %v5997
      %v6038 = vpack.c.b16 %v6000, %v5999
      %v6039 = vpack.c.b16 %v6002, %v6001
      %v6040 = vpack.c.b16 %v6004, %v6003
      %v6078 = vsel %vm516, %v5856, 0
      %6080 = vmatprep.subr.bf16.mxu0 0
      %6081 = vmatpush1.bf16.msra.mxu0 %v6005
      %6082 = vmatprep.subr.bf16.mxu0 0
      %6083 = vmatpush1.bf16.msra.mxu0 %v6006
      %6084 = vmatprep.subr.bf16.mxu0 0
      %6085 = vmatpush1.bf16.msra.mxu0 %v6007
      %6086 = vmatprep.subr.bf16.mxu0 0
      %6087 = vmatpush1.bf16.msra.mxu0 %v6008
      %6088 = vmatprep.subr.bf16.mxu0 0
      %6089 = vmatpush1.bf16.msra.mxu0 %v6009
      %6090 = vmatprep.subr.bf16.mxu0 0
      %6091 = vmatpush1.bf16.msra.mxu0 %v6010
      %6092 = vmatprep.subr.bf16.mxu0 0
      %6093 = vmatpush1.bf16.msra.mxu0 %v6011
      %6094 = vmatprep.subr.bf16.mxu0 0
      %6095 = vmatpush1.bf16.msra.mxu0 %v6012
      %6096 = vmatprep.subr.bf16.mxu0 0
      %6097 = vmatpush1.bf16.msra.mxu0 %v6013
      %6098 = vmatprep.subr.bf16.mxu0 0
      %6099 = vmatpush1.bf16.msra.mxu0 %v6014
      %6100 = vmatprep.subr.bf16.mxu0 0
      %6101 = vmatpush1.bf16.msra.mxu0 %v6015
      %6102 = vmatprep.subr.bf16.mxu0 0
      %6103 = vmatpush1.bf16.msra.mxu0 %v6016
      %6104 = vmatprep.subr.bf16.mxu0 0
      %6105 = vmatpush1.bf16.msra.mxu0 %v6017
      %6106 = vmatprep.subr.bf16.mxu0 0
      %6107 = vmatpush1.bf16.msra.mxu0 %v6018
      %6108 = vmatprep.subr.bf16.mxu0 0
      %6109 = vmatpush1.bf16.msra.mxu0 %v6019
      %6110 = vmatprep.subr.bf16.mxu0 0
      %6111 = vmatpush1.bf16.msra.mxu0 %v6020
      %6112 = vmatprep.mubr.bf16.mxu0 %v5853
      %6113 = vmatmul.mubr.bf16.gmra.mrb[0].mxu0 %v5852
      %v6114 = vpop.f32.mrb[0].mxu0
      %v6115 = vadd.f32 %v5781, %v6114
      %v6116 = vpop.f32.mrb[0].mxu0
      %v6117 = vpop.f32.mrb[0].mxu0
      %v6118 = vpop.f32.mrb[0].mxu0
      %6119 = vdwg.mxu0
      %6120 = vmatprep.subr.bf16.mxu0 0
      %6121 = vmatpush1.bf16.msra.mxu0 %v6021
      %6122 = vmatprep.subr.bf16.mxu0 0
      %6123 = vmatpush1.bf16.msra.mxu0 %v6022
      %6124 = vmatprep.subr.bf16.mxu0 0
      %6125 = vmatpush1.bf16.msra.mxu0 %v6023
      %6126 = vmatprep.subr.bf16.mxu0 0
      %6127 = vmatpush1.bf16.msra.mxu0 %v6024
      %6128 = vmatprep.subr.bf16.mxu0 0
      %6129 = vmatpush1.bf16.msra.mxu0 %v6025
      %6130 = vmatprep.subr.bf16.mxu0 0
      %6131 = vmatpush1.bf16.msra.mxu0 %v6026
      %6132 = vmatprep.subr.bf16.mxu0 0
      %6133 = vmatpush1.bf16.msra.mxu0 %v6027
      %6134 = vmatprep.subr.bf16.mxu0 0
      %6135 = vmatpush1.bf16.msra.mxu0 %v6028
      %6136 = vmatprep.subr.bf16.mxu0 0
      %6137 = vmatpush1.bf16.msra.mxu0 %v6029
      %6138 = vmatprep.subr.bf16.mxu0 0
      %6139 = vmatpush1.bf16.msra.mxu0 %v6030
      %6140 = vmatprep.subr.bf16.mxu0 0
      %6141 = vmatpush1.bf16.msra.mxu0 %v6031
      %6142 = vmatprep.subr.bf16.mxu0 0
      %6143 = vmatpush1.bf16.msra.mxu0 %v6032
      %6144 = vmatprep.subr.bf16.mxu0 0
      %6145 = vmatpush1.bf16.msra.mxu0 %v6033
      %6146 = vmatprep.subr.bf16.mxu0 0
      %6147 = vmatpush1.bf16.msra.mxu0 %v6034
      %6148 = vmatprep.subr.bf16.mxu0 0
      %6149 = vmatpush1.bf16.msra.mxu0 %v6035
      %6150 = vmatprep.subr.bf16.mxu0 0
      %6151 = vmatpush1.bf16.msra.mxu0 %v6036
      %6152 = vmatprep.mubr.bf16.mxu0 %v5855
      %6153 = vmatmul.mubr.bf16.gmra.mrb[0].mxu0 %v5854
      %v6154 = vpop.f32.mrb[0].mxu0
      %v6155 = vadd.f32 %v6115, %v6154
      %v6156 = vpop.f32.mrb[0].mxu0
      %v6157 = vpop.f32.mrb[0].mxu0
      %v6158 = vpop.f32.mrb[0].mxu0
      %6159 = vdwg.mxu0
      %6160 = vmatprep.subr.bf16.mxu0 0
      %6161 = vmatpush1.bf16.msra.mxu0 %v6037
      %6162 = vmatprep.subr.bf16.mxu0 0
      %6163 = vmatpush1.bf16.msra.mxu0 %v6038
      %6164 = vmatprep.subr.bf16.mxu0 0
      %6165 = vmatpush1.bf16.msra.mxu0 %v6039
      %6166 = vmatprep.subr.bf16.mxu0 0
      %6167 = vmatpush1.bf16.msra.mxu0 %v6040
      %6168 = vmatprep.subr.bf16.mxu0 0
      %6169 = vmatpush1.bf16.msra.mxu0 0
      %6170 = vmatprep.subr.bf16.mxu0 0
      %6171 = vmatpush1.bf16.msra.mxu0 0
      %6172 = vmatprep.subr.bf16.mxu0 0
      %6173 = vmatpush1.bf16.msra.mxu0 0
      %6174 = vmatprep.subr.bf16.mxu0 0
      %6175 = vmatpush1.bf16.msra.mxu0 0
      %6176 = vmatprep.subr.bf16.mxu0 0
      %6177 = vmatpush1.bf16.msra.mxu0 0
      %6178 = vmatprep.subr.bf16.mxu0 0
      %6179 = vmatpush1.bf16.msra.mxu0 0
      %6180 = vmatprep.subr.bf16.mxu0 0
      %6181 = vmatpush1.bf16.msra.mxu0 0
      %6182 = vmatprep.subr.bf16.mxu0 0
      %6183 = vmatpush1.bf16.msra.mxu0 0
      %6184 = vmatprep.subr.bf16.mxu0 0
      %6185 = vmatpush1.bf16.msra.mxu0 0
      %6186 = vmatprep.subr.bf16.mxu0 0
      %6187 = vmatpush1.bf16.msra.mxu0 0
      %6188 = vmatprep.subr.bf16.mxu0 0
      %6189 = vmatpush1.bf16.msra.mxu0 0
      %6190 = vmatprep.subr.bf16.mxu0 0
      %6191 = vmatpush1.bf16.msra.mxu0 0
      %6192 = vmatprep.mubr.bf16.mxu0 0
      %6193 = vmatmul.mubr.bf16.gmra.mrb[0].mxu0 %v6078
      %v6194 = vpop.f32.mrb[0].mxu0
      %v6195 = vadd.f32 %v6155, %v6194
      %v6196 = vpop.f32.mrb[0].mxu0
      %v6197 = vpop.f32.mrb[0].mxu0
      %v6198 = vpop.f32.mrb[0].mxu0
      %6199 = vdwg.mxu0
      %v6200 = vmax.f32 %v6195, 0.0
      %v6203 = vunpack.c.l.s4 1966171168
      %v6204 = vunpack.c.0.s8 %v6203
      %v6205 = vlaneseq
      %v6206 = vshrl.u32 %v6205, 7
      %v6207 = vsub.s32 %v6204, %v6206
      %v6208 = vrot.slane %v6200, %v6207
      %v6209 = vcombine.high %v6208, %v6208
      %v6211 = vunpack.c.l.s4 1966171168
      %v6212 = vunpack.c.0.s8 %v6211
      %v6213 = vlaneseq
      %v6214 = vshrl.u32 %v6213, 7
      %v6215 = vsub.s32 %v6212, %v6214
      %v6216 = vrot.slane %v6208, %v6215
      %v6218 = vunpack.c.l.s4 1966171168
      %v6219 = vunpack.c.0.s8 %v6218
      %v6220 = vlaneseq
      %v6221 = vshrl.u32 %v6220, 7
      %v6222 = vsub.s32 %v6219, %v6221
      %v6223 = vrot.slane %v6209, %v6222
      %v6224 = vcombine.high %v6216, %v6216
      %v6225 = vcombine.high %v6223, %v6223
      %v6230 = vpack.c.bf16 %v6216, %v6216
      %v6231 = vpack.c.bf16 %v6223, %v6223
      %v6232 = vpack.c.bf16 %v6224, %v6224
      %v6233 = vpack.c.bf16 %v6225, %v6225
      %vm6234 = vcmask 1040384
      %vm6235 = vsmask.f32 256
      %vm6236 = vmand %vm6234, %vm6235
      %v6237 = vld [vmem:[%s281] sm:$0x1]
      %v6238 = vsel %vm6236, %v6230, %v6237
      %6239 = vst [vmem:[%s281] sm:$0x1] %v6238
      %v6240 = vld [vmem:[%s281 + $0x1] sm:$0x1]
      %v6241 = vsel %vm6236, %v6231, %v6240
      %6242 = vst [vmem:[%s281 + $0x1] sm:$0x1] %v6241
      %v6243 = vld [vmem:[%s281 + $0x2] sm:$0x1]
      %v6244 = vsel %vm6236, %v6232, %v6243
      %6245 = vst [vmem:[%s281 + $0x2] sm:$0x1] %v6244
      %v6246 = vld [vmem:[%s281 + $0x3] sm:$0x1]
      %v6247 = vsel %vm6236, %v6233, %v6246
      %6248 = vst [vmem:[%s281 + $0x3] sm:$0x1] %v6247
      %s6249 = smul.u32 4, %s18
      %p6250 = scmp.lt.s32.totalorder %s6249, 7
      %s6251 = scalar_select %p6250, %s6249, 7
      %s6252 = scalar_lea.vmem %s7, %s6251
      // Predicated region
      $region49: #{forward.1} parent=47 // pred_check
        %p6253 = pneg %p188
      $region50: #{forward.1} parent=47 // pred_check_branch
        %6255 = sbr.rel (%p6253) target = $region52
      $region51: #{forward.1} parent=47 // pred_region
        %s6256 = smul.u32 4, %s18
      $region52: #{forward.1} parent=47 // pred_fallthru
        _
    $region48: #{forward.1} parent=5 // pred_fallthru
      _
    %p6257 = scmp.le.s32.totalorder 2, %s13
    // Predicated region
    $region53: #{forward.1} parent=5 // pred_check
      %p6258 = pneg %p6257
    $region54: #{forward.1} parent=5 // pred_check_branch
      %6260 = sbr.rel (%p6258) target = $region56
    $region55: #{forward.1} parent=5 // pred_region
      %s6261 = ssub.s32 %s13, 2
      // Predicated region
      $region57: #{forward.1} parent=55 // pred_check
        %p6262 = pneg %p194
      $region58: #{forward.1} parent=55 // pred_check_branch
        %6264 = sbr.rel (%p6262) target = $region60
      $region59: #{forward.1} parent=55 // pred_region
        %s6265 = smul.u32 4, %s19
        %p6266 = scmp.lt.s32.totalorder %s6265, 7
        %s6267 = scalar_select %p6266, %s6265, 7
        %s6268 = scalar_lea.vmem %s7, %s6267
      $region60: #{forward.1} parent=55 // pred_fallthru
        _
    $region56: #{forward.1} parent=5 // pred_fallthru
      _
  $region6: #{forward.1} parent=0 // loop_footer
    %s17 = sadd.s32 1, %s13
  $region7: #{forward.1} parent=0 // loop_footer_branch
    %12 = sbr.rel target = $region3
  $region8: #{forward.1} parent=0 // loop_exit
    _

</llo_original>
